<compile_context>
chip_gen: v5e
topology: v5e:2x2
jax: 0.10.0
libtpu: 0.0.40
codegen_flags: <defaults>
</compile_context>

<pallas_src>
import functools

import numpy as np

import jax
import jax.numpy as jnp
from jax import lax
from jax.experimental import pallas as pl
from jax.experimental.pallas import tpu as pltpu


def _vanilla_kernel(x_ref, cw_ref, cb_ref, fw_ref, fb_ref, o_ref, *, last):
    # x_ref : (TB, Cin*HW)        input batch block (free NCHW reshape)
    # cw_ref: (Cin*HW, Cout*HW)   conv-as-matmul weight (3x3/pad=1 folded in)
    # cb_ref: (1, Cout*HW)        conv bias broadcast over spatial positions
    # fw_ref: (Cout*HW, Kpad)     fused AdaptiveAvgPool2d(2) + fc weight
    # fb_ref: (1, Kpad)           fc bias (-1e30 on padded class columns)
    # o_ref : (TB, Kpad)
    x = x_ref[...]

    # Conv2d(3x3, pad=1) + bias + ReLU as ONE weight-stationary 2-D MXU matmul.
    conv = jnp.dot(x, cw_ref[...], preferred_element_type=jnp.float32)
    conv = jnp.maximum(conv + cb_ref[...], 0.0)           # (TB, Cout*HW)

    # AdaptiveAvgPool2d(2) + flatten + fc fused into a second 2-D MXU matmul.
    logits = jnp.dot(conv, fw_ref[...],
                     preferred_element_type=jnp.float32) + fb_ref[...]

    # Vanilla.last
    if last == 'logsoftmax':
        m = jnp.max(logits, axis=1, keepdims=True)
        z = logits - m
        out = z - jnp.log(jnp.sum(jnp.exp(z), axis=1, keepdims=True))
    elif last == 'logits':
        out = logits
    else:
        raise ValueError('Unknown last operation')

    o_ref[...] = out.astype(o_ref.dtype)


def _default_block_batch():
    # v7x: 64 MiB VMEM per TensorCore -> smaller batch block (and >=2 grid
    # blocks for its 2 TensorCores when N is large); v5e/v6e: 128 MiB physical.
    try:
        kind = jax.devices()[0].device_kind.lower()
    except Exception:
        kind = ''
    return 128 if 'v7' in kind else 256


def _build_weights(params, H, W, num_classes_pad):
    """Host-side lowering of conv / pool / fc into two dense matmul weights."""
    conv_w = np.asarray(params['conv_w'], np.float32)    # (Cout, Cin, 3, 3)
    conv_b = np.asarray(params['conv_b'], np.float32)    # (Cout,)
    fc_w = np.asarray(params['fc_w'], np.float32)        # (K, Cout*4)
    fc_b = np.asarray(params['fc_b'], np.float32)        # (K,)
    Cout, Cin = conv_w.shape[0], conv_w.shape[1]
    K = fc_w.shape[0]
    HW = H * W

    # --- conv 3x3 / pad=1 -> dense (Cin*HW, Cout*HW) matrix -----------------
    # S[t, j, i] = 1 iff input position j feeds output position i under tap t
    # (cross-correlation, PyTorch convention; out-of-image taps excluded).
    hh, ww = np.arange(HW) // W, np.arange(HW) % W
    S = np.zeros((9, HW, HW), np.float32)
    t = 0
    for kh in range(3):
        for kw in range(3):
            dh, dw = kh - 1, kw - 1
            sh, sw = hh + dh, ww + dw
            valid = (sh >= 0) & (sh < H) & (sw >= 0) & (sw < W)
            S[t, (sh * W + sw)[valid], np.nonzero(valid)[0]] = 1.0
            t += 1
    w_t = conv_w.transpose(2, 3, 0, 1).reshape(9, Cout, Cin)     # [t, o, c]
    cw = np.einsum('tji,toc->cjoi', S, w_t).reshape(Cin * HW, Cout * HW)
    cb = np.repeat(conv_b, HW)[None]                             # (1, Cout*HW)

    # --- AdaptiveAvgPool2d(2) bin weights (PyTorch boundaries, odd sizes ok) -
    def _bins(size, out):
        m = np.zeros((out, size), np.float32)
        for i in range(out):
            s = (i * size) // out
            e = -((-(i + 1) * size) // out)                      # ceil
            m[i, s:e] = 1.0 / (e - s)
        return m

    Mh, Mw = _bins(H, 2), _bins(W, 2)
    pool = np.stack([np.outer(Mh[qi], Mw[qj]).reshape(HW)
                     for qi in range(2) for qj in range(2)])     # (4, HW)

    # --- fuse pool + fc: Wf[c*HW + i, k] = sum_q pool[q, i] * fc_w[k, c*4+q] -
    fcw3 = fc_w.reshape(K, Cout, 4)                              # [k, c, q]
    fw = np.einsum('qi,kcq->cik', pool, fcw3).reshape(Cout * HW, K)
    fw = np.pad(fw, ((0, 0), (0, num_classes_pad - K)))
    fb = np.concatenate([fc_b,
                         np.full((num_classes_pad - K,), -1e30,
                                 np.float32)])[None]             # (1, Kpad)
    return (jnp.asarray(cw), jnp.asarray(cb), jnp.asarray(fw), jnp.asarray(fb))


def vanilla_forward(x_nchw, params, last='logits', block_batch=None):
    N, Cin, H, W = x_nchw.shape
    Cout = params['conv_w'].shape[0]
    num_classes = params['fc_w'].shape[0]
    HW = H * W
    Kpad = ((num_classes + 127) // 128) * 128        # lane-dense class width

    if block_batch is None:
        block_batch = _default_block_batch()
    # TB is either a multiple of 8 (128/256) or the full batch dim -> legal.
    TB = N if N <= block_batch else block_batch
    nb = pl.cdiv(N, TB)

    # Input: free, contiguous reshape of the NCHW tensor (no transpose / pad
    # HBM round trip); block (TB, Cin*HW) is a fully dense DMA tile.
    x2 = x_nchw.reshape(N, Cin * HW)

    cw, cb, fw, fb = _build_weights(params, H, W, Kpad)

    kernel = functools.partial(_vanilla_kernel, last=last)
    out = pl.pallas_call(
        kernel,
        out_shape=jax.ShapeDtypeStruct((N, Kpad), jnp.float32),
        grid=(nb,),
        in_specs=[
            pl.BlockSpec((TB, Cin * HW), lambda n: (n, 0)),
            pl.BlockSpec((Cin * HW, Cout * HW), lambda n: (0, 0)),
            pl.BlockSpec((1, Cout * HW), lambda n: (0, 0)),
            pl.BlockSpec((Cout * HW, Kpad), lambda n: (0, 0)),
            pl.BlockSpec((1, Kpad), lambda n: (0, 0)),
        ],
        out_specs=pl.BlockSpec((TB, Kpad), lambda n: (n, 0)),
        compiler_params=pltpu.CompilerParams(
            dimension_semantics=("parallel",),
            vmem_limit_bytes=48 * 1024 * 1024),
    )(x2, cw, cb, fw, fb)

    return out[:, :num_classes]


def vanilla_reference(x_nchw, params, last='logits'):
    """Pure-JAX reference mirroring the PyTorch forward (even H/W)."""
    conv_w, conv_b = params['conv_w'], params['conv_b']
    fc_w, fc_b = params['fc_w'], params['fc_b']
    y = lax.conv_general_dilated(
        x_nchw, conv_w, window_strides=(1, 1), padding='SAME',
        dimension_numbers=('NCHW', 'OIHW', 'NCHW'))
    y = jnp.maximum(y + conv_b.reshape(1, -1, 1, 1), 0.0)
    N, C, H, W = y.shape
    y = y.reshape(N, C, 2, H // 2, 2, W // 2).mean(axis=(3, 5))  # (N, C, 2, 2)
    logits = y.reshape(N, -1) @ fc_w.T + fc_b                    # NCHW flatten
    if last == 'logsoftmax':
        return jax.nn.log_softmax(logits, axis=1)
    return logits


if __name__ == "__main__":
    key = jax.random.PRNGKey(0)
    k_x, k_cw, k_cb, k_fw, k_fb = jax.random.split(key, 5)

    N, Cin, H, W = 2, 4, 16, 16     # input (NCHW, PyTorch convention)
    c, num_classes = 8, 10          # base output channels, fc classes

    x = jax.random.normal(k_x, (N, Cin, H, W), jnp.float32)
    params = {
        'conv_w': 0.1 * jax.random.normal(k_cw, (c, Cin, 3, 3), jnp.float32),
        'conv_b': 0.1 * jax.random.normal(k_cb, (c,), jnp.float32),
        'fc_w':   0.1 * jax.random.normal(k_fw, (num_classes, c * 4), jnp.float32),
        'fc_b':   0.1 * jax.random.normal(k_fb, (num_classes,), jnp.float32),
    }

    ok = True
    for last in ('logits', 'logsoftmax'):
        out = jax.block_until_ready(vanilla_forward(x, params, last=last))
        ref = vanilla_reference(x, params, last=last)
        if out.shape != (N, num_classes):
            ok = False
        if not jnp.allclose(out, ref, atol=2e-4, rtol=2e-4):
            ok = False

    print("KERNEL_OK" if ok else "KERNEL_MISMATCH")
</pallas_src>

<mosaic_0001>
module attributes {stable_mosaic.version = 11 : i64} {
  func.func @_vanilla_kernel(%arg0: i32, %arg1: memref<2x1024xf32, #tpu.memory_space<vmem>>, %arg2: memref<1024x2048xf32, #tpu.memory_space<vmem>>, %arg3: memref<1x2048xf32, #tpu.memory_space<vmem>>, %arg4: memref<2048x128xf32, #tpu.memory_space<vmem>>, %arg5: memref<1x128xf32, #tpu.memory_space<vmem>>, %arg6: memref<2x128xf32, #tpu.memory_space<vmem>>) attributes {dimension_semantics = [#tpu.dimension_semantics<parallel>], iteration_bounds = array<i64: 1>, scalar_prefetch = 0 : i64, scratch_operands = 0 : i64, tpu.core_type = #tpu.core_type<tc>, window_params = [{transform_indices = @transform_0, window_bounds = array<i64: 2, 1024>}, {pipeline_mode = #tpu.pipeline_mode<synchronous>, transform_indices = @transform_1, window_bounds = array<i64: 1024, 2048>}, {pipeline_mode = #tpu.pipeline_mode<synchronous>, transform_indices = @transform_2, window_bounds = array<i64: 1, 2048>}, {pipeline_mode = #tpu.pipeline_mode<synchronous>, transform_indices = @transform_3, window_bounds = array<i64: 2048, 128>}, {pipeline_mode = #tpu.pipeline_mode<synchronous>, transform_indices = @transform_4, window_bounds = array<i64: 1, 128>}, {transform_indices = @transform_5, window_bounds = array<i64: 2, 128>}]} {
    %c0 = arith.constant 0 : index
    %c0_0 = arith.constant 0 : index
    %0 = vector.load %arg1[%c0, %c0_0] : memref<2x1024xf32, #tpu.memory_space<vmem>>, vector<2x1024xf32>
    %c0_1 = arith.constant 0 : index
    %c0_2 = arith.constant 0 : index
    %1 = vector.load %arg2[%c0_1, %c0_2] : memref<1024x2048xf32, #tpu.memory_space<vmem>>, vector<1024x2048xf32>
    %cst = arith.constant dense<0.000000e+00> : vector<2x2048xf32>
    %2 = tpu.matmul %0, %1, %cst {dimension_numbers = #tpu.dot_dimension_numbers<[1], [0], [0], [1], [0, 0, 1, 1], [], []>} : vector<2x1024xf32>, vector<1024x2048xf32>, vector<2x2048xf32> -> vector<2x2048xf32>
    %c0_3 = arith.constant 0 : index
    %c0_4 = arith.constant 0 : index
    %3 = vector.load %arg3[%c0_3, %c0_4] : memref<1x2048xf32, #tpu.memory_space<vmem>>, vector<1x2048xf32>
    %4 = vector.broadcast %3 : vector<1x2048xf32> to vector<2x2048xf32>
    %5 = arith.addf %2, %4 : vector<2x2048xf32>
    %cst_5 = arith.constant 0.000000e+00 : f32
    %6 = vector.broadcast %cst_5 : f32 to vector<2x2048xf32>
    %7 = arith.maximumf %5, %6 : vector<2x2048xf32>
    %c0_6 = arith.constant 0 : index
    %c0_7 = arith.constant 0 : index
    %8 = vector.load %arg4[%c0_6, %c0_7] : memref<2048x128xf32, #tpu.memory_space<vmem>>, vector<2048x128xf32>
    %cst_8 = arith.constant dense<0.000000e+00> : vector<2x128xf32>
    %9 = tpu.matmul %7, %8, %cst_8 {dimension_numbers = #tpu.dot_dimension_numbers<[1], [0], [0], [1], [0, 0, 1, 1], [], []>} : vector<2x2048xf32>, vector<2048x128xf32>, vector<2x128xf32> -> vector<2x128xf32>
    %c0_9 = arith.constant 0 : index
    %c0_10 = arith.constant 0 : index
    %10 = vector.load %arg5[%c0_9, %c0_10] : memref<1x128xf32, #tpu.memory_space<vmem>>, vector<1x128xf32>
    %11 = vector.broadcast %10 : vector<1x128xf32> to vector<2x128xf32>
    %12 = arith.addf %9, %11 : vector<2x128xf32>
    %c0_11 = arith.constant 0 : index
    %c0_12 = arith.constant 0 : index
    %13 = vector.load %arg6[%c0_11, %c0_12] : memref<2x128xf32, #tpu.memory_space<vmem>>, vector<2x128xf32>
    tpu.vector_store %arg6[%c0_11, %c0_12], %12 {strides = array<i32>} : memref<2x128xf32, #tpu.memory_space<vmem>>, vector<2x128xf32>,
    return
  }
  func.func @transform_0(%arg0: i32) -> (i32, i32) {
    %c0_i32 = arith.constant 0 : i32
    %c0_i32_0 = arith.constant 0 : i32
    return %arg0, %c0_i32 : i32, i32
  }
  func.func @transform_1(%arg0: i32) -> (i32, i32) {
    %c0_i32 = arith.constant 0 : i32
    %c0_i32_0 = arith.constant 0 : i32
    %c0_i32_1 = arith.constant 0 : i32
    return %c0_i32, %c0_i32_0 : i32, i32
  }
  func.func @transform_2(%arg0: i32) -> (i32, i32) {
    %c0_i32 = arith.constant 0 : i32
    %c0_i32_0 = arith.constant 0 : i32
    %c0_i32_1 = arith.constant 0 : i32
    return %c0_i32, %c0_i32_0 : i32, i32
  }
  func.func @transform_3(%arg0: i32) -> (i32, i32) {
    %c0_i32 = arith.constant 0 : i32
    %c0_i32_0 = arith.constant 0 : i32
    %c0_i32_1 = arith.constant 0 : i32
    return %c0_i32, %c0_i32_0 : i32, i32
  }
  func.func @transform_4(%arg0: i32) -> (i32, i32) {
    %c0_i32 = arith.constant 0 : i32
    %c0_i32_0 = arith.constant 0 : i32
    %c0_i32_1 = arith.constant 0 : i32
    return %c0_i32, %c0_i32_0 : i32, i32
  }
  func.func @transform_5(%arg0: i32) -> (i32, i32) {
    %c0_i32 = arith.constant 0 : i32
    %c0_i32_0 = arith.constant 0 : i32
    return %arg0, %c0_i32 : i32, i32
  }
}

</mosaic_0001>

<llo_original>
// kernel: tpu_custom_call.1
$region0: #{tpu_custom_call.1}
  #allocation0 [shape = 'u32[]', space=smem, size = 0x4, offset = 0x4, fixed_abs, tag = 'smem constant byte address 0x4 - core index']
  #allocation1 [shape = 'u32[72,128]{1,0:T(1,128)}', space=vmem, size = 0x9000, scoped, tag = 'internal scratch']
  %s0 = inlined_call_operand.hbm [shape: f32[2,1024], index: 0, kind: input, shape index: {}]
  %s1 = inlined_call_operand.hbm [shape: f32[1024,2048], index: 1, kind: input, shape index: {}]
  %s2 = inlined_call_operand.hbm [shape: f32[1,2048], index: 2, kind: input, shape index: {}]
  %s3 = inlined_call_operand.hbm [shape: f32[2048,128], index: 3, kind: input, shape index: {}]
  %s4 = inlined_call_operand.hbm [shape: f32[1,128], index: 4, kind: input, shape index: {}]
  %s5 = inlined_call_operand.hbm [shape: f32[2,128], index: 5, kind: output, shape index: {}]
  %s6 = sld [smem:[#allocation0]]
  $region50: #{tpu_custom_call.1} parent=0
    _
  %s8 = ssub.s32 1, %s6
  %s9 = scalar_select 0, %s8, %s6
  $region1: #{tpu_custom_call.1} parent=0
    #allocation2 [shape = 'u8[8192]{0}', space=vmem, size = 0x2000, scoped, tag = 'input window, operand 0, single buffered']
    #allocation3 [shape = 's32[1]{0}', space=sflag, size = 0x4, scoped, tag = 'scoped memory for tpu_custom_call.1']
    #allocation4 [shape = 's32[1]{0}', space=sflag, size = 0x4, scoped, tag = 'scoped memory for tpu_custom_call.1']
    #allocation5 [shape = 'u8[8388608]{0}', space=vmem, size = 0x800000, scoped, tag = 'input window, operand 1, single buffered']
    #allocation6 [shape = 's32[1]{0}', space=sflag, size = 0x4, scoped, tag = 'scoped memory for tpu_custom_call.1']
    #allocation7 [shape = 'u8[8192]{0}', space=vmem, size = 0x2000, scoped, tag = 'input window, operand 2, single buffered']
    #allocation8 [shape = 'u8[1048576]{0}', space=vmem, size = 0x100000, scoped, tag = 'input window, operand 3, single buffered']
    #allocation9 [shape = 's32[1]{0}', space=sflag, size = 0x4, scoped, tag = 'scoped memory for tpu_custom_call.1']
    #allocation10 [shape = 'u8[512]{0}', space=vmem, size = 0x400, scoped, tag = 'input window, operand 4, single buffered']
    #allocation11 [shape = 'u8[1024]{0}', space=vmem, size = 0x400, scoped, tag = 'output window, operand 0, single buffered']
    %10 = vsyncpa [#allocation3], 0
    %11 = vsyncpa [#allocation6], 0
    %12 = vsyncpa [#allocation9], 0
    %13 = vsyncpa [#allocation4], 0
    // Predicated region
    $region2: #{tpu_custom_call.1} parent=1 // pred_check
      _
    $region3: #{tpu_custom_call.1} parent=1 // pred_check_branch
      %15 = sbr.rel (0) target = $region5
    $region4: #{tpu_custom_call.1} parent=1 // pred_region
      %17 = vsyncadd [#allocation3], 0
      %s19 = sshll.u32 %s0, 4
      %s20 = int_to_ptr.hbm [resolvable:$true] %s19
      %s21 = sshll.u32 [#allocation2], 4
      %s22 = int_to_ptr.vmem [resolvable:$true] %s21
      %24 = dma.hbm_to_vmem [thread:$0]  %s20, 256, %s22, [#allocation3]
    $region5: #{tpu_custom_call.1} parent=1 // pred_fallthru
      _
    // Predicated region
    $region6: #{tpu_custom_call.1} parent=1 // pred_check
      _
    $region7: #{tpu_custom_call.1} parent=1 // pred_check_branch
      %26 = sbr.rel (0) target = $region9
    $region8: #{tpu_custom_call.1} parent=1 // pred_region
      %28 = vsyncadd [#allocation6], 0
      %s29 = sshll.u32 %s1, 4
      %s30 = int_to_ptr.hbm [resolvable:$true] %s29
      %s31 = sshll.u32 [#allocation5], 4
      %s32 = int_to_ptr.vmem [resolvable:$true] %s31
      %37 = dma.hbm_to_vmem [thread:$0]  %s30, 262144, %s32, [#allocation6], 2048, 2048, 128
    $region9: #{tpu_custom_call.1} parent=1 // pred_fallthru
      _
    // Predicated region
    $region10: #{tpu_custom_call.1} parent=1 // pred_check
      _
    $region11: #{tpu_custom_call.1} parent=1 // pred_check_branch
      %39 = sbr.rel (0) target = $region13
    $region12: #{tpu_custom_call.1} parent=1 // pred_region
      %41 = vsyncadd [#allocation6], 0
      %s43 = sshll.u32 %s2, 4
      %s44 = int_to_ptr.hbm [resolvable:$true] %s43
      %s45 = sshll.u32 [#allocation7], 4
      %s46 = int_to_ptr.vmem [resolvable:$true] %s45
      %48 = dma.hbm_to_vmem [thread:$0]  %s44, 256, %s46, [#allocation6]
    $region13: #{tpu_custom_call.1} parent=1 // pred_fallthru
      _
    // Predicated region
    $region14: #{tpu_custom_call.1} parent=1 // pred_check
      _
    $region15: #{tpu_custom_call.1} parent=1 // pred_check_branch
      %50 = sbr.rel (0) target = $region17
    $region16: #{tpu_custom_call.1} parent=1 // pred_region
      %52 = vsyncadd [#allocation9], 0
      %s53 = sshll.u32 %s3, 4
      %s54 = int_to_ptr.hbm [resolvable:$true] %s53
      %s55 = sshll.u32 [#allocation8], 4
      %s56 = int_to_ptr.vmem [resolvable:$true] %s55
      %61 = dma.hbm_to_vmem [thread:$0]  %s54, 32768, %s56, [#allocation9], 128, 128, 8
    $region17: #{tpu_custom_call.1} parent=1 // pred_fallthru
      _
    // Predicated region
    $region18: #{tpu_custom_call.1} parent=1 // pred_check
      _
    $region19: #{tpu_custom_call.1} parent=1 // pred_check_branch
      %63 = sbr.rel (0) target = $region21
    $region20: #{tpu_custom_call.1} parent=1 // pred_region
      %65 = vsyncadd [#allocation9], 0
      %s67 = sshll.u32 %s4, 4
      %s68 = int_to_ptr.hbm [resolvable:$true] %s67
      %s69 = sshll.u32 [#allocation10], 4
      %s70 = int_to_ptr.vmem [resolvable:$true] %s69
      %72 = dma.hbm_to_vmem [thread:$0]  %s68, 16, %s70, [#allocation9]
    $region21: #{tpu_custom_call.1} parent=1 // pred_fallthru
      _
    // Predicated region
    $region22: #{tpu_custom_call.1} parent=1 // pred_check
      _
    $region23: #{tpu_custom_call.1} parent=1 // pred_check_branch
      %74 = sbr.rel (0) target = $region25
    $region24: #{tpu_custom_call.1} parent=1 // pred_region
      %76 = dma.done [#allocation3], 256
    $region25: #{tpu_custom_call.1} parent=1 // pred_fallthru
      _
    // Predicated region
    $region26: #{tpu_custom_call.1} parent=1 // pred_check
      _
    $region27: #{tpu_custom_call.1} parent=1 // pred_check_branch
      %78 = sbr.rel (0) target = $region29
    $region28: #{tpu_custom_call.1} parent=1 // pred_region
      %80 = dma.done [#allocation6], 262144
    $region29: #{tpu_custom_call.1} parent=1 // pred_fallthru
      _
    // Predicated region
    $region30: #{tpu_custom_call.1} parent=1 // pred_check
      _
    $region31: #{tpu_custom_call.1} parent=1 // pred_check_branch
      %82 = sbr.rel (0) target = $region33
    $region32: #{tpu_custom_call.1} parent=1 // pred_region
      %84 = dma.done [#allocation6], 256
    $region33: #{tpu_custom_call.1} parent=1 // pred_fallthru
      _
    // Predicated region
    $region34: #{tpu_custom_call.1} parent=1 // pred_check
      _
    $region35: #{tpu_custom_call.1} parent=1 // pred_check_branch
      %86 = sbr.rel (0) target = $region37
    $region36: #{tpu_custom_call.1} parent=1 // pred_region
      %88 = dma.done [#allocation9], 32768
    $region37: #{tpu_custom_call.1} parent=1 // pred_fallthru
      _
    // Predicated region
    $region38: #{tpu_custom_call.1} parent=1 // pred_check
      _
    $region39: #{tpu_custom_call.1} parent=1 // pred_check_branch
      %90 = sbr.rel (0) target = $region41
    $region40: #{tpu_custom_call.1} parent=1 // pred_region
      %92 = dma.done [#allocation9], 16
    $region41: #{tpu_custom_call.1} parent=1 // pred_fallthru
      _
    %v93 = vld [vmem:[#allocation2] sm:$0xff]
    %v94 = vld [vmem:[#allocation2 + $0x8] sm:$0xff]
    %v95 = vld [vmem:[#allocation5] sm:$0xff]
    %v96 = vld [vmem:[#allocation5 + $0x8] sm:$0xff]
    %v97 = vld [vmem:[#allocation5 + $0x10] sm:$0xff]
    %v98 = vld [vmem:[#allocation5 + $0x18] sm:$0xff]
    %v99 = vld [vmem:[#allocation5 + $0x20] sm:$0xff]
    %v100 = vld [vmem:[#allocation5 + $0x28] sm:$0xff]
    %v101 = vld [vmem:[#allocation5 + $0x30] sm:$0xff]
    %v102 = vld [vmem:[#allocation5 + $0x38] sm:$0xff]
    %v103 = vld [vmem:[#allocation5 + $0x40] sm:$0xff]
    %v104 = vld [vmem:[#allocation5 + $0x48] sm:$0xff]
    %v105 = vld [vmem:[#allocation5 + $0x50] sm:$0xff]
    %v106 = vld [vmem:[#allocation5 + $0x58] sm:$0xff]
    %v107 = vld [vmem:[#allocation5 + $0x60] sm:$0xff]
    %v108 = vld [vmem:[#allocation5 + $0x68] sm:$0xff]
    %v109 = vld [vmem:[#allocation5 + $0x70] sm:$0xff]
    %v110 = vld [vmem:[#allocation5 + $0x78] sm:$0xff]
    %v111 = vld [vmem:[#allocation5 + $0x80] sm:$0xff]
    %v112 = vld [vmem:[#allocation5 + $0x88] sm:$0xff]
    %v113 = vld [vmem:[#allocation5 + $0x90] sm:$0xff]
    %v114 = vld [vmem:[#allocation5 + $0x98] sm:$0xff]
    %v115 = vld [vmem:[#allocation5 + $0xa0] sm:$0xff]
    %v116 = vld [vmem:[#allocation5 + $0xa8] sm:$0xff]
    %v117 = vld [vmem:[#allocation5 + $0xb0] sm:$0xff]
    %v118 = vld [vmem:[#allocation5 + $0xb8] sm:$0xff]
    %v119 = vld [vmem:[#allocation5 + $0xc0] sm:$0xff]
    %v120 = vld [vmem:[#allocation5 + $0xc8] sm:$0xff]
    %v121 = vld [vmem:[#allocation5 + $0xd0] sm:$0xff]
    %v122 = vld [vmem:[#allocation5 + $0xd8] sm:$0xff]
    %v123 = vld [vmem:[#allocation5 + $0xe0] sm:$0xff]
    %v124 = vld [vmem:[#allocation5 + $0xe8] sm:$0xff]
    %v125 = vld [vmem:[#allocation5 + $0xf0] sm:$0xff]
    %v126 = vld [vmem:[#allocation5 + $0xf8] sm:$0xff]
    %v127 = vld [vmem:[#allocation5 + $0x100] sm:$0xff]
    %v128 = vld [vmem:[#allocation5 + $0x108] sm:$0xff]
    %v129 = vld [vmem:[#allocation5 + $0x110] sm:$0xff]
    %v130 = vld [vmem:[#allocation5 + $0x118] sm:$0xff]
    %v131 = vld [vmem:[#allocation5 + $0x120] sm:$0xff]
    %v132 = vld [vmem:[#allocation5 + $0x128] sm:$0xff]
    %v133 = vld [vmem:[#allocation5 + $0x130] sm:$0xff]
    %v134 = vld [vmem:[#allocation5 + $0x138] sm:$0xff]
    %v135 = vld [vmem:[#allocation5 + $0x140] sm:$0xff]
    %v136 = vld [vmem:[#allocation5 + $0x148] sm:$0xff]
    %v137 = vld [vmem:[#allocation5 + $0x150] sm:$0xff]
    %v138 = vld [vmem:[#allocation5 + $0x158] sm:$0xff]
    %v139 = vld [vmem:[#allocation5 + $0x160] sm:$0xff]
    %v140 = vld [vmem:[#allocation5 + $0x168] sm:$0xff]
    %v141 = vld [vmem:[#allocation5 + $0x170] sm:$0xff]
    %v142 = vld [vmem:[#allocation5 + $0x178] sm:$0xff]
    %v143 = vld [vmem:[#allocation5 + $0x180] sm:$0xff]
    %v144 = vld [vmem:[#allocation5 + $0x188] sm:$0xff]
    %v145 = vld [vmem:[#allocation5 + $0x190] sm:$0xff]
    %v146 = vld [vmem:[#allocation5 + $0x198] sm:$0xff]
    %v147 = vld [vmem:[#allocation5 + $0x1a0] sm:$0xff]
    %v148 = vld [vmem:[#allocation5 + $0x1a8] sm:$0xff]
    %v149 = vld [vmem:[#allocation5 + $0x1b0] sm:$0xff]
    %v150 = vld [vmem:[#allocation5 + $0x1b8] sm:$0xff]
    %v151 = vld [vmem:[#allocation5 + $0x1c0] sm:$0xff]
    %v152 = vld [vmem:[#allocation5 + $0x1c8] sm:$0xff]
    %v153 = vld [vmem:[#allocation5 + $0x1d0] sm:$0xff]
    %v154 = vld [vmem:[#allocation5 + $0x1d8] sm:$0xff]
    %v155 = vld [vmem:[#allocation5 + $0x1e0] sm:$0xff]
    %v156 = vld [vmem:[#allocation5 + $0x1e8] sm:$0xff]
    %v157 = vld [vmem:[#allocation5 + $0x1f0] sm:$0xff]
    %v158 = vld [vmem:[#allocation5 + $0x1f8] sm:$0xff]
    %v159 = vld [vmem:[#allocation5 + $0x200] sm:$0xff]
    %v160 = vld [vmem:[#allocation5 + $0x208] sm:$0xff]
    %v161 = vld [vmem:[#allocation5 + $0x210] sm:$0xff]
    %v162 = vld [vmem:[#allocation5 + $0x218] sm:$0xff]
    %v163 = vld [vmem:[#allocation5 + $0x220] sm:$0xff]
    %v164 = vld [vmem:[#allocation5 + $0x228] sm:$0xff]
    %v165 = vld [vmem:[#allocation5 + $0x230] sm:$0xff]
    %v166 = vld [vmem:[#allocation5 + $0x238] sm:$0xff]
    %v167 = vld [vmem:[#allocation5 + $0x240] sm:$0xff]
    %v168 = vld [vmem:[#allocation5 + $0x248] sm:$0xff]
    %v169 = vld [vmem:[#allocation5 + $0x250] sm:$0xff]
    %v170 = vld [vmem:[#allocation5 + $0x258] sm:$0xff]
    %v171 = vld [vmem:[#allocation5 + $0x260] sm:$0xff]
    %v172 = vld [vmem:[#allocation5 + $0x268] sm:$0xff]
    %v173 = vld [vmem:[#allocation5 + $0x270] sm:$0xff]
    %v174 = vld [vmem:[#allocation5 + $0x278] sm:$0xff]
    %v175 = vld [vmem:[#allocation5 + $0x280] sm:$0xff]
    %v176 = vld [vmem:[#allocation5 + $0x288] sm:$0xff]
    %v177 = vld [vmem:[#allocation5 + $0x290] sm:$0xff]
    %v178 = vld [vmem:[#allocation5 + $0x298] sm:$0xff]
    %v179 = vld [vmem:[#allocation5 + $0x2a0] sm:$0xff]
    %v180 = vld [vmem:[#allocation5 + $0x2a8] sm:$0xff]
    %v181 = vld [vmem:[#allocation5 + $0x2b0] sm:$0xff]
    %v182 = vld [vmem:[#allocation5 + $0x2b8] sm:$0xff]
    %v183 = vld [vmem:[#allocation5 + $0x2c0] sm:$0xff]
    %v184 = vld [vmem:[#allocation5 + $0x2c8] sm:$0xff]
    %v185 = vld [vmem:[#allocation5 + $0x2d0] sm:$0xff]
    %v186 = vld [vmem:[#allocation5 + $0x2d8] sm:$0xff]
    %v187 = vld [vmem:[#allocation5 + $0x2e0] sm:$0xff]
    %v188 = vld [vmem:[#allocation5 + $0x2e8] sm:$0xff]
    %v189 = vld [vmem:[#allocation5 + $0x2f0] sm:$0xff]
    %v190 = vld [vmem:[#allocation5 + $0x2f8] sm:$0xff]
    %v191 = vld [vmem:[#allocation5 + $0x300] sm:$0xff]
    %v192 = vld [vmem:[#allocation5 + $0x308] sm:$0xff]
    %v193 = vld [vmem:[#allocation5 + $0x310] sm:$0xff]
    %v194 = vld [vmem:[#allocation5 + $0x318] sm:$0xff]
    %v195 = vld [vmem:[#allocation5 + $0x320] sm:$0xff]
    %v196 = vld [vmem:[#allocation5 + $0x328] sm:$0xff]
    %v197 = vld [vmem:[#allocation5 + $0x330] sm:$0xff]
    %v198 = vld [vmem:[#allocation5 + $0x338] sm:$0xff]
    %v199 = vld [vmem:[#allocation5 + $0x340] sm:$0xff]
    %v200 = vld [vmem:[#allocation5 + $0x348] sm:$0xff]
    %v201 = vld [vmem:[#allocation5 + $0x350] sm:$0xff]
    %v202 = vld [vmem:[#allocation5 + $0x358] sm:$0xff]
    %v203 = vld [vmem:[#allocation5 + $0x360] sm:$0xff]
    %v204 = vld [vmem:[#allocation5 + $0x368] sm:$0xff]
    %v205 = vld [vmem:[#allocation5 + $0x370] sm:$0xff]
    %v206 = vld [vmem:[#allocation5 + $0x378] sm:$0xff]
    %v207 = vld [vmem:[#allocation5 + $0x380] sm:$0xff]
    %v208 = vld [vmem:[#allocation5 + $0x388] sm:$0xff]
    %v209 = vld [vmem:[#allocation5 + $0x390] sm:$0xff]
    %v210 = vld [vmem:[#allocation5 + $0x398] sm:$0xff]
    %v211 = vld [vmem:[#allocation5 + $0x3a0] sm:$0xff]
    %v212 = vld [vmem:[#allocation5 + $0x3a8] sm:$0xff]
    %v213 = vld [vmem:[#allocation5 + $0x3b0] sm:$0xff]
    %v214 = vld [vmem:[#allocation5 + $0x3b8] sm:$0xff]
    %v215 = vld [vmem:[#allocation5 + $0x3c0] sm:$0xff]
    %v216 = vld [vmem:[#allocation5 + $0x3c8] sm:$0xff]
    %v217 = vld [vmem:[#allocation5 + $0x3d0] sm:$0xff]
    %v218 = vld [vmem:[#allocation5 + $0x3d8] sm:$0xff]
    %v219 = vld [vmem:[#allocation5 + $0x3e0] sm:$0xff]
    %v220 = vld [vmem:[#allocation5 + $0x3e8] sm:$0xff]
    %v221 = vld [vmem:[#allocation5 + $0x3f0] sm:$0xff]
    %v222 = vld [vmem:[#allocation5 + $0x3f8] sm:$0xff]
    %v223 = vld [vmem:[#allocation5 + $0x400] sm:$0xff]
    %v224 = vld [vmem:[#allocation5 + $0x408] sm:$0xff]
    %v225 = vld [vmem:[#allocation5 + $0x410] sm:$0xff]
    %v226 = vld [vmem:[#allocation5 + $0x418] sm:$0xff]
    %v227 = vld [vmem:[#allocation5 + $0x420] sm:$0xff]
    %v228 = vld [vmem:[#allocation5 + $0x428] sm:$0xff]
    %v229 = vld [vmem:[#allocation5 + $0x430] sm:$0xff]
    %v230 = vld [vmem:[#allocation5 + $0x438] sm:$0xff]
    %v231 = vld [vmem:[#allocation5 + $0x440] sm:$0xff]
    %v232 = vld [vmem:[#allocation5 + $0x448] sm:$0xff]
    %v233 = vld [vmem:[#allocation5 + $0x450] sm:$0xff]
    %v234 = vld [vmem:[#allocation5 + $0x458] sm:$0xff]
    %v235 = vld [vmem:[#allocation5 + $0x460] sm:$0xff]
    %v236 = vld [vmem:[#allocation5 + $0x468] sm:$0xff]
    %v237 = vld [vmem:[#allocation5 + $0x470] sm:$0xff]
    %v238 = vld [vmem:[#allocation5 + $0x478] sm:$0xff]
    %v239 = vld [vmem:[#allocation5 + $0x480] sm:$0xff]
    %v240 = vld [vmem:[#allocation5 + $0x488] sm:$0xff]
    %v241 = vld [vmem:[#allocation5 + $0x490] sm:$0xff]
    %v242 = vld [vmem:[#allocation5 + $0x498] sm:$0xff]
    %v243 = vld [vmem:[#allocation5 + $0x4a0] sm:$0xff]
    %v244 = vld [vmem:[#allocation5 + $0x4a8] sm:$0xff]
    %v245 = vld [vmem:[#allocation5 + $0x4b0] sm:$0xff]
    %v246 = vld [vmem:[#allocation5 + $0x4b8] sm:$0xff]
    %v247 = vld [vmem:[#allocation5 + $0x4c0] sm:$0xff]
    %v248 = vld [vmem:[#allocation5 + $0x4c8] sm:$0xff]
    %v249 = vld [vmem:[#allocation5 + $0x4d0] sm:$0xff]
    %v250 = vld [vmem:[#allocation5 + $0x4d8] sm:$0xff]
    %v251 = vld [vmem:[#allocation5 + $0x4e0] sm:$0xff]
    %v252 = vld [vmem:[#allocation5 + $0x4e8] sm:$0xff]
    %v253 = vld [vmem:[#allocation5 + $0x4f0] sm:$0xff]
    %v254 = vld [vmem:[#allocation5 + $0x4f8] sm:$0xff]
    %v255 = vld [vmem:[#allocation5 + $0x500] sm:$0xff]
    %v256 = vld [vmem:[#allocation5 + $0x508] sm:$0xff]
    %v257 = vld [vmem:[#allocation5 + $0x510] sm:$0xff]
    %v258 = vld [vmem:[#allocation5 + $0x518] sm:$0xff]
    %v259 = vld [vmem:[#allocation5 + $0x520] sm:$0xff]
    %v260 = vld [vmem:[#allocation5 + $0x528] sm:$0xff]
    %v261 = vld [vmem:[#allocation5 + $0x530] sm:$0xff]
    %v262 = vld [vmem:[#allocation5 + $0x538] sm:$0xff]
    %v263 = vld [vmem:[#allocation5 + $0x540] sm:$0xff]
    %v264 = vld [vmem:[#allocation5 + $0x548] sm:$0xff]
    %v265 = vld [vmem:[#allocation5 + $0x550] sm:$0xff]
    %v266 = vld [vmem:[#allocation5 + $0x558] sm:$0xff]
    %v267 = vld [vmem:[#allocation5 + $0x560] sm:$0xff]
    %v268 = vld [vmem:[#allocation5 + $0x568] sm:$0xff]
    %v269 = vld [vmem:[#allocation5 + $0x570] sm:$0xff]
    %v270 = vld [vmem:[#allocation5 + $0x578] sm:$0xff]
    %v271 = vld [vmem:[#allocation5 + $0x580] sm:$0xff]
    %v272 = vld [vmem:[#allocation5 + $0x588] sm:$0xff]
    %v273 = vld [vmem:[#allocation5 + $0x590] sm:$0xff]
    %v274 = vld [vmem:[#allocation5 + $0x598] sm:$0xff]
    %v275 = vld [vmem:[#allocation5 + $0x5a0] sm:$0xff]
    %v276 = vld [vmem:[#allocation5 + $0x5a8] sm:$0xff]
    %v277 = vld [vmem:[#allocation5 + $0x5b0] sm:$0xff]
    %v278 = vld [vmem:[#allocation5 + $0x5b8] sm:$0xff]
    %v279 = vld [vmem:[#allocation5 + $0x5c0] sm:$0xff]
    %v280 = vld [vmem:[#allocation5 + $0x5c8] sm:$0xff]
    %v281 = vld [vmem:[#allocation5 + $0x5d0] sm:$0xff]
    %v282 = vld [vmem:[#allocation5 + $0x5d8] sm:$0xff]
    %v283 = vld [vmem:[#allocation5 + $0x5e0] sm:$0xff]
    %v284 = vld [vmem:[#allocation5 + $0x5e8] sm:$0xff]
    %v285 = vld [vmem:[#allocation5 + $0x5f0] sm:$0xff]
    %v286 = vld [vmem:[#allocation5 + $0x5f8] sm:$0xff]
    %v287 = vld [vmem:[#allocation5 + $0x600] sm:$0xff]
    %v288 = vld [vmem:[#allocation5 + $0x608] sm:$0xff]
    %v289 = vld [vmem:[#allocation5 + $0x610] sm:$0xff]
    %v290 = vld [vmem:[#allocation5 + $0x618] sm:$0xff]
    %v291 = vld [vmem:[#allocation5 + $0x620] sm:$0xff]
    %v292 = vld [vmem:[#allocation5 + $0x628] sm:$0xff]
    %v293 = vld [vmem:[#allocation5 + $0x630] sm:$0xff]
    %v294 = vld [vmem:[#allocation5 + $0x638] sm:$0xff]
    %v295 = vld [vmem:[#allocation5 + $0x640] sm:$0xff]
    %v296 = vld [vmem:[#allocation5 + $0x648] sm:$0xff]
    %v297 = vld [vmem:[#allocation5 + $0x650] sm:$0xff]
    %v298 = vld [vmem:[#allocation5 + $0x658] sm:$0xff]
    %v299 = vld [vmem:[#allocation5 + $0x660] sm:$0xff]
    %v300 = vld [vmem:[#allocation5 + $0x668] sm:$0xff]
    %v301 = vld [vmem:[#allocation5 + $0x670] sm:$0xff]
    %v302 = vld [vmem:[#allocation5 + $0x678] sm:$0xff]
    %v303 = vld [vmem:[#allocation5 + $0x680] sm:$0xff]
    %v304 = vld [vmem:[#allocation5 + $0x688] sm:$0xff]
    %v305 = vld [vmem:[#allocation5 + $0x690] sm:$0xff]
    %v306 = vld [vmem:[#allocation5 + $0x698] sm:$0xff]
    %v307 = vld [vmem:[#allocation5 + $0x6a0] sm:$0xff]
    %v308 = vld [vmem:[#allocation5 + $0x6a8] sm:$0xff]
    %v309 = vld [vmem:[#allocation5 + $0x6b0] sm:$0xff]
    %v310 = vld [vmem:[#allocation5 + $0x6b8] sm:$0xff]
    %v311 = vld [vmem:[#allocation5 + $0x6c0] sm:$0xff]
    %v312 = vld [vmem:[#allocation5 + $0x6c8] sm:$0xff]
    %v313 = vld [vmem:[#allocation5 + $0x6d0] sm:$0xff]
    %v314 = vld [vmem:[#allocation5 + $0x6d8] sm:$0xff]
    %v315 = vld [vmem:[#allocation5 + $0x6e0] sm:$0xff]
    %v316 = vld [vmem:[#allocation5 + $0x6e8] sm:$0xff]
    %v317 = vld [vmem:[#allocation5 + $0x6f0] sm:$0xff]
    %v318 = vld [vmem:[#allocation5 + $0x6f8] sm:$0xff]
    %v319 = vld [vmem:[#allocation5 + $0x700] sm:$0xff]
    %v320 = vld [vmem:[#allocation5 + $0x708] sm:$0xff]
    %v321 = vld [vmem:[#allocation5 + $0x710] sm:$0xff]
    %v322 = vld [vmem:[#allocation5 + $0x718] sm:$0xff]
    %v323 = vld [vmem:[#allocation5 + $0x720] sm:$0xff]
    %v324 = vld [vmem:[#allocation5 + $0x728] sm:$0xff]
    %v325 = vld [vmem:[#allocation5 + $0x730] sm:$0xff]
    %v326 = vld [vmem:[#allocation5 + $0x738] sm:$0xff]
    %v327 = vld [vmem:[#allocation5 + $0x740] sm:$0xff]
    %v328 = vld [vmem:[#allocation5 + $0x748] sm:$0xff]
    %v329 = vld [vmem:[#allocation5 + $0x750] sm:$0xff]
    %v330 = vld [vmem:[#allocation5 + $0x758] sm:$0xff]
    %v331 = vld [vmem:[#allocation5 + $0x760] sm:$0xff]
    %v332 = vld [vmem:[#allocation5 + $0x768] sm:$0xff]
    %v333 = vld [vmem:[#allocation5 + $0x770] sm:$0xff]
    %v334 = vld [vmem:[#allocation5 + $0x778] sm:$0xff]
    %v335 = vld [vmem:[#allocation5 + $0x780] sm:$0xff]
    %v336 = vld [vmem:[#allocation5 + $0x788] sm:$0xff]
    %v337 = vld [vmem:[#allocation5 + $0x790] sm:$0xff]
    %v338 = vld [vmem:[#allocation5 + $0x798] sm:$0xff]
    %v339 = vld [vmem:[#allocation5 + $0x7a0] sm:$0xff]
    %v340 = vld [vmem:[#allocation5 + $0x7a8] sm:$0xff]
    %v341 = vld [vmem:[#allocation5 + $0x7b0] sm:$0xff]
    %v342 = vld [vmem:[#allocation5 + $0x7b8] sm:$0xff]
    %v343 = vld [vmem:[#allocation5 + $0x7c0] sm:$0xff]
    %v344 = vld [vmem:[#allocation5 + $0x7c8] sm:$0xff]
    %v345 = vld [vmem:[#allocation5 + $0x7d0] sm:$0xff]
    %v346 = vld [vmem:[#allocation5 + $0x7d8] sm:$0xff]
    %v347 = vld [vmem:[#allocation5 + $0x7e0] sm:$0xff]
    %v348 = vld [vmem:[#allocation5 + $0x7e8] sm:$0xff]
    %v349 = vld [vmem:[#allocation5 + $0x7f0] sm:$0xff]
    %v350 = vld [vmem:[#allocation5 + $0x7f8] sm:$0xff]
    %v351 = vld [vmem:[#allocation5 + $0x800] sm:$0xff]
    %v352 = vld [vmem:[#allocation5 + $0x808] sm:$0xff]
    %v353 = vld [vmem:[#allocation5 + $0x810] sm:$0xff]
    %v354 = vld [vmem:[#allocation5 + $0x818] sm:$0xff]
    %v355 = vld [vmem:[#allocation5 + $0x820] sm:$0xff]
    %v356 = vld [vmem:[#allocation5 + $0x828] sm:$0xff]
    %v357 = vld [vmem:[#allocation5 + $0x830] sm:$0xff]
    %v358 = vld [vmem:[#allocation5 + $0x838] sm:$0xff]
    %v359 = vld [vmem:[#allocation5 + $0x840] sm:$0xff]
    %v360 = vld [vmem:[#allocation5 + $0x848] sm:$0xff]
    %v361 = vld [vmem:[#allocation5 + $0x850] sm:$0xff]
    %v362 = vld [vmem:[#allocation5 + $0x858] sm:$0xff]
    %v363 = vld [vmem:[#allocation5 + $0x860] sm:$0xff]
    %v364 = vld [vmem:[#allocation5 + $0x868] sm:$0xff]
    %v365 = vld [vmem:[#allocation5 + $0x870] sm:$0xff]
    %v366 = vld [vmem:[#allocation5 + $0x878] sm:$0xff]
    %v367 = vld [vmem:[#allocation5 + $0x880] sm:$0xff]
    %v368 = vld [vmem:[#allocation5 + $0x888] sm:$0xff]
    %v369 = vld [vmem:[#allocation5 + $0x890] sm:$0xff]
    %v370 = vld [vmem:[#allocation5 + $0x898] sm:$0xff]
    %v371 = vld [vmem:[#allocation5 + $0x8a0] sm:$0xff]
    %v372 = vld [vmem:[#allocation5 + $0x8a8] sm:$0xff]
    %v373 = vld [vmem:[#allocation5 + $0x8b0] sm:$0xff]
    %v374 = vld [vmem:[#allocation5 + $0x8b8] sm:$0xff]
    %v375 = vld [vmem:[#allocation5 + $0x8c0] sm:$0xff]
    %v376 = vld [vmem:[#allocation5 + $0x8c8] sm:$0xff]
    %v377 = vld [vmem:[#allocation5 + $0x8d0] sm:$0xff]
    %v378 = vld [vmem:[#allocation5 + $0x8d8] sm:$0xff]
    %v379 = vld [vmem:[#allocation5 + $0x8e0] sm:$0xff]
    %v380 = vld [vmem:[#allocation5 + $0x8e8] sm:$0xff]
    %v381 = vld [vmem:[#allocation5 + $0x8f0] sm:$0xff]
    %v382 = vld [vmem:[#allocation5 + $0x8f8] sm:$0xff]
    %v383 = vld [vmem:[#allocation5 + $0x900] sm:$0xff]
    %v384 = vld [vmem:[#allocation5 + $0x908] sm:$0xff]
    %v385 = vld [vmem:[#allocation5 + $0x910] sm:$0xff]
    %v386 = vld [vmem:[#allocation5 + $0x918] sm:$0xff]
    %v387 = vld [vmem:[#allocation5 + $0x920] sm:$0xff]
    %v388 = vld [vmem:[#allocation5 + $0x928] sm:$0xff]
    %v389 = vld [vmem:[#allocation5 + $0x930] sm:$0xff]
    %v390 = vld [vmem:[#allocation5 + $0x938] sm:$0xff]
    %v391 = vld [vmem:[#allocation5 + $0x940] sm:$0xff]
    %v392 = vld [vmem:[#allocation5 + $0x948] sm:$0xff]
    %v393 = vld [vmem:[#allocation5 + $0x950] sm:$0xff]
    %v394 = vld [vmem:[#allocation5 + $0x958] sm:$0xff]
    %v395 = vld [vmem:[#allocation5 + $0x960] sm:$0xff]
    %v396 = vld [vmem:[#allocation5 + $0x968] sm:$0xff]
    %v397 = vld [vmem:[#allocation5 + $0x970] sm:$0xff]
    %v398 = vld [vmem:[#allocation5 + $0x978] sm:$0xff]
    %v399 = vld [vmem:[#allocation5 + $0x980] sm:$0xff]
    %v400 = vld [vmem:[#allocation5 + $0x988] sm:$0xff]
    %v401 = vld [vmem:[#allocation5 + $0x990] sm:$0xff]
    %v402 = vld [vmem:[#allocation5 + $0x998] sm:$0xff]
    %v403 = vld [vmem:[#allocation5 + $0x9a0] sm:$0xff]
    %v404 = vld [vmem:[#allocation5 + $0x9a8] sm:$0xff]
    %v405 = vld [vmem:[#allocation5 + $0x9b0] sm:$0xff]
    %v406 = vld [vmem:[#allocation5 + $0x9b8] sm:$0xff]
    %v407 = vld [vmem:[#allocation5 + $0x9c0] sm:$0xff]
    %v408 = vld [vmem:[#allocation5 + $0x9c8] sm:$0xff]
    %v409 = vld [vmem:[#allocation5 + $0x9d0] sm:$0xff]
    %v410 = vld [vmem:[#allocation5 + $0x9d8] sm:$0xff]
    %v411 = vld [vmem:[#allocation5 + $0x9e0] sm:$0xff]
    %v412 = vld [vmem:[#allocation5 + $0x9e8] sm:$0xff]
    %v413 = vld [vmem:[#allocation5 + $0x9f0] sm:$0xff]
    %v414 = vld [vmem:[#allocation5 + $0x9f8] sm:$0xff]
    %v415 = vld [vmem:[#allocation5 + $0xa00] sm:$0xff]
    %v416 = vld [vmem:[#allocation5 + $0xa08] sm:$0xff]
    %v417 = vld [vmem:[#allocation5 + $0xa10] sm:$0xff]
    %v418 = vld [vmem:[#allocation5 + $0xa18] sm:$0xff]
    %v419 = vld [vmem:[#allocation5 + $0xa20] sm:$0xff]
    %v420 = vld [vmem:[#allocation5 + $0xa28] sm:$0xff]
    %v421 = vld [vmem:[#allocation5 + $0xa30] sm:$0xff]
    %v422 = vld [vmem:[#allocation5 + $0xa38] sm:$0xff]
    %v423 = vld [vmem:[#allocation5 + $0xa40] sm:$0xff]
    %v424 = vld [vmem:[#allocation5 + $0xa48] sm:$0xff]
    %v425 = vld [vmem:[#allocation5 + $0xa50] sm:$0xff]
    %v426 = vld [vmem:[#allocation5 + $0xa58] sm:$0xff]
    %v427 = vld [vmem:[#allocation5 + $0xa60] sm:$0xff]
    %v428 = vld [vmem:[#allocation5 + $0xa68] sm:$0xff]
    %v429 = vld [vmem:[#allocation5 + $0xa70] sm:$0xff]
    %v430 = vld [vmem:[#allocation5 + $0xa78] sm:$0xff]
    %v431 = vld [vmem:[#allocation5 + $0xa80] sm:$0xff]
    %v432 = vld [vmem:[#allocation5 + $0xa88] sm:$0xff]
    %v433 = vld [vmem:[#allocation5 + $0xa90] sm:$0xff]
    %v434 = vld [vmem:[#allocation5 + $0xa98] sm:$0xff]
    %v435 = vld [vmem:[#allocation5 + $0xaa0] sm:$0xff]
    %v436 = vld [vmem:[#allocation5 + $0xaa8] sm:$0xff]
    %v437 = vld [vmem:[#allocation5 + $0xab0] sm:$0xff]
    %v438 = vld [vmem:[#allocation5 + $0xab8] sm:$0xff]
    %v439 = vld [vmem:[#allocation5 + $0xac0] sm:$0xff]
    %v440 = vld [vmem:[#allocation5 + $0xac8] sm:$0xff]
    %v441 = vld [vmem:[#allocation5 + $0xad0] sm:$0xff]
    %v442 = vld [vmem:[#allocation5 + $0xad8] sm:$0xff]
    %v443 = vld [vmem:[#allocation5 + $0xae0] sm:$0xff]
    %v444 = vld [vmem:[#allocation5 + $0xae8] sm:$0xff]
    %v445 = vld [vmem:[#allocation5 + $0xaf0] sm:$0xff]
    %v446 = vld [vmem:[#allocation5 + $0xaf8] sm:$0xff]
    %v447 = vld [vmem:[#allocation5 + $0xb00] sm:$0xff]
    %v448 = vld [vmem:[#allocation5 + $0xb08] sm:$0xff]
    %v449 = vld [vmem:[#allocation5 + $0xb10] sm:$0xff]
    %v450 = vld [vmem:[#allocation5 + $0xb18] sm:$0xff]
    %v451 = vld [vmem:[#allocation5 + $0xb20] sm:$0xff]
    %v452 = vld [vmem:[#allocation5 + $0xb28] sm:$0xff]
    %v453 = vld [vmem:[#allocation5 + $0xb30] sm:$0xff]
    %v454 = vld [vmem:[#allocation5 + $0xb38] sm:$0xff]
    %v455 = vld [vmem:[#allocation5 + $0xb40] sm:$0xff]
    %v456 = vld [vmem:[#allocation5 + $0xb48] sm:$0xff]
    %v457 = vld [vmem:[#allocation5 + $0xb50] sm:$0xff]
    %v458 = vld [vmem:[#allocation5 + $0xb58] sm:$0xff]
    %v459 = vld [vmem:[#allocation5 + $0xb60] sm:$0xff]
    %v460 = vld [vmem:[#allocation5 + $0xb68] sm:$0xff]
    %v461 = vld [vmem:[#allocation5 + $0xb70] sm:$0xff]
    %v462 = vld [vmem:[#allocation5 + $0xb78] sm:$0xff]
    %v463 = vld [vmem:[#allocation5 + $0xb80] sm:$0xff]
    %v464 = vld [vmem:[#allocation5 + $0xb88] sm:$0xff]
    %v465 = vld [vmem:[#allocation5 + $0xb90] sm:$0xff]
    %v466 = vld [vmem:[#allocation5 + $0xb98] sm:$0xff]
    %v467 = vld [vmem:[#allocation5 + $0xba0] sm:$0xff]
    %v468 = vld [vmem:[#allocation5 + $0xba8] sm:$0xff]
    %v469 = vld [vmem:[#allocation5 + $0xbb0] sm:$0xff]
    %v470 = vld [vmem:[#allocation5 + $0xbb8] sm:$0xff]
    %v471 = vld [vmem:[#allocation5 + $0xbc0] sm:$0xff]
    %v472 = vld [vmem:[#allocation5 + $0xbc8] sm:$0xff]
    %v473 = vld [vmem:[#allocation5 + $0xbd0] sm:$0xff]
    %v474 = vld [vmem:[#allocation5 + $0xbd8] sm:$0xff]
    %v475 = vld [vmem:[#allocation5 + $0xbe0] sm:$0xff]
    %v476 = vld [vmem:[#allocation5 + $0xbe8] sm:$0xff]
    %v477 = vld [vmem:[#allocation5 + $0xbf0] sm:$0xff]
    %v478 = vld [vmem:[#allocation5 + $0xbf8] sm:$0xff]
    %v479 = vld [vmem:[#allocation5 + $0xc00] sm:$0xff]
    %v480 = vld [vmem:[#allocation5 + $0xc08] sm:$0xff]
    %v481 = vld [vmem:[#allocation5 + $0xc10] sm:$0xff]
    %v482 = vld [vmem:[#allocation5 + $0xc18] sm:$0xff]
    %v483 = vld [vmem:[#allocation5 + $0xc20] sm:$0xff]
    %v484 = vld [vmem:[#allocation5 + $0xc28] sm:$0xff]
    %v485 = vld [vmem:[#allocation5 + $0xc30] sm:$0xff]
    %v486 = vld [vmem:[#allocation5 + $0xc38] sm:$0xff]
    %v487 = vld [vmem:[#allocation5 + $0xc40] sm:$0xff]
    %v488 = vld [vmem:[#allocation5 + $0xc48] sm:$0xff]
    %v489 = vld [vmem:[#allocation5 + $0xc50] sm:$0xff]
    %v490 = vld [vmem:[#allocation5 + $0xc58] sm:$0xff]
    %v491 = vld [vmem:[#allocation5 + $0xc60] sm:$0xff]
    %v492 = vld [vmem:[#allocation5 + $0xc68] sm:$0xff]
    %v493 = vld [vmem:[#allocation5 + $0xc70] sm:$0xff]
    %v494 = vld [vmem:[#allocation5 + $0xc78] sm:$0xff]
    %v495 = vld [vmem:[#allocation5 + $0xc80] sm:$0xff]
    %v496 = vld [vmem:[#allocation5 + $0xc88] sm:$0xff]
    %v497 = vld [vmem:[#allocation5 + $0xc90] sm:$0xff]
    %v498 = vld [vmem:[#allocation5 + $0xc98] sm:$0xff]
    %v499 = vld [vmem:[#allocation5 + $0xca0] sm:$0xff]
    %v500 = vld [vmem:[#allocation5 + $0xca8] sm:$0xff]
    %v501 = vld [vmem:[#allocation5 + $0xcb0] sm:$0xff]
    %v502 = vld [vmem:[#allocation5 + $0xcb8] sm:$0xff]
    %v503 = vld [vmem:[#allocation5 + $0xcc0] sm:$0xff]
    %v504 = vld [vmem:[#allocation5 + $0xcc8] sm:$0xff]
    %v505 = vld [vmem:[#allocation5 + $0xcd0] sm:$0xff]
    %v506 = vld [vmem:[#allocation5 + $0xcd8] sm:$0xff]
    %v507 = vld [vmem:[#allocation5 + $0xce0] sm:$0xff]
    %v508 = vld [vmem:[#allocation5 + $0xce8] sm:$0xff]
    %v509 = vld [vmem:[#allocation5 + $0xcf0] sm:$0xff]
    %v510 = vld [vmem:[#allocation5 + $0xcf8] sm:$0xff]
    %v511 = vld [vmem:[#allocation5 + $0xd00] sm:$0xff]
    %v512 = vld [vmem:[#allocation5 + $0xd08] sm:$0xff]
    %v513 = vld [vmem:[#allocation5 + $0xd10] sm:$0xff]
    %v514 = vld [vmem:[#allocation5 + $0xd18] sm:$0xff]
    %v515 = vld [vmem:[#allocation5 + $0xd20] sm:$0xff]
    %v516 = vld [vmem:[#allocation5 + $0xd28] sm:$0xff]
    %v517 = vld [vmem:[#allocation5 + $0xd30] sm:$0xff]
    %v518 = vld [vmem:[#allocation5 + $0xd38] sm:$0xff]
    %v519 = vld [vmem:[#allocation5 + $0xd40] sm:$0xff]
    %v520 = vld [vmem:[#allocation5 + $0xd48] sm:$0xff]
    %v521 = vld [vmem:[#allocation5 + $0xd50] sm:$0xff]
    %v522 = vld [vmem:[#allocation5 + $0xd58] sm:$0xff]
    %v523 = vld [vmem:[#allocation5 + $0xd60] sm:$0xff]
    %v524 = vld [vmem:[#allocation5 + $0xd68] sm:$0xff]
    %v525 = vld [vmem:[#allocation5 + $0xd70] sm:$0xff]
    %v526 = vld [vmem:[#allocation5 + $0xd78] sm:$0xff]
    %v527 = vld [vmem:[#allocation5 + $0xd80] sm:$0xff]
    %v528 = vld [vmem:[#allocation5 + $0xd88] sm:$0xff]
    %v529 = vld [vmem:[#allocation5 + $0xd90] sm:$0xff]
    %v530 = vld [vmem:[#allocation5 + $0xd98] sm:$0xff]
    %v531 = vld [vmem:[#allocation5 + $0xda0] sm:$0xff]
    %v532 = vld [vmem:[#allocation5 + $0xda8] sm:$0xff]
    %v533 = vld [vmem:[#allocation5 + $0xdb0] sm:$0xff]
    %v534 = vld [vmem:[#allocation5 + $0xdb8] sm:$0xff]
    %v535 = vld [vmem:[#allocation5 + $0xdc0] sm:$0xff]
    %v536 = vld [vmem:[#allocation5 + $0xdc8] sm:$0xff]
    %v537 = vld [vmem:[#allocation5 + $0xdd0] sm:$0xff]
    %v538 = vld [vmem:[#allocation5 + $0xdd8] sm:$0xff]
    %v539 = vld [vmem:[#allocation5 + $0xde0] sm:$0xff]
    %v540 = vld [vmem:[#allocation5 + $0xde8] sm:$0xff]
    %v541 = vld [vmem:[#allocation5 + $0xdf0] sm:$0xff]
    %v542 = vld [vmem:[#allocation5 + $0xdf8] sm:$0xff]
    %v543 = vld [vmem:[#allocation5 + $0xe00] sm:$0xff]
    %v544 = vld [vmem:[#allocation5 + $0xe08] sm:$0xff]
    %v545 = vld [vmem:[#allocation5 + $0xe10] sm:$0xff]
    %v546 = vld [vmem:[#allocation5 + $0xe18] sm:$0xff]
    %v547 = vld [vmem:[#allocation5 + $0xe20] sm:$0xff]
    %v548 = vld [vmem:[#allocation5 + $0xe28] sm:$0xff]
    %v549 = vld [vmem:[#allocation5 + $0xe30] sm:$0xff]
    %v550 = vld [vmem:[#allocation5 + $0xe38] sm:$0xff]
    %v551 = vld [vmem:[#allocation5 + $0xe40] sm:$0xff]
    %v552 = vld [vmem:[#allocation5 + $0xe48] sm:$0xff]
    %v553 = vld [vmem:[#allocation5 + $0xe50] sm:$0xff]
    %v554 = vld [vmem:[#allocation5 + $0xe58] sm:$0xff]
    %v555 = vld [vmem:[#allocation5 + $0xe60] sm:$0xff]
    %v556 = vld [vmem:[#allocation5 + $0xe68] sm:$0xff]
    %v557 = vld [vmem:[#allocation5 + $0xe70] sm:$0xff]
    %v558 = vld [vmem:[#allocation5 + $0xe78] sm:$0xff]
    %v559 = vld [vmem:[#allocation5 + $0xe80] sm:$0xff]
    %v560 = vld [vmem:[#allocation5 + $0xe88] sm:$0xff]
    %v561 = vld [vmem:[#allocation5 + $0xe90] sm:$0xff]
    %v562 = vld [vmem:[#allocation5 + $0xe98] sm:$0xff]
    %v563 = vld [vmem:[#allocation5 + $0xea0] sm:$0xff]
    %v564 = vld [vmem:[#allocation5 + $0xea8] sm:$0xff]
    %v565 = vld [vmem:[#allocation5 + $0xeb0] sm:$0xff]
    %v566 = vld [vmem:[#allocation5 + $0xeb8] sm:$0xff]
    %v567 = vld [vmem:[#allocation5 + $0xec0] sm:$0xff]
    %v568 = vld [vmem:[#allocation5 + $0xec8] sm:$0xff]
    %v569 = vld [vmem:[#allocation5 + $0xed0] sm:$0xff]
    %v570 = vld [vmem:[#allocation5 + $0xed8] sm:$0xff]
    %v571 = vld [vmem:[#allocation5 + $0xee0] sm:$0xff]
    %v572 = vld [vmem:[#allocation5 + $0xee8] sm:$0xff]
    %v573 = vld [vmem:[#allocation5 + $0xef0] sm:$0xff]
    %v574 = vld [vmem:[#allocation5 + $0xef8] sm:$0xff]
    %v575 = vld [vmem:[#allocation5 + $0xf00] sm:$0xff]
    %v576 = vld [vmem:[#allocation5 + $0xf08] sm:$0xff]
    %v577 = vld [vmem:[#allocation5 + $0xf10] sm:$0xff]
    %v578 = vld [vmem:[#allocation5 + $0xf18] sm:$0xff]
    %v579 = vld [vmem:[#allocation5 + $0xf20] sm:$0xff]
    %v580 = vld [vmem:[#allocation5 + $0xf28] sm:$0xff]
    %v581 = vld [vmem:[#allocation5 + $0xf30] sm:$0xff]
    %v582 = vld [vmem:[#allocation5 + $0xf38] sm:$0xff]
    %v583 = vld [vmem:[#allocation5 + $0xf40] sm:$0xff]
    %v584 = vld [vmem:[#allocation5 + $0xf48] sm:$0xff]
    %v585 = vld [vmem:[#allocation5 + $0xf50] sm:$0xff]
    %v586 = vld [vmem:[#allocation5 + $0xf58] sm:$0xff]
    %v587 = vld [vmem:[#allocation5 + $0xf60] sm:$0xff]
    %v588 = vld [vmem:[#allocation5 + $0xf68] sm:$0xff]
    %v589 = vld [vmem:[#allocation5 + $0xf70] sm:$0xff]
    %v590 = vld [vmem:[#allocation5 + $0xf78] sm:$0xff]
    %v591 = vld [vmem:[#allocation5 + $0xf80] sm:$0xff]
    %v592 = vld [vmem:[#allocation5 + $0xf88] sm:$0xff]
    %v593 = vld [vmem:[#allocation5 + $0xf90] sm:$0xff]
    %v594 = vld [vmem:[#allocation5 + $0xf98] sm:$0xff]
    %v595 = vld [vmem:[#allocation5 + $0xfa0] sm:$0xff]
    %v596 = vld [vmem:[#allocation5 + $0xfa8] sm:$0xff]
    %v597 = vld [vmem:[#allocation5 + $0xfb0] sm:$0xff]
    %v598 = vld [vmem:[#allocation5 + $0xfb8] sm:$0xff]
    %v599 = vld [vmem:[#allocation5 + $0xfc0] sm:$0xff]
    %v600 = vld [vmem:[#allocation5 + $0xfc8] sm:$0xff]
    %v601 = vld [vmem:[#allocation5 + $0xfd0] sm:$0xff]
    %v602 = vld [vmem:[#allocation5 + $0xfd8] sm:$0xff]
    %v603 = vld [vmem:[#allocation5 + $0xfe0] sm:$0xff]
    %v604 = vld [vmem:[#allocation5 + $0xfe8] sm:$0xff]
    %v605 = vld [vmem:[#allocation5 + $0xff0] sm:$0xff]
    %v606 = vld [vmem:[#allocation5 + $0xff8] sm:$0xff]
    %v607 = vld [vmem:[#allocation5 + $0x1000] sm:$0xff]
    %v608 = vld [vmem:[#allocation5 + $0x1008] sm:$0xff]
    %v609 = vld [vmem:[#allocation5 + $0x1010] sm:$0xff]
    %v610 = vld [vmem:[#allocation5 + $0x1018] sm:$0xff]
    %v611 = vld [vmem:[#allocation5 + $0x1020] sm:$0xff]
    %v612 = vld [vmem:[#allocation5 + $0x1028] sm:$0xff]
    %v613 = vld [vmem:[#allocation5 + $0x1030] sm:$0xff]
    %v614 = vld [vmem:[#allocation5 + $0x1038] sm:$0xff]
    %v615 = vld [vmem:[#allocation5 + $0x1040] sm:$0xff]
    %v616 = vld [vmem:[#allocation5 + $0x1048] sm:$0xff]
    %v617 = vld [vmem:[#allocation5 + $0x1050] sm:$0xff]
    %v618 = vld [vmem:[#allocation5 + $0x1058] sm:$0xff]
    %v619 = vld [vmem:[#allocation5 + $0x1060] sm:$0xff]
    %v620 = vld [vmem:[#allocation5 + $0x1068] sm:$0xff]
    %v621 = vld [vmem:[#allocation5 + $0x1070] sm:$0xff]
    %v622 = vld [vmem:[#allocation5 + $0x1078] sm:$0xff]
    %v623 = vld [vmem:[#allocation5 + $0x1080] sm:$0xff]
    %v624 = vld [vmem:[#allocation5 + $0x1088] sm:$0xff]
    %v625 = vld [vmem:[#allocation5 + $0x1090] sm:$0xff]
    %v626 = vld [vmem:[#allocation5 + $0x1098] sm:$0xff]
    %v627 = vld [vmem:[#allocation5 + $0x10a0] sm:$0xff]
    %v628 = vld [vmem:[#allocation5 + $0x10a8] sm:$0xff]
    %v629 = vld [vmem:[#allocation5 + $0x10b0] sm:$0xff]
    %v630 = vld [vmem:[#allocation5 + $0x10b8] sm:$0xff]
    %v631 = vld [vmem:[#allocation5 + $0x10c0] sm:$0xff]
    %v632 = vld [vmem:[#allocation5 + $0x10c8] sm:$0xff]
    %v633 = vld [vmem:[#allocation5 + $0x10d0] sm:$0xff]
    %v634 = vld [vmem:[#allocation5 + $0x10d8] sm:$0xff]
    %v635 = vld [vmem:[#allocation5 + $0x10e0] sm:$0xff]
    %v636 = vld [vmem:[#allocation5 + $0x10e8] sm:$0xff]
    %v637 = vld [vmem:[#allocation5 + $0x10f0] sm:$0xff]
    %v638 = vld [vmem:[#allocation5 + $0x10f8] sm:$0xff]
    %v639 = vld [vmem:[#allocation5 + $0x1100] sm:$0xff]
    %v640 = vld [vmem:[#allocation5 + $0x1108] sm:$0xff]
    %v641 = vld [vmem:[#allocation5 + $0x1110] sm:$0xff]
    %v642 = vld [vmem:[#allocation5 + $0x1118] sm:$0xff]
    %v643 = vld [vmem:[#allocation5 + $0x1120] sm:$0xff]
    %v644 = vld [vmem:[#allocation5 + $0x1128] sm:$0xff]
    %v645 = vld [vmem:[#allocation5 + $0x1130] sm:$0xff]
    %v646 = vld [vmem:[#allocation5 + $0x1138] sm:$0xff]
    %v647 = vld [vmem:[#allocation5 + $0x1140] sm:$0xff]
    %v648 = vld [vmem:[#allocation5 + $0x1148] sm:$0xff]
    %v649 = vld [vmem:[#allocation5 + $0x1150] sm:$0xff]
    %v650 = vld [vmem:[#allocation5 + $0x1158] sm:$0xff]
    %v651 = vld [vmem:[#allocation5 + $0x1160] sm:$0xff]
    %v652 = vld [vmem:[#allocation5 + $0x1168] sm:$0xff]
    %v653 = vld [vmem:[#allocation5 + $0x1170] sm:$0xff]
    %v654 = vld [vmem:[#allocation5 + $0x1178] sm:$0xff]
    %v655 = vld [vmem:[#allocation5 + $0x1180] sm:$0xff]
    %v656 = vld [vmem:[#allocation5 + $0x1188] sm:$0xff]
    %v657 = vld [vmem:[#allocation5 + $0x1190] sm:$0xff]
    %v658 = vld [vmem:[#allocation5 + $0x1198] sm:$0xff]
    %v659 = vld [vmem:[#allocation5 + $0x11a0] sm:$0xff]
    %v660 = vld [vmem:[#allocation5 + $0x11a8] sm:$0xff]
    %v661 = vld [vmem:[#allocation5 + $0x11b0] sm:$0xff]
    %v662 = vld [vmem:[#allocation5 + $0x11b8] sm:$0xff]
    %v663 = vld [vmem:[#allocation5 + $0x11c0] sm:$0xff]
    %v664 = vld [vmem:[#allocation5 + $0x11c8] sm:$0xff]
    %v665 = vld [vmem:[#allocation5 + $0x11d0] sm:$0xff]
    %v666 = vld [vmem:[#allocation5 + $0x11d8] sm:$0xff]
    %v667 = vld [vmem:[#allocation5 + $0x11e0] sm:$0xff]
    %v668 = vld [vmem:[#allocation5 + $0x11e8] sm:$0xff]
    %v669 = vld [vmem:[#allocation5 + $0x11f0] sm:$0xff]
    %v670 = vld [vmem:[#allocation5 + $0x11f8] sm:$0xff]
    %v671 = vld [vmem:[#allocation5 + $0x1200] sm:$0xff]
    %v672 = vld [vmem:[#allocation5 + $0x1208] sm:$0xff]
    %v673 = vld [vmem:[#allocation5 + $0x1210] sm:$0xff]
    %v674 = vld [vmem:[#allocation5 + $0x1218] sm:$0xff]
    %v675 = vld [vmem:[#allocation5 + $0x1220] sm:$0xff]
    %v676 = vld [vmem:[#allocation5 + $0x1228] sm:$0xff]
    %v677 = vld [vmem:[#allocation5 + $0x1230] sm:$0xff]
    %v678 = vld [vmem:[#allocation5 + $0x1238] sm:$0xff]
    %v679 = vld [vmem:[#allocation5 + $0x1240] sm:$0xff]
    %v680 = vld [vmem:[#allocation5 + $0x1248] sm:$0xff]
    %v681 = vld [vmem:[#allocation5 + $0x1250] sm:$0xff]
    %v682 = vld [vmem:[#allocation5 + $0x1258] sm:$0xff]
    %v683 = vld [vmem:[#allocation5 + $0x1260] sm:$0xff]
    %v684 = vld [vmem:[#allocation5 + $0x1268] sm:$0xff]
    %v685 = vld [vmem:[#allocation5 + $0x1270] sm:$0xff]
    %v686 = vld [vmem:[#allocation5 + $0x1278] sm:$0xff]
    %v687 = vld [vmem:[#allocation5 + $0x1280] sm:$0xff]
    %v688 = vld [vmem:[#allocation5 + $0x1288] sm:$0xff]
    %v689 = vld [vmem:[#allocation5 + $0x1290] sm:$0xff]
    %v690 = vld [vmem:[#allocation5 + $0x1298] sm:$0xff]
    %v691 = vld [vmem:[#allocation5 + $0x12a0] sm:$0xff]
    %v692 = vld [vmem:[#allocation5 + $0x12a8] sm:$0xff]
    %v693 = vld [vmem:[#allocation5 + $0x12b0] sm:$0xff]
    %v694 = vld [vmem:[#allocation5 + $0x12b8] sm:$0xff]
    %v695 = vld [vmem:[#allocation5 + $0x12c0] sm:$0xff]
    %v696 = vld [vmem:[#allocation5 + $0x12c8] sm:$0xff]
    %v697 = vld [vmem:[#allocation5 + $0x12d0] sm:$0xff]
    %v698 = vld [vmem:[#allocation5 + $0x12d8] sm:$0xff]
    %v699 = vld [vmem:[#allocation5 + $0x12e0] sm:$0xff]
    %v700 = vld [vmem:[#allocation5 + $0x12e8] sm:$0xff]
    %v701 = vld [vmem:[#allocation5 + $0x12f0] sm:$0xff]
    %v702 = vld [vmem:[#allocation5 + $0x12f8] sm:$0xff]
    %v703 = vld [vmem:[#allocation5 + $0x1300] sm:$0xff]
    %v704 = vld [vmem:[#allocation5 + $0x1308] sm:$0xff]
    %v705 = vld [vmem:[#allocation5 + $0x1310] sm:$0xff]
    %v706 = vld [vmem:[#allocation5 + $0x1318] sm:$0xff]
    %v707 = vld [vmem:[#allocation5 + $0x1320] sm:$0xff]
    %v708 = vld [vmem:[#allocation5 + $0x1328] sm:$0xff]
    %v709 = vld [vmem:[#allocation5 + $0x1330] sm:$0xff]
    %v710 = vld [vmem:[#allocation5 + $0x1338] sm:$0xff]
    %v711 = vld [vmem:[#allocation5 + $0x1340] sm:$0xff]
    %v712 = vld [vmem:[#allocation5 + $0x1348] sm:$0xff]
    %v713 = vld [vmem:[#allocation5 + $0x1350] sm:$0xff]
    %v714 = vld [vmem:[#allocation5 + $0x1358] sm:$0xff]
    %v715 = vld [vmem:[#allocation5 + $0x1360] sm:$0xff]
    %v716 = vld [vmem:[#allocation5 + $0x1368] sm:$0xff]
    %v717 = vld [vmem:[#allocation5 + $0x1370] sm:$0xff]
    %v718 = vld [vmem:[#allocation5 + $0x1378] sm:$0xff]
    %v719 = vld [vmem:[#allocation5 + $0x1380] sm:$0xff]
    %v720 = vld [vmem:[#allocation5 + $0x1388] sm:$0xff]
    %v721 = vld [vmem:[#allocation5 + $0x1390] sm:$0xff]
    %v722 = vld [vmem:[#allocation5 + $0x1398] sm:$0xff]
    %v723 = vld [vmem:[#allocation5 + $0x13a0] sm:$0xff]
    %v724 = vld [vmem:[#allocation5 + $0x13a8] sm:$0xff]
    %v725 = vld [vmem:[#allocation5 + $0x13b0] sm:$0xff]
    %v726 = vld [vmem:[#allocation5 + $0x13b8] sm:$0xff]
    %v727 = vld [vmem:[#allocation5 + $0x13c0] sm:$0xff]
    %v728 = vld [vmem:[#allocation5 + $0x13c8] sm:$0xff]
    %v729 = vld [vmem:[#allocation5 + $0x13d0] sm:$0xff]
    %v730 = vld [vmem:[#allocation5 + $0x13d8] sm:$0xff]
    %v731 = vld [vmem:[#allocation5 + $0x13e0] sm:$0xff]
    %v732 = vld [vmem:[#allocation5 + $0x13e8] sm:$0xff]
    %v733 = vld [vmem:[#allocation5 + $0x13f0] sm:$0xff]
    %v734 = vld [vmem:[#allocation5 + $0x13f8] sm:$0xff]
    %v735 = vld [vmem:[#allocation5 + $0x1400] sm:$0xff]
    %v736 = vld [vmem:[#allocation5 + $0x1408] sm:$0xff]
    %v737 = vld [vmem:[#allocation5 + $0x1410] sm:$0xff]
    %v738 = vld [vmem:[#allocation5 + $0x1418] sm:$0xff]
    %v739 = vld [vmem:[#allocation5 + $0x1420] sm:$0xff]
    %v740 = vld [vmem:[#allocation5 + $0x1428] sm:$0xff]
    %v741 = vld [vmem:[#allocation5 + $0x1430] sm:$0xff]
    %v742 = vld [vmem:[#allocation5 + $0x1438] sm:$0xff]
    %v743 = vld [vmem:[#allocation5 + $0x1440] sm:$0xff]
    %v744 = vld [vmem:[#allocation5 + $0x1448] sm:$0xff]
    %v745 = vld [vmem:[#allocation5 + $0x1450] sm:$0xff]
    %v746 = vld [vmem:[#allocation5 + $0x1458] sm:$0xff]
    %v747 = vld [vmem:[#allocation5 + $0x1460] sm:$0xff]
    %v748 = vld [vmem:[#allocation5 + $0x1468] sm:$0xff]
    %v749 = vld [vmem:[#allocation5 + $0x1470] sm:$0xff]
    %v750 = vld [vmem:[#allocation5 + $0x1478] sm:$0xff]
    %v751 = vld [vmem:[#allocation5 + $0x1480] sm:$0xff]
    %v752 = vld [vmem:[#allocation5 + $0x1488] sm:$0xff]
    %v753 = vld [vmem:[#allocation5 + $0x1490] sm:$0xff]
    %v754 = vld [vmem:[#allocation5 + $0x1498] sm:$0xff]
    %v755 = vld [vmem:[#allocation5 + $0x14a0] sm:$0xff]
    %v756 = vld [vmem:[#allocation5 + $0x14a8] sm:$0xff]
    %v757 = vld [vmem:[#allocation5 + $0x14b0] sm:$0xff]
    %v758 = vld [vmem:[#allocation5 + $0x14b8] sm:$0xff]
    %v759 = vld [vmem:[#allocation5 + $0x14c0] sm:$0xff]
    %v760 = vld [vmem:[#allocation5 + $0x14c8] sm:$0xff]
    %v761 = vld [vmem:[#allocation5 + $0x14d0] sm:$0xff]
    %v762 = vld [vmem:[#allocation5 + $0x14d8] sm:$0xff]
    %v763 = vld [vmem:[#allocation5 + $0x14e0] sm:$0xff]
    %v764 = vld [vmem:[#allocation5 + $0x14e8] sm:$0xff]
    %v765 = vld [vmem:[#allocation5 + $0x14f0] sm:$0xff]
    %v766 = vld [vmem:[#allocation5 + $0x14f8] sm:$0xff]
    %v767 = vld [vmem:[#allocation5 + $0x1500] sm:$0xff]
    %v768 = vld [vmem:[#allocation5 + $0x1508] sm:$0xff]
    %v769 = vld [vmem:[#allocation5 + $0x1510] sm:$0xff]
    %v770 = vld [vmem:[#allocation5 + $0x1518] sm:$0xff]
    %v771 = vld [vmem:[#allocation5 + $0x1520] sm:$0xff]
    %v772 = vld [vmem:[#allocation5 + $0x1528] sm:$0xff]
    %v773 = vld [vmem:[#allocation5 + $0x1530] sm:$0xff]
    %v774 = vld [vmem:[#allocation5 + $0x1538] sm:$0xff]
    %v775 = vld [vmem:[#allocation5 + $0x1540] sm:$0xff]
    %v776 = vld [vmem:[#allocation5 + $0x1548] sm:$0xff]
    %v777 = vld [vmem:[#allocation5 + $0x1550] sm:$0xff]
    %v778 = vld [vmem:[#allocation5 + $0x1558] sm:$0xff]
    %v779 = vld [vmem:[#allocation5 + $0x1560] sm:$0xff]
    %v780 = vld [vmem:[#allocation5 + $0x1568] sm:$0xff]
    %v781 = vld [vmem:[#allocation5 + $0x1570] sm:$0xff]
    %v782 = vld [vmem:[#allocation5 + $0x1578] sm:$0xff]
    %v783 = vld [vmem:[#allocation5 + $0x1580] sm:$0xff]
    %v784 = vld [vmem:[#allocation5 + $0x1588] sm:$0xff]
    %v785 = vld [vmem:[#allocation5 + $0x1590] sm:$0xff]
    %v786 = vld [vmem:[#allocation5 + $0x1598] sm:$0xff]
    %v787 = vld [vmem:[#allocation5 + $0x15a0] sm:$0xff]
    %v788 = vld [vmem:[#allocation5 + $0x15a8] sm:$0xff]
    %v789 = vld [vmem:[#allocation5 + $0x15b0] sm:$0xff]
    %v790 = vld [vmem:[#allocation5 + $0x15b8] sm:$0xff]
    %v791 = vld [vmem:[#allocation5 + $0x15c0] sm:$0xff]
    %v792 = vld [vmem:[#allocation5 + $0x15c8] sm:$0xff]
    %v793 = vld [vmem:[#allocation5 + $0x15d0] sm:$0xff]
    %v794 = vld [vmem:[#allocation5 + $0x15d8] sm:$0xff]
    %v795 = vld [vmem:[#allocation5 + $0x15e0] sm:$0xff]
    %v796 = vld [vmem:[#allocation5 + $0x15e8] sm:$0xff]
    %v797 = vld [vmem:[#allocation5 + $0x15f0] sm:$0xff]
    %v798 = vld [vmem:[#allocation5 + $0x15f8] sm:$0xff]
    %v799 = vld [vmem:[#allocation5 + $0x1600] sm:$0xff]
    %v800 = vld [vmem:[#allocation5 + $0x1608] sm:$0xff]
    %v801 = vld [vmem:[#allocation5 + $0x1610] sm:$0xff]
    %v802 = vld [vmem:[#allocation5 + $0x1618] sm:$0xff]
    %v803 = vld [vmem:[#allocation5 + $0x1620] sm:$0xff]
    %v804 = vld [vmem:[#allocation5 + $0x1628] sm:$0xff]
    %v805 = vld [vmem:[#allocation5 + $0x1630] sm:$0xff]
    %v806 = vld [vmem:[#allocation5 + $0x1638] sm:$0xff]
    %v807 = vld [vmem:[#allocation5 + $0x1640] sm:$0xff]
    %v808 = vld [vmem:[#allocation5 + $0x1648] sm:$0xff]
    %v809 = vld [vmem:[#allocation5 + $0x1650] sm:$0xff]
    %v810 = vld [vmem:[#allocation5 + $0x1658] sm:$0xff]
    %v811 = vld [vmem:[#allocation5 + $0x1660] sm:$0xff]
    %v812 = vld [vmem:[#allocation5 + $0x1668] sm:$0xff]
    %v813 = vld [vmem:[#allocation5 + $0x1670] sm:$0xff]
    %v814 = vld [vmem:[#allocation5 + $0x1678] sm:$0xff]
    %v815 = vld [vmem:[#allocation5 + $0x1680] sm:$0xff]
    %v816 = vld [vmem:[#allocation5 + $0x1688] sm:$0xff]
    %v817 = vld [vmem:[#allocation5 + $0x1690] sm:$0xff]
    %v818 = vld [vmem:[#allocation5 + $0x1698] sm:$0xff]
    %v819 = vld [vmem:[#allocation5 + $0x16a0] sm:$0xff]
    %v820 = vld [vmem:[#allocation5 + $0x16a8] sm:$0xff]
    %v821 = vld [vmem:[#allocation5 + $0x16b0] sm:$0xff]
    %v822 = vld [vmem:[#allocation5 + $0x16b8] sm:$0xff]
    %v823 = vld [vmem:[#allocation5 + $0x16c0] sm:$0xff]
    %v824 = vld [vmem:[#allocation5 + $0x16c8] sm:$0xff]
    %v825 = vld [vmem:[#allocation5 + $0x16d0] sm:$0xff]
    %v826 = vld [vmem:[#allocation5 + $0x16d8] sm:$0xff]
    %v827 = vld [vmem:[#allocation5 + $0x16e0] sm:$0xff]
    %v828 = vld [vmem:[#allocation5 + $0x16e8] sm:$0xff]
    %v829 = vld [vmem:[#allocation5 + $0x16f0] sm:$0xff]
    %v830 = vld [vmem:[#allocation5 + $0x16f8] sm:$0xff]
    %v831 = vld [vmem:[#allocation5 + $0x1700] sm:$0xff]
    %v832 = vld [vmem:[#allocation5 + $0x1708] sm:$0xff]
    %v833 = vld [vmem:[#allocation5 + $0x1710] sm:$0xff]
    %v834 = vld [vmem:[#allocation5 + $0x1718] sm:$0xff]
    %v835 = vld [vmem:[#allocation5 + $0x1720] sm:$0xff]
    %v836 = vld [vmem:[#allocation5 + $0x1728] sm:$0xff]
    %v837 = vld [vmem:[#allocation5 + $0x1730] sm:$0xff]
    %v838 = vld [vmem:[#allocation5 + $0x1738] sm:$0xff]
    %v839 = vld [vmem:[#allocation5 + $0x1740] sm:$0xff]
    %v840 = vld [vmem:[#allocation5 + $0x1748] sm:$0xff]
    %v841 = vld [vmem:[#allocation5 + $0x1750] sm:$0xff]
    %v842 = vld [vmem:[#allocation5 + $0x1758] sm:$0xff]
    %v843 = vld [vmem:[#allocation5 + $0x1760] sm:$0xff]
    %v844 = vld [vmem:[#allocation5 + $0x1768] sm:$0xff]
    %v845 = vld [vmem:[#allocation5 + $0x1770] sm:$0xff]
    %v846 = vld [vmem:[#allocation5 + $0x1778] sm:$0xff]
    %v847 = vld [vmem:[#allocation5 + $0x1780] sm:$0xff]
    %v848 = vld [vmem:[#allocation5 + $0x1788] sm:$0xff]
    %v849 = vld [vmem:[#allocation5 + $0x1790] sm:$0xff]
    %v850 = vld [vmem:[#allocation5 + $0x1798] sm:$0xff]
    %v851 = vld [vmem:[#allocation5 + $0x17a0] sm:$0xff]
    %v852 = vld [vmem:[#allocation5 + $0x17a8] sm:$0xff]
    %v853 = vld [vmem:[#allocation5 + $0x17b0] sm:$0xff]
    %v854 = vld [vmem:[#allocation5 + $0x17b8] sm:$0xff]
    %v855 = vld [vmem:[#allocation5 + $0x17c0] sm:$0xff]
    %v856 = vld [vmem:[#allocation5 + $0x17c8] sm:$0xff]
    %v857 = vld [vmem:[#allocation5 + $0x17d0] sm:$0xff]
    %v858 = vld [vmem:[#allocation5 + $0x17d8] sm:$0xff]
    %v859 = vld [vmem:[#allocation5 + $0x17e0] sm:$0xff]
    %v860 = vld [vmem:[#allocation5 + $0x17e8] sm:$0xff]
    %v861 = vld [vmem:[#allocation5 + $0x17f0] sm:$0xff]
    %v862 = vld [vmem:[#allocation5 + $0x17f8] sm:$0xff]
    %v863 = vld [vmem:[#allocation5 + $0x1800] sm:$0xff]
    %v864 = vld [vmem:[#allocation5 + $0x1808] sm:$0xff]
    %v865 = vld [vmem:[#allocation5 + $0x1810] sm:$0xff]
    %v866 = vld [vmem:[#allocation5 + $0x1818] sm:$0xff]
    %v867 = vld [vmem:[#allocation5 + $0x1820] sm:$0xff]
    %v868 = vld [vmem:[#allocation5 + $0x1828] sm:$0xff]
    %v869 = vld [vmem:[#allocation5 + $0x1830] sm:$0xff]
    %v870 = vld [vmem:[#allocation5 + $0x1838] sm:$0xff]
    %v871 = vld [vmem:[#allocation5 + $0x1840] sm:$0xff]
    %v872 = vld [vmem:[#allocation5 + $0x1848] sm:$0xff]
    %v873 = vld [vmem:[#allocation5 + $0x1850] sm:$0xff]
    %v874 = vld [vmem:[#allocation5 + $0x1858] sm:$0xff]
    %v875 = vld [vmem:[#allocation5 + $0x1860] sm:$0xff]
    %v876 = vld [vmem:[#allocation5 + $0x1868] sm:$0xff]
    %v877 = vld [vmem:[#allocation5 + $0x1870] sm:$0xff]
    %v878 = vld [vmem:[#allocation5 + $0x1878] sm:$0xff]
    %v879 = vld [vmem:[#allocation5 + $0x1880] sm:$0xff]
    %v880 = vld [vmem:[#allocation5 + $0x1888] sm:$0xff]
    %v881 = vld [vmem:[#allocation5 + $0x1890] sm:$0xff]
    %v882 = vld [vmem:[#allocation5 + $0x1898] sm:$0xff]
    %v883 = vld [vmem:[#allocation5 + $0x18a0] sm:$0xff]
    %v884 = vld [vmem:[#allocation5 + $0x18a8] sm:$0xff]
    %v885 = vld [vmem:[#allocation5 + $0x18b0] sm:$0xff]
    %v886 = vld [vmem:[#allocation5 + $0x18b8] sm:$0xff]
    %v887 = vld [vmem:[#allocation5 + $0x18c0] sm:$0xff]
    %v888 = vld [vmem:[#allocation5 + $0x18c8] sm:$0xff]
    %v889 = vld [vmem:[#allocation5 + $0x18d0] sm:$0xff]
    %v890 = vld [vmem:[#allocation5 + $0x18d8] sm:$0xff]
    %v891 = vld [vmem:[#allocation5 + $0x18e0] sm:$0xff]
    %v892 = vld [vmem:[#allocation5 + $0x18e8] sm:$0xff]
    %v893 = vld [vmem:[#allocation5 + $0x18f0] sm:$0xff]
    %v894 = vld [vmem:[#allocation5 + $0x18f8] sm:$0xff]
    %v895 = vld [vmem:[#allocation5 + $0x1900] sm:$0xff]
    %v896 = vld [vmem:[#allocation5 + $0x1908] sm:$0xff]
    %v897 = vld [vmem:[#allocation5 + $0x1910] sm:$0xff]
    %v898 = vld [vmem:[#allocation5 + $0x1918] sm:$0xff]
    %v899 = vld [vmem:[#allocation5 + $0x1920] sm:$0xff]
    %v900 = vld [vmem:[#allocation5 + $0x1928] sm:$0xff]
    %v901 = vld [vmem:[#allocation5 + $0x1930] sm:$0xff]
    %v902 = vld [vmem:[#allocation5 + $0x1938] sm:$0xff]
    %v903 = vld [vmem:[#allocation5 + $0x1940] sm:$0xff]
    %v904 = vld [vmem:[#allocation5 + $0x1948] sm:$0xff]
    %v905 = vld [vmem:[#allocation5 + $0x1950] sm:$0xff]
    %v906 = vld [vmem:[#allocation5 + $0x1958] sm:$0xff]
    %v907 = vld [vmem:[#allocation5 + $0x1960] sm:$0xff]
    %v908 = vld [vmem:[#allocation5 + $0x1968] sm:$0xff]
    %v909 = vld [vmem:[#allocation5 + $0x1970] sm:$0xff]
    %v910 = vld [vmem:[#allocation5 + $0x1978] sm:$0xff]
    %v911 = vld [vmem:[#allocation5 + $0x1980] sm:$0xff]
    %v912 = vld [vmem:[#allocation5 + $0x1988] sm:$0xff]
    %v913 = vld [vmem:[#allocation5 + $0x1990] sm:$0xff]
    %v914 = vld [vmem:[#allocation5 + $0x1998] sm:$0xff]
    %v915 = vld [vmem:[#allocation5 + $0x19a0] sm:$0xff]
    %v916 = vld [vmem:[#allocation5 + $0x19a8] sm:$0xff]
    %v917 = vld [vmem:[#allocation5 + $0x19b0] sm:$0xff]
    %v918 = vld [vmem:[#allocation5 + $0x19b8] sm:$0xff]
    %v919 = vld [vmem:[#allocation5 + $0x19c0] sm:$0xff]
    %v920 = vld [vmem:[#allocation5 + $0x19c8] sm:$0xff]
    %v921 = vld [vmem:[#allocation5 + $0x19d0] sm:$0xff]
    %v922 = vld [vmem:[#allocation5 + $0x19d8] sm:$0xff]
    %v923 = vld [vmem:[#allocation5 + $0x19e0] sm:$0xff]
    %v924 = vld [vmem:[#allocation5 + $0x19e8] sm:$0xff]
    %v925 = vld [vmem:[#allocation5 + $0x19f0] sm:$0xff]
    %v926 = vld [vmem:[#allocation5 + $0x19f8] sm:$0xff]
    %v927 = vld [vmem:[#allocation5 + $0x1a00] sm:$0xff]
    %v928 = vld [vmem:[#allocation5 + $0x1a08] sm:$0xff]
    %v929 = vld [vmem:[#allocation5 + $0x1a10] sm:$0xff]
    %v930 = vld [vmem:[#allocation5 + $0x1a18] sm:$0xff]
    %v931 = vld [vmem:[#allocation5 + $0x1a20] sm:$0xff]
    %v932 = vld [vmem:[#allocation5 + $0x1a28] sm:$0xff]
    %v933 = vld [vmem:[#allocation5 + $0x1a30] sm:$0xff]
    %v934 = vld [vmem:[#allocation5 + $0x1a38] sm:$0xff]
    %v935 = vld [vmem:[#allocation5 + $0x1a40] sm:$0xff]
    %v936 = vld [vmem:[#allocation5 + $0x1a48] sm:$0xff]
    %v937 = vld [vmem:[#allocation5 + $0x1a50] sm:$0xff]
    %v938 = vld [vmem:[#allocation5 + $0x1a58] sm:$0xff]
    %v939 = vld [vmem:[#allocation5 + $0x1a60] sm:$0xff]
    %v940 = vld [vmem:[#allocation5 + $0x1a68] sm:$0xff]
    %v941 = vld [vmem:[#allocation5 + $0x1a70] sm:$0xff]
    %v942 = vld [vmem:[#allocation5 + $0x1a78] sm:$0xff]
    %v943 = vld [vmem:[#allocation5 + $0x1a80] sm:$0xff]
    %v944 = vld [vmem:[#allocation5 + $0x1a88] sm:$0xff]
    %v945 = vld [vmem:[#allocation5 + $0x1a90] sm:$0xff]
    %v946 = vld [vmem:[#allocation5 + $0x1a98] sm:$0xff]
    %v947 = vld [vmem:[#allocation5 + $0x1aa0] sm:$0xff]
    %v948 = vld [vmem:[#allocation5 + $0x1aa8] sm:$0xff]
    %v949 = vld [vmem:[#allocation5 + $0x1ab0] sm:$0xff]
    %v950 = vld [vmem:[#allocation5 + $0x1ab8] sm:$0xff]
    %v951 = vld [vmem:[#allocation5 + $0x1ac0] sm:$0xff]
    %v952 = vld [vmem:[#allocation5 + $0x1ac8] sm:$0xff]
    %v953 = vld [vmem:[#allocation5 + $0x1ad0] sm:$0xff]
    %v954 = vld [vmem:[#allocation5 + $0x1ad8] sm:$0xff]
    %v955 = vld [vmem:[#allocation5 + $0x1ae0] sm:$0xff]
    %v956 = vld [vmem:[#allocation5 + $0x1ae8] sm:$0xff]
    %v957 = vld [vmem:[#allocation5 + $0x1af0] sm:$0xff]
    %v958 = vld [vmem:[#allocation5 + $0x1af8] sm:$0xff]
    %v959 = vld [vmem:[#allocation5 + $0x1b00] sm:$0xff]
    %v960 = vld [vmem:[#allocation5 + $0x1b08] sm:$0xff]
    %v961 = vld [vmem:[#allocation5 + $0x1b10] sm:$0xff]
    %v962 = vld [vmem:[#allocation5 + $0x1b18] sm:$0xff]
    %v963 = vld [vmem:[#allocation5 + $0x1b20] sm:$0xff]
    %v964 = vld [vmem:[#allocation5 + $0x1b28] sm:$0xff]
    %v965 = vld [vmem:[#allocation5 + $0x1b30] sm:$0xff]
    %v966 = vld [vmem:[#allocation5 + $0x1b38] sm:$0xff]
    %v967 = vld [vmem:[#allocation5 + $0x1b40] sm:$0xff]
    %v968 = vld [vmem:[#allocation5 + $0x1b48] sm:$0xff]
    %v969 = vld [vmem:[#allocation5 + $0x1b50] sm:$0xff]
    %v970 = vld [vmem:[#allocation5 + $0x1b58] sm:$0xff]
    %v971 = vld [vmem:[#allocation5 + $0x1b60] sm:$0xff]
    %v972 = vld [vmem:[#allocation5 + $0x1b68] sm:$0xff]
    %v973 = vld [vmem:[#allocation5 + $0x1b70] sm:$0xff]
    %v974 = vld [vmem:[#allocation5 + $0x1b78] sm:$0xff]
    %v975 = vld [vmem:[#allocation5 + $0x1b80] sm:$0xff]
    %v976 = vld [vmem:[#allocation5 + $0x1b88] sm:$0xff]
    %v977 = vld [vmem:[#allocation5 + $0x1b90] sm:$0xff]
    %v978 = vld [vmem:[#allocation5 + $0x1b98] sm:$0xff]
    %v979 = vld [vmem:[#allocation5 + $0x1ba0] sm:$0xff]
    %v980 = vld [vmem:[#allocation5 + $0x1ba8] sm:$0xff]
    %v981 = vld [vmem:[#allocation5 + $0x1bb0] sm:$0xff]
    %v982 = vld [vmem:[#allocation5 + $0x1bb8] sm:$0xff]
    %v983 = vld [vmem:[#allocation5 + $0x1bc0] sm:$0xff]
    %v984 = vld [vmem:[#allocation5 + $0x1bc8] sm:$0xff]
    %v985 = vld [vmem:[#allocation5 + $0x1bd0] sm:$0xff]
    %v986 = vld [vmem:[#allocation5 + $0x1bd8] sm:$0xff]
    %v987 = vld [vmem:[#allocation5 + $0x1be0] sm:$0xff]
    %v988 = vld [vmem:[#allocation5 + $0x1be8] sm:$0xff]
    %v989 = vld [vmem:[#allocation5 + $0x1bf0] sm:$0xff]
    %v990 = vld [vmem:[#allocation5 + $0x1bf8] sm:$0xff]
    %v991 = vld [vmem:[#allocation5 + $0x1c00] sm:$0xff]
    %v992 = vld [vmem:[#allocation5 + $0x1c08] sm:$0xff]
    %v993 = vld [vmem:[#allocation5 + $0x1c10] sm:$0xff]
    %v994 = vld [vmem:[#allocation5 + $0x1c18] sm:$0xff]
    %v995 = vld [vmem:[#allocation5 + $0x1c20] sm:$0xff]
    %v996 = vld [vmem:[#allocation5 + $0x1c28] sm:$0xff]
    %v997 = vld [vmem:[#allocation5 + $0x1c30] sm:$0xff]
    %v998 = vld [vmem:[#allocation5 + $0x1c38] sm:$0xff]
    %v999 = vld [vmem:[#allocation5 + $0x1c40] sm:$0xff]
    %v1000 = vld [vmem:[#allocation5 + $0x1c48] sm:$0xff]
    %v1001 = vld [vmem:[#allocation5 + $0x1c50] sm:$0xff]
    %v1002 = vld [vmem:[#allocation5 + $0x1c58] sm:$0xff]
    %v1003 = vld [vmem:[#allocation5 + $0x1c60] sm:$0xff]
    %v1004 = vld [vmem:[#allocation5 + $0x1c68] sm:$0xff]
    %v1005 = vld [vmem:[#allocation5 + $0x1c70] sm:$0xff]
    %v1006 = vld [vmem:[#allocation5 + $0x1c78] sm:$0xff]
    %v1007 = vld [vmem:[#allocation5 + $0x1c80] sm:$0xff]
    %v1008 = vld [vmem:[#allocation5 + $0x1c88] sm:$0xff]
    %v1009 = vld [vmem:[#allocation5 + $0x1c90] sm:$0xff]
    %v1010 = vld [vmem:[#allocation5 + $0x1c98] sm:$0xff]
    %v1011 = vld [vmem:[#allocation5 + $0x1ca0] sm:$0xff]
    %v1012 = vld [vmem:[#allocation5 + $0x1ca8] sm:$0xff]
    %v1013 = vld [vmem:[#allocation5 + $0x1cb0] sm:$0xff]
    %v1014 = vld [vmem:[#allocation5 + $0x1cb8] sm:$0xff]
    %v1015 = vld [vmem:[#allocation5 + $0x1cc0] sm:$0xff]
    %v1016 = vld [vmem:[#allocation5 + $0x1cc8] sm:$0xff]
    %v1017 = vld [vmem:[#allocation5 + $0x1cd0] sm:$0xff]
    %v1018 = vld [vmem:[#allocation5 + $0x1cd8] sm:$0xff]
    %v1019 = vld [vmem:[#allocation5 + $0x1ce0] sm:$0xff]
    %v1020 = vld [vmem:[#allocation5 + $0x1ce8] sm:$0xff]
    %v1021 = vld [vmem:[#allocation5 + $0x1cf0] sm:$0xff]
    %v1022 = vld [vmem:[#allocation5 + $0x1cf8] sm:$0xff]
    %v1023 = vld [vmem:[#allocation5 + $0x1d00] sm:$0xff]
    %v1024 = vld [vmem:[#allocation5 + $0x1d08] sm:$0xff]
    %v1025 = vld [vmem:[#allocation5 + $0x1d10] sm:$0xff]
    %v1026 = vld [vmem:[#allocation5 + $0x1d18] sm:$0xff]
    %v1027 = vld [vmem:[#allocation5 + $0x1d20] sm:$0xff]
    %v1028 = vld [vmem:[#allocation5 + $0x1d28] sm:$0xff]
    %v1029 = vld [vmem:[#allocation5 + $0x1d30] sm:$0xff]
    %v1030 = vld [vmem:[#allocation5 + $0x1d38] sm:$0xff]
    %v1031 = vld [vmem:[#allocation5 + $0x1d40] sm:$0xff]
    %v1032 = vld [vmem:[#allocation5 + $0x1d48] sm:$0xff]
    %v1033 = vld [vmem:[#allocation5 + $0x1d50] sm:$0xff]
    %v1034 = vld [vmem:[#allocation5 + $0x1d58] sm:$0xff]
    %v1035 = vld [vmem:[#allocation5 + $0x1d60] sm:$0xff]
    %v1036 = vld [vmem:[#allocation5 + $0x1d68] sm:$0xff]
    %v1037 = vld [vmem:[#allocation5 + $0x1d70] sm:$0xff]
    %v1038 = vld [vmem:[#allocation5 + $0x1d78] sm:$0xff]
    %v1039 = vld [vmem:[#allocation5 + $0x1d80] sm:$0xff]
    %v1040 = vld [vmem:[#allocation5 + $0x1d88] sm:$0xff]
    %v1041 = vld [vmem:[#allocation5 + $0x1d90] sm:$0xff]
    %v1042 = vld [vmem:[#allocation5 + $0x1d98] sm:$0xff]
    %v1043 = vld [vmem:[#allocation5 + $0x1da0] sm:$0xff]
    %v1044 = vld [vmem:[#allocation5 + $0x1da8] sm:$0xff]
    %v1045 = vld [vmem:[#allocation5 + $0x1db0] sm:$0xff]
    %v1046 = vld [vmem:[#allocation5 + $0x1db8] sm:$0xff]
    %v1047 = vld [vmem:[#allocation5 + $0x1dc0] sm:$0xff]
    %v1048 = vld [vmem:[#allocation5 + $0x1dc8] sm:$0xff]
    %v1049 = vld [vmem:[#allocation5 + $0x1dd0] sm:$0xff]
    %v1050 = vld [vmem:[#allocation5 + $0x1dd8] sm:$0xff]
    %v1051 = vld [vmem:[#allocation5 + $0x1de0] sm:$0xff]
    %v1052 = vld [vmem:[#allocation5 + $0x1de8] sm:$0xff]
    %v1053 = vld [vmem:[#allocation5 + $0x1df0] sm:$0xff]
    %v1054 = vld [vmem:[#allocation5 + $0x1df8] sm:$0xff]
    %v1055 = vld [vmem:[#allocation5 + $0x1e00] sm:$0xff]
    %v1056 = vld [vmem:[#allocation5 + $0x1e08] sm:$0xff]
    %v1057 = vld [vmem:[#allocation5 + $0x1e10] sm:$0xff]
    %v1058 = vld [vmem:[#allocation5 + $0x1e18] sm:$0xff]
    %v1059 = vld [vmem:[#allocation5 + $0x1e20] sm:$0xff]
    %v1060 = vld [vmem:[#allocation5 + $0x1e28] sm:$0xff]
    %v1061 = vld [vmem:[#allocation5 + $0x1e30] sm:$0xff]
    %v1062 = vld [vmem:[#allocation5 + $0x1e38] sm:$0xff]
    %v1063 = vld [vmem:[#allocation5 + $0x1e40] sm:$0xff]
    %v1064 = vld [vmem:[#allocation5 + $0x1e48] sm:$0xff]
    %v1065 = vld [vmem:[#allocation5 + $0x1e50] sm:$0xff]
    %v1066 = vld [vmem:[#allocation5 + $0x1e58] sm:$0xff]
    %v1067 = vld [vmem:[#allocation5 + $0x1e60] sm:$0xff]
    %v1068 = vld [vmem:[#allocation5 + $0x1e68] sm:$0xff]
    %v1069 = vld [vmem:[#allocation5 + $0x1e70] sm:$0xff]
    %v1070 = vld [vmem:[#allocation5 + $0x1e78] sm:$0xff]
    %v1071 = vld [vmem:[#allocation5 + $0x1e80] sm:$0xff]
    %v1072 = vld [vmem:[#allocation5 + $0x1e88] sm:$0xff]
    %v1073 = vld [vmem:[#allocation5 + $0x1e90] sm:$0xff]
    %v1074 = vld [vmem:[#allocation5 + $0x1e98] sm:$0xff]
    %v1075 = vld [vmem:[#allocation5 + $0x1ea0] sm:$0xff]
    %v1076 = vld [vmem:[#allocation5 + $0x1ea8] sm:$0xff]
    %v1077 = vld [vmem:[#allocation5 + $0x1eb0] sm:$0xff]
    %v1078 = vld [vmem:[#allocation5 + $0x1eb8] sm:$0xff]
    %v1079 = vld [vmem:[#allocation5 + $0x1ec0] sm:$0xff]
    %v1080 = vld [vmem:[#allocation5 + $0x1ec8] sm:$0xff]
    %v1081 = vld [vmem:[#allocation5 + $0x1ed0] sm:$0xff]
    %v1082 = vld [vmem:[#allocation5 + $0x1ed8] sm:$0xff]
    %v1083 = vld [vmem:[#allocation5 + $0x1ee0] sm:$0xff]
    %v1084 = vld [vmem:[#allocation5 + $0x1ee8] sm:$0xff]
    %v1085 = vld [vmem:[#allocation5 + $0x1ef0] sm:$0xff]
    %v1086 = vld [vmem:[#allocation5 + $0x1ef8] sm:$0xff]
    %v1087 = vld [vmem:[#allocation5 + $0x1f00] sm:$0xff]
    %v1088 = vld [vmem:[#allocation5 + $0x1f08] sm:$0xff]
    %v1089 = vld [vmem:[#allocation5 + $0x1f10] sm:$0xff]
    %v1090 = vld [vmem:[#allocation5 + $0x1f18] sm:$0xff]
    %v1091 = vld [vmem:[#allocation5 + $0x1f20] sm:$0xff]
    %v1092 = vld [vmem:[#allocation5 + $0x1f28] sm:$0xff]
    %v1093 = vld [vmem:[#allocation5 + $0x1f30] sm:$0xff]
    %v1094 = vld [vmem:[#allocation5 + $0x1f38] sm:$0xff]
    %v1095 = vld [vmem:[#allocation5 + $0x1f40] sm:$0xff]
    %v1096 = vld [vmem:[#allocation5 + $0x1f48] sm:$0xff]
    %v1097 = vld [vmem:[#allocation5 + $0x1f50] sm:$0xff]
    %v1098 = vld [vmem:[#allocation5 + $0x1f58] sm:$0xff]
    %v1099 = vld [vmem:[#allocation5 + $0x1f60] sm:$0xff]
    %v1100 = vld [vmem:[#allocation5 + $0x1f68] sm:$0xff]
    %v1101 = vld [vmem:[#allocation5 + $0x1f70] sm:$0xff]
    %v1102 = vld [vmem:[#allocation5 + $0x1f78] sm:$0xff]
    %v1103 = vld [vmem:[#allocation5 + $0x1f80] sm:$0xff]
    %v1104 = vld [vmem:[#allocation5 + $0x1f88] sm:$0xff]
    %v1105 = vld [vmem:[#allocation5 + $0x1f90] sm:$0xff]
    %v1106 = vld [vmem:[#allocation5 + $0x1f98] sm:$0xff]
    %v1107 = vld [vmem:[#allocation5 + $0x1fa0] sm:$0xff]
    %v1108 = vld [vmem:[#allocation5 + $0x1fa8] sm:$0xff]
    %v1109 = vld [vmem:[#allocation5 + $0x1fb0] sm:$0xff]
    %v1110 = vld [vmem:[#allocation5 + $0x1fb8] sm:$0xff]
    %v1111 = vld [vmem:[#allocation5 + $0x1fc0] sm:$0xff]
    %v1112 = vld [vmem:[#allocation5 + $0x1fc8] sm:$0xff]
    %v1113 = vld [vmem:[#allocation5 + $0x1fd0] sm:$0xff]
    %v1114 = vld [vmem:[#allocation5 + $0x1fd8] sm:$0xff]
    %v1115 = vld [vmem:[#allocation5 + $0x1fe0] sm:$0xff]
    %v1116 = vld [vmem:[#allocation5 + $0x1fe8] sm:$0xff]
    %v1117 = vld [vmem:[#allocation5 + $0x1ff0] sm:$0xff]
    %v1118 = vld [vmem:[#allocation5 + $0x1ff8] sm:$0xff]
    %v1119 = vld [vmem:[#allocation5 + $0x2000] sm:$0xff]
    %v1120 = vld [vmem:[#allocation5 + $0x2008] sm:$0xff]
    %v1121 = vld [vmem:[#allocation5 + $0x2010] sm:$0xff]
    %v1122 = vld [vmem:[#allocation5 + $0x2018] sm:$0xff]
    %v1123 = vld [vmem:[#allocation5 + $0x2020] sm:$0xff]
    %v1124 = vld [vmem:[#allocation5 + $0x2028] sm:$0xff]
    %v1125 = vld [vmem:[#allocation5 + $0x2030] sm:$0xff]
    %v1126 = vld [vmem:[#allocation5 + $0x2038] sm:$0xff]
    %v1127 = vld [vmem:[#allocation5 + $0x2040] sm:$0xff]
    %v1128 = vld [vmem:[#allocation5 + $0x2048] sm:$0xff]
    %v1129 = vld [vmem:[#allocation5 + $0x2050] sm:$0xff]
    %v1130 = vld [vmem:[#allocation5 + $0x2058] sm:$0xff]
    %v1131 = vld [vmem:[#allocation5 + $0x2060] sm:$0xff]
    %v1132 = vld [vmem:[#allocation5 + $0x2068] sm:$0xff]
    %v1133 = vld [vmem:[#allocation5 + $0x2070] sm:$0xff]
    %v1134 = vld [vmem:[#allocation5 + $0x2078] sm:$0xff]
    %v1135 = vld [vmem:[#allocation5 + $0x2080] sm:$0xff]
    %v1136 = vld [vmem:[#allocation5 + $0x2088] sm:$0xff]
    %v1137 = vld [vmem:[#allocation5 + $0x2090] sm:$0xff]
    %v1138 = vld [vmem:[#allocation5 + $0x2098] sm:$0xff]
    %v1139 = vld [vmem:[#allocation5 + $0x20a0] sm:$0xff]
    %v1140 = vld [vmem:[#allocation5 + $0x20a8] sm:$0xff]
    %v1141 = vld [vmem:[#allocation5 + $0x20b0] sm:$0xff]
    %v1142 = vld [vmem:[#allocation5 + $0x20b8] sm:$0xff]
    %v1143 = vld [vmem:[#allocation5 + $0x20c0] sm:$0xff]
    %v1144 = vld [vmem:[#allocation5 + $0x20c8] sm:$0xff]
    %v1145 = vld [vmem:[#allocation5 + $0x20d0] sm:$0xff]
    %v1146 = vld [vmem:[#allocation5 + $0x20d8] sm:$0xff]
    %v1147 = vld [vmem:[#allocation5 + $0x20e0] sm:$0xff]
    %v1148 = vld [vmem:[#allocation5 + $0x20e8] sm:$0xff]
    %v1149 = vld [vmem:[#allocation5 + $0x20f0] sm:$0xff]
    %v1150 = vld [vmem:[#allocation5 + $0x20f8] sm:$0xff]
    %v1151 = vld [vmem:[#allocation5 + $0x2100] sm:$0xff]
    %v1152 = vld [vmem:[#allocation5 + $0x2108] sm:$0xff]
    %v1153 = vld [vmem:[#allocation5 + $0x2110] sm:$0xff]
    %v1154 = vld [vmem:[#allocation5 + $0x2118] sm:$0xff]
    %v1155 = vld [vmem:[#allocation5 + $0x2120] sm:$0xff]
    %v1156 = vld [vmem:[#allocation5 + $0x2128] sm:$0xff]
    %v1157 = vld [vmem:[#allocation5 + $0x2130] sm:$0xff]
    %v1158 = vld [vmem:[#allocation5 + $0x2138] sm:$0xff]
    %v1159 = vld [vmem:[#allocation5 + $0x2140] sm:$0xff]
    %v1160 = vld [vmem:[#allocation5 + $0x2148] sm:$0xff]
    %v1161 = vld [vmem:[#allocation5 + $0x2150] sm:$0xff]
    %v1162 = vld [vmem:[#allocation5 + $0x2158] sm:$0xff]
    %v1163 = vld [vmem:[#allocation5 + $0x2160] sm:$0xff]
    %v1164 = vld [vmem:[#allocation5 + $0x2168] sm:$0xff]
    %v1165 = vld [vmem:[#allocation5 + $0x2170] sm:$0xff]
    %v1166 = vld [vmem:[#allocation5 + $0x2178] sm:$0xff]
    %v1167 = vld [vmem:[#allocation5 + $0x2180] sm:$0xff]
    %v1168 = vld [vmem:[#allocation5 + $0x2188] sm:$0xff]
    %v1169 = vld [vmem:[#allocation5 + $0x2190] sm:$0xff]
    %v1170 = vld [vmem:[#allocation5 + $0x2198] sm:$0xff]
    %v1171 = vld [vmem:[#allocation5 + $0x21a0] sm:$0xff]
    %v1172 = vld [vmem:[#allocation5 + $0x21a8] sm:$0xff]
    %v1173 = vld [vmem:[#allocation5 + $0x21b0] sm:$0xff]
    %v1174 = vld [vmem:[#allocation5 + $0x21b8] sm:$0xff]
    %v1175 = vld [vmem:[#allocation5 + $0x21c0] sm:$0xff]
    %v1176 = vld [vmem:[#allocation5 + $0x21c8] sm:$0xff]
    %v1177 = vld [vmem:[#allocation5 + $0x21d0] sm:$0xff]
    %v1178 = vld [vmem:[#allocation5 + $0x21d8] sm:$0xff]
    %v1179 = vld [vmem:[#allocation5 + $0x21e0] sm:$0xff]
    %v1180 = vld [vmem:[#allocation5 + $0x21e8] sm:$0xff]
    %v1181 = vld [vmem:[#allocation5 + $0x21f0] sm:$0xff]
    %v1182 = vld [vmem:[#allocation5 + $0x21f8] sm:$0xff]
    %v1183 = vld [vmem:[#allocation5 + $0x2200] sm:$0xff]
    %v1184 = vld [vmem:[#allocation5 + $0x2208] sm:$0xff]
    %v1185 = vld [vmem:[#allocation5 + $0x2210] sm:$0xff]
    %v1186 = vld [vmem:[#allocation5 + $0x2218] sm:$0xff]
    %v1187 = vld [vmem:[#allocation5 + $0x2220] sm:$0xff]
    %v1188 = vld [vmem:[#allocation5 + $0x2228] sm:$0xff]
    %v1189 = vld [vmem:[#allocation5 + $0x2230] sm:$0xff]
    %v1190 = vld [vmem:[#allocation5 + $0x2238] sm:$0xff]
    %v1191 = vld [vmem:[#allocation5 + $0x2240] sm:$0xff]
    %v1192 = vld [vmem:[#allocation5 + $0x2248] sm:$0xff]
    %v1193 = vld [vmem:[#allocation5 + $0x2250] sm:$0xff]
    %v1194 = vld [vmem:[#allocation5 + $0x2258] sm:$0xff]
    %v1195 = vld [vmem:[#allocation5 + $0x2260] sm:$0xff]
    %v1196 = vld [vmem:[#allocation5 + $0x2268] sm:$0xff]
    %v1197 = vld [vmem:[#allocation5 + $0x2270] sm:$0xff]
    %v1198 = vld [vmem:[#allocation5 + $0x2278] sm:$0xff]
    %v1199 = vld [vmem:[#allocation5 + $0x2280] sm:$0xff]
    %v1200 = vld [vmem:[#allocation5 + $0x2288] sm:$0xff]
    %v1201 = vld [vmem:[#allocation5 + $0x2290] sm:$0xff]
    %v1202 = vld [vmem:[#allocation5 + $0x2298] sm:$0xff]
    %v1203 = vld [vmem:[#allocation5 + $0x22a0] sm:$0xff]
    %v1204 = vld [vmem:[#allocation5 + $0x22a8] sm:$0xff]
    %v1205 = vld [vmem:[#allocation5 + $0x22b0] sm:$0xff]
    %v1206 = vld [vmem:[#allocation5 + $0x22b8] sm:$0xff]
    %v1207 = vld [vmem:[#allocation5 + $0x22c0] sm:$0xff]
    %v1208 = vld [vmem:[#allocation5 + $0x22c8] sm:$0xff]
    %v1209 = vld [vmem:[#allocation5 + $0x22d0] sm:$0xff]
    %v1210 = vld [vmem:[#allocation5 + $0x22d8] sm:$0xff]
    %v1211 = vld [vmem:[#allocation5 + $0x22e0] sm:$0xff]
    %v1212 = vld [vmem:[#allocation5 + $0x22e8] sm:$0xff]
    %v1213 = vld [vmem:[#allocation5 + $0x22f0] sm:$0xff]
    %v1214 = vld [vmem:[#allocation5 + $0x22f8] sm:$0xff]
    %v1215 = vld [vmem:[#allocation5 + $0x2300] sm:$0xff]
    %v1216 = vld [vmem:[#allocation5 + $0x2308] sm:$0xff]
    %v1217 = vld [vmem:[#allocation5 + $0x2310] sm:$0xff]
    %v1218 = vld [vmem:[#allocation5 + $0x2318] sm:$0xff]
    %v1219 = vld [vmem:[#allocation5 + $0x2320] sm:$0xff]
    %v1220 = vld [vmem:[#allocation5 + $0x2328] sm:$0xff]
    %v1221 = vld [vmem:[#allocation5 + $0x2330] sm:$0xff]
    %v1222 = vld [vmem:[#allocation5 + $0x2338] sm:$0xff]
    %v1223 = vld [vmem:[#allocation5 + $0x2340] sm:$0xff]
    %v1224 = vld [vmem:[#allocation5 + $0x2348] sm:$0xff]
    %v1225 = vld [vmem:[#allocation5 + $0x2350] sm:$0xff]
    %v1226 = vld [vmem:[#allocation5 + $0x2358] sm:$0xff]
    %v1227 = vld [vmem:[#allocation5 + $0x2360] sm:$0xff]
    %v1228 = vld [vmem:[#allocation5 + $0x2368] sm:$0xff]
    %v1229 = vld [vmem:[#allocation5 + $0x2370] sm:$0xff]
    %v1230 = vld [vmem:[#allocation5 + $0x2378] sm:$0xff]
    %v1231 = vld [vmem:[#allocation5 + $0x2380] sm:$0xff]
    %v1232 = vld [vmem:[#allocation5 + $0x2388] sm:$0xff]
    %v1233 = vld [vmem:[#allocation5 + $0x2390] sm:$0xff]
    %v1234 = vld [vmem:[#allocation5 + $0x2398] sm:$0xff]
    %v1235 = vld [vmem:[#allocation5 + $0x23a0] sm:$0xff]
    %v1236 = vld [vmem:[#allocation5 + $0x23a8] sm:$0xff]
    %v1237 = vld [vmem:[#allocation5 + $0x23b0] sm:$0xff]
    %v1238 = vld [vmem:[#allocation5 + $0x23b8] sm:$0xff]
    %v1239 = vld [vmem:[#allocation5 + $0x23c0] sm:$0xff]
    %v1240 = vld [vmem:[#allocation5 + $0x23c8] sm:$0xff]
    %v1241 = vld [vmem:[#allocation5 + $0x23d0] sm:$0xff]
    %v1242 = vld [vmem:[#allocation5 + $0x23d8] sm:$0xff]
    %v1243 = vld [vmem:[#allocation5 + $0x23e0] sm:$0xff]
    %v1244 = vld [vmem:[#allocation5 + $0x23e8] sm:$0xff]
    %v1245 = vld [vmem:[#allocation5 + $0x23f0] sm:$0xff]
    %v1246 = vld [vmem:[#allocation5 + $0x23f8] sm:$0xff]
    %v1247 = vld [vmem:[#allocation5 + $0x2400] sm:$0xff]
    %v1248 = vld [vmem:[#allocation5 + $0x2408] sm:$0xff]
    %v1249 = vld [vmem:[#allocation5 + $0x2410] sm:$0xff]
    %v1250 = vld [vmem:[#allocation5 + $0x2418] sm:$0xff]
    %v1251 = vld [vmem:[#allocation5 + $0x2420] sm:$0xff]
    %v1252 = vld [vmem:[#allocation5 + $0x2428] sm:$0xff]
    %v1253 = vld [vmem:[#allocation5 + $0x2430] sm:$0xff]
    %v1254 = vld [vmem:[#allocation5 + $0x2438] sm:$0xff]
    %v1255 = vld [vmem:[#allocation5 + $0x2440] sm:$0xff]
    %v1256 = vld [vmem:[#allocation5 + $0x2448] sm:$0xff]
    %v1257 = vld [vmem:[#allocation5 + $0x2450] sm:$0xff]
    %v1258 = vld [vmem:[#allocation5 + $0x2458] sm:$0xff]
    %v1259 = vld [vmem:[#allocation5 + $0x2460] sm:$0xff]
    %v1260 = vld [vmem:[#allocation5 + $0x2468] sm:$0xff]
    %v1261 = vld [vmem:[#allocation5 + $0x2470] sm:$0xff]
    %v1262 = vld [vmem:[#allocation5 + $0x2478] sm:$0xff]
    %v1263 = vld [vmem:[#allocation5 + $0x2480] sm:$0xff]
    %v1264 = vld [vmem:[#allocation5 + $0x2488] sm:$0xff]
    %v1265 = vld [vmem:[#allocation5 + $0x2490] sm:$0xff]
    %v1266 = vld [vmem:[#allocation5 + $0x2498] sm:$0xff]
    %v1267 = vld [vmem:[#allocation5 + $0x24a0] sm:$0xff]
    %v1268 = vld [vmem:[#allocation5 + $0x24a8] sm:$0xff]
    %v1269 = vld [vmem:[#allocation5 + $0x24b0] sm:$0xff]
    %v1270 = vld [vmem:[#allocation5 + $0x24b8] sm:$0xff]
    %v1271 = vld [vmem:[#allocation5 + $0x24c0] sm:$0xff]
    %v1272 = vld [vmem:[#allocation5 + $0x24c8] sm:$0xff]
    %v1273 = vld [vmem:[#allocation5 + $0x24d0] sm:$0xff]
    %v1274 = vld [vmem:[#allocation5 + $0x24d8] sm:$0xff]
    %v1275 = vld [vmem:[#allocation5 + $0x24e0] sm:$0xff]
    %v1276 = vld [vmem:[#allocation5 + $0x24e8] sm:$0xff]
    %v1277 = vld [vmem:[#allocation5 + $0x24f0] sm:$0xff]
    %v1278 = vld [vmem:[#allocation5 + $0x24f8] sm:$0xff]
    %v1279 = vld [vmem:[#allocation5 + $0x2500] sm:$0xff]
    %v1280 = vld [vmem:[#allocation5 + $0x2508] sm:$0xff]
    %v1281 = vld [vmem:[#allocation5 + $0x2510] sm:$0xff]
    %v1282 = vld [vmem:[#allocation5 + $0x2518] sm:$0xff]
    %v1283 = vld [vmem:[#allocation5 + $0x2520] sm:$0xff]
    %v1284 = vld [vmem:[#allocation5 + $0x2528] sm:$0xff]
    %v1285 = vld [vmem:[#allocation5 + $0x2530] sm:$0xff]
    %v1286 = vld [vmem:[#allocation5 + $0x2538] sm:$0xff]
    %v1287 = vld [vmem:[#allocation5 + $0x2540] sm:$0xff]
    %v1288 = vld [vmem:[#allocation5 + $0x2548] sm:$0xff]
    %v1289 = vld [vmem:[#allocation5 + $0x2550] sm:$0xff]
    %v1290 = vld [vmem:[#allocation5 + $0x2558] sm:$0xff]
    %v1291 = vld [vmem:[#allocation5 + $0x2560] sm:$0xff]
    %v1292 = vld [vmem:[#allocation5 + $0x2568] sm:$0xff]
    %v1293 = vld [vmem:[#allocation5 + $0x2570] sm:$0xff]
    %v1294 = vld [vmem:[#allocation5 + $0x2578] sm:$0xff]
    %v1295 = vld [vmem:[#allocation5 + $0x2580] sm:$0xff]
    %v1296 = vld [vmem:[#allocation5 + $0x2588] sm:$0xff]
    %v1297 = vld [vmem:[#allocation5 + $0x2590] sm:$0xff]
    %v1298 = vld [vmem:[#allocation5 + $0x2598] sm:$0xff]
    %v1299 = vld [vmem:[#allocation5 + $0x25a0] sm:$0xff]
    %v1300 = vld [vmem:[#allocation5 + $0x25a8] sm:$0xff]
    %v1301 = vld [vmem:[#allocation5 + $0x25b0] sm:$0xff]
    %v1302 = vld [vmem:[#allocation5 + $0x25b8] sm:$0xff]
    %v1303 = vld [vmem:[#allocation5 + $0x25c0] sm:$0xff]
    %v1304 = vld [vmem:[#allocation5 + $0x25c8] sm:$0xff]
    %v1305 = vld [vmem:[#allocation5 + $0x25d0] sm:$0xff]
    %v1306 = vld [vmem:[#allocation5 + $0x25d8] sm:$0xff]
    %v1307 = vld [vmem:[#allocation5 + $0x25e0] sm:$0xff]
    %v1308 = vld [vmem:[#allocation5 + $0x25e8] sm:$0xff]
    %v1309 = vld [vmem:[#allocation5 + $0x25f0] sm:$0xff]
    %v1310 = vld [vmem:[#allocation5 + $0x25f8] sm:$0xff]
    %v1311 = vld [vmem:[#allocation5 + $0x2600] sm:$0xff]
    %v1312 = vld [vmem:[#allocation5 + $0x2608] sm:$0xff]
    %v1313 = vld [vmem:[#allocation5 + $0x2610] sm:$0xff]
    %v1314 = vld [vmem:[#allocation5 + $0x2618] sm:$0xff]
    %v1315 = vld [vmem:[#allocation5 + $0x2620] sm:$0xff]
    %v1316 = vld [vmem:[#allocation5 + $0x2628] sm:$0xff]
    %v1317 = vld [vmem:[#allocation5 + $0x2630] sm:$0xff]
    %v1318 = vld [vmem:[#allocation5 + $0x2638] sm:$0xff]
    %v1319 = vld [vmem:[#allocation5 + $0x2640] sm:$0xff]
    %v1320 = vld [vmem:[#allocation5 + $0x2648] sm:$0xff]
    %v1321 = vld [vmem:[#allocation5 + $0x2650] sm:$0xff]
    %v1322 = vld [vmem:[#allocation5 + $0x2658] sm:$0xff]
    %v1323 = vld [vmem:[#allocation5 + $0x2660] sm:$0xff]
    %v1324 = vld [vmem:[#allocation5 + $0x2668] sm:$0xff]
    %v1325 = vld [vmem:[#allocation5 + $0x2670] sm:$0xff]
    %v1326 = vld [vmem:[#allocation5 + $0x2678] sm:$0xff]
    %v1327 = vld [vmem:[#allocation5 + $0x2680] sm:$0xff]
    %v1328 = vld [vmem:[#allocation5 + $0x2688] sm:$0xff]
    %v1329 = vld [vmem:[#allocation5 + $0x2690] sm:$0xff]
    %v1330 = vld [vmem:[#allocation5 + $0x2698] sm:$0xff]
    %v1331 = vld [vmem:[#allocation5 + $0x26a0] sm:$0xff]
    %v1332 = vld [vmem:[#allocation5 + $0x26a8] sm:$0xff]
    %v1333 = vld [vmem:[#allocation5 + $0x26b0] sm:$0xff]
    %v1334 = vld [vmem:[#allocation5 + $0x26b8] sm:$0xff]
    %v1335 = vld [vmem:[#allocation5 + $0x26c0] sm:$0xff]
    %v1336 = vld [vmem:[#allocation5 + $0x26c8] sm:$0xff]
    %v1337 = vld [vmem:[#allocation5 + $0x26d0] sm:$0xff]
    %v1338 = vld [vmem:[#allocation5 + $0x26d8] sm:$0xff]
    %v1339 = vld [vmem:[#allocation5 + $0x26e0] sm:$0xff]
    %v1340 = vld [vmem:[#allocation5 + $0x26e8] sm:$0xff]
    %v1341 = vld [vmem:[#allocation5 + $0x26f0] sm:$0xff]
    %v1342 = vld [vmem:[#allocation5 + $0x26f8] sm:$0xff]
    %v1343 = vld [vmem:[#allocation5 + $0x2700] sm:$0xff]
    %v1344 = vld [vmem:[#allocation5 + $0x2708] sm:$0xff]
    %v1345 = vld [vmem:[#allocation5 + $0x2710] sm:$0xff]
    %v1346 = vld [vmem:[#allocation5 + $0x2718] sm:$0xff]
    %v1347 = vld [vmem:[#allocation5 + $0x2720] sm:$0xff]
    %v1348 = vld [vmem:[#allocation5 + $0x2728] sm:$0xff]
    %v1349 = vld [vmem:[#allocation5 + $0x2730] sm:$0xff]
    %v1350 = vld [vmem:[#allocation5 + $0x2738] sm:$0xff]
    %v1351 = vld [vmem:[#allocation5 + $0x2740] sm:$0xff]
    %v1352 = vld [vmem:[#allocation5 + $0x2748] sm:$0xff]
    %v1353 = vld [vmem:[#allocation5 + $0x2750] sm:$0xff]
    %v1354 = vld [vmem:[#allocation5 + $0x2758] sm:$0xff]
    %v1355 = vld [vmem:[#allocation5 + $0x2760] sm:$0xff]
    %v1356 = vld [vmem:[#allocation5 + $0x2768] sm:$0xff]
    %v1357 = vld [vmem:[#allocation5 + $0x2770] sm:$0xff]
    %v1358 = vld [vmem:[#allocation5 + $0x2778] sm:$0xff]
    %v1359 = vld [vmem:[#allocation5 + $0x2780] sm:$0xff]
    %v1360 = vld [vmem:[#allocation5 + $0x2788] sm:$0xff]
    %v1361 = vld [vmem:[#allocation5 + $0x2790] sm:$0xff]
    %v1362 = vld [vmem:[#allocation5 + $0x2798] sm:$0xff]
    %v1363 = vld [vmem:[#allocation5 + $0x27a0] sm:$0xff]
    %v1364 = vld [vmem:[#allocation5 + $0x27a8] sm:$0xff]
    %v1365 = vld [vmem:[#allocation5 + $0x27b0] sm:$0xff]
    %v1366 = vld [vmem:[#allocation5 + $0x27b8] sm:$0xff]
    %v1367 = vld [vmem:[#allocation5 + $0x27c0] sm:$0xff]
    %v1368 = vld [vmem:[#allocation5 + $0x27c8] sm:$0xff]
    %v1369 = vld [vmem:[#allocation5 + $0x27d0] sm:$0xff]
    %v1370 = vld [vmem:[#allocation5 + $0x27d8] sm:$0xff]
    %v1371 = vld [vmem:[#allocation5 + $0x27e0] sm:$0xff]
    %v1372 = vld [vmem:[#allocation5 + $0x27e8] sm:$0xff]
    %v1373 = vld [vmem:[#allocation5 + $0x27f0] sm:$0xff]
    %v1374 = vld [vmem:[#allocation5 + $0x27f8] sm:$0xff]
    %v1375 = vld [vmem:[#allocation5 + $0x2800] sm:$0xff]
    %v1376 = vld [vmem:[#allocation5 + $0x2808] sm:$0xff]
    %v1377 = vld [vmem:[#allocation5 + $0x2810] sm:$0xff]
    %v1378 = vld [vmem:[#allocation5 + $0x2818] sm:$0xff]
    %v1379 = vld [vmem:[#allocation5 + $0x2820] sm:$0xff]
    %v1380 = vld [vmem:[#allocation5 + $0x2828] sm:$0xff]
    %v1381 = vld [vmem:[#allocation5 + $0x2830] sm:$0xff]
    %v1382 = vld [vmem:[#allocation5 + $0x2838] sm:$0xff]
    %v1383 = vld [vmem:[#allocation5 + $0x2840] sm:$0xff]
    %v1384 = vld [vmem:[#allocation5 + $0x2848] sm:$0xff]
    %v1385 = vld [vmem:[#allocation5 + $0x2850] sm:$0xff]
    %v1386 = vld [vmem:[#allocation5 + $0x2858] sm:$0xff]
    %v1387 = vld [vmem:[#allocation5 + $0x2860] sm:$0xff]
    %v1388 = vld [vmem:[#allocation5 + $0x2868] sm:$0xff]
    %v1389 = vld [vmem:[#allocation5 + $0x2870] sm:$0xff]
    %v1390 = vld [vmem:[#allocation5 + $0x2878] sm:$0xff]
    %v1391 = vld [vmem:[#allocation5 + $0x2880] sm:$0xff]
    %v1392 = vld [vmem:[#allocation5 + $0x2888] sm:$0xff]
    %v1393 = vld [vmem:[#allocation5 + $0x2890] sm:$0xff]
    %v1394 = vld [vmem:[#allocation5 + $0x2898] sm:$0xff]
    %v1395 = vld [vmem:[#allocation5 + $0x28a0] sm:$0xff]
    %v1396 = vld [vmem:[#allocation5 + $0x28a8] sm:$0xff]
    %v1397 = vld [vmem:[#allocation5 + $0x28b0] sm:$0xff]
    %v1398 = vld [vmem:[#allocation5 + $0x28b8] sm:$0xff]
    %v1399 = vld [vmem:[#allocation5 + $0x28c0] sm:$0xff]
    %v1400 = vld [vmem:[#allocation5 + $0x28c8] sm:$0xff]
    %v1401 = vld [vmem:[#allocation5 + $0x28d0] sm:$0xff]
    %v1402 = vld [vmem:[#allocation5 + $0x28d8] sm:$0xff]
    %v1403 = vld [vmem:[#allocation5 + $0x28e0] sm:$0xff]
    %v1404 = vld [vmem:[#allocation5 + $0x28e8] sm:$0xff]
    %v1405 = vld [vmem:[#allocation5 + $0x28f0] sm:$0xff]
    %v1406 = vld [vmem:[#allocation5 + $0x28f8] sm:$0xff]
    %v1407 = vld [vmem:[#allocation5 + $0x2900] sm:$0xff]
    %v1408 = vld [vmem:[#allocation5 + $0x2908] sm:$0xff]
    %v1409 = vld [vmem:[#allocation5 + $0x2910] sm:$0xff]
    %v1410 = vld [vmem:[#allocation5 + $0x2918] sm:$0xff]
    %v1411 = vld [vmem:[#allocation5 + $0x2920] sm:$0xff]
    %v1412 = vld [vmem:[#allocation5 + $0x2928] sm:$0xff]
    %v1413 = vld [vmem:[#allocation5 + $0x2930] sm:$0xff]
    %v1414 = vld [vmem:[#allocation5 + $0x2938] sm:$0xff]
    %v1415 = vld [vmem:[#allocation5 + $0x2940] sm:$0xff]
    %v1416 = vld [vmem:[#allocation5 + $0x2948] sm:$0xff]
    %v1417 = vld [vmem:[#allocation5 + $0x2950] sm:$0xff]
    %v1418 = vld [vmem:[#allocation5 + $0x2958] sm:$0xff]
    %v1419 = vld [vmem:[#allocation5 + $0x2960] sm:$0xff]
    %v1420 = vld [vmem:[#allocation5 + $0x2968] sm:$0xff]
    %v1421 = vld [vmem:[#allocation5 + $0x2970] sm:$0xff]
    %v1422 = vld [vmem:[#allocation5 + $0x2978] sm:$0xff]
    %v1423 = vld [vmem:[#allocation5 + $0x2980] sm:$0xff]
    %v1424 = vld [vmem:[#allocation5 + $0x2988] sm:$0xff]
    %v1425 = vld [vmem:[#allocation5 + $0x2990] sm:$0xff]
    %v1426 = vld [vmem:[#allocation5 + $0x2998] sm:$0xff]
    %v1427 = vld [vmem:[#allocation5 + $0x29a0] sm:$0xff]
    %v1428 = vld [vmem:[#allocation5 + $0x29a8] sm:$0xff]
    %v1429 = vld [vmem:[#allocation5 + $0x29b0] sm:$0xff]
    %v1430 = vld [vmem:[#allocation5 + $0x29b8] sm:$0xff]
    %v1431 = vld [vmem:[#allocation5 + $0x29c0] sm:$0xff]
    %v1432 = vld [vmem:[#allocation5 + $0x29c8] sm:$0xff]
    %v1433 = vld [vmem:[#allocation5 + $0x29d0] sm:$0xff]
    %v1434 = vld [vmem:[#allocation5 + $0x29d8] sm:$0xff]
    %v1435 = vld [vmem:[#allocation5 + $0x29e0] sm:$0xff]
    %v1436 = vld [vmem:[#allocation5 + $0x29e8] sm:$0xff]
    %v1437 = vld [vmem:[#allocation5 + $0x29f0] sm:$0xff]
    %v1438 = vld [vmem:[#allocation5 + $0x29f8] sm:$0xff]
    %v1439 = vld [vmem:[#allocation5 + $0x2a00] sm:$0xff]
    %v1440 = vld [vmem:[#allocation5 + $0x2a08] sm:$0xff]
    %v1441 = vld [vmem:[#allocation5 + $0x2a10] sm:$0xff]
    %v1442 = vld [vmem:[#allocation5 + $0x2a18] sm:$0xff]
    %v1443 = vld [vmem:[#allocation5 + $0x2a20] sm:$0xff]
    %v1444 = vld [vmem:[#allocation5 + $0x2a28] sm:$0xff]
    %v1445 = vld [vmem:[#allocation5 + $0x2a30] sm:$0xff]
    %v1446 = vld [vmem:[#allocation5 + $0x2a38] sm:$0xff]
    %v1447 = vld [vmem:[#allocation5 + $0x2a40] sm:$0xff]
    %v1448 = vld [vmem:[#allocation5 + $0x2a48] sm:$0xff]
    %v1449 = vld [vmem:[#allocation5 + $0x2a50] sm:$0xff]
    %v1450 = vld [vmem:[#allocation5 + $0x2a58] sm:$0xff]
    %v1451 = vld [vmem:[#allocation5 + $0x2a60] sm:$0xff]
    %v1452 = vld [vmem:[#allocation5 + $0x2a68] sm:$0xff]
    %v1453 = vld [vmem:[#allocation5 + $0x2a70] sm:$0xff]
    %v1454 = vld [vmem:[#allocation5 + $0x2a78] sm:$0xff]
    %v1455 = vld [vmem:[#allocation5 + $0x2a80] sm:$0xff]
    %v1456 = vld [vmem:[#allocation5 + $0x2a88] sm:$0xff]
    %v1457 = vld [vmem:[#allocation5 + $0x2a90] sm:$0xff]
    %v1458 = vld [vmem:[#allocation5 + $0x2a98] sm:$0xff]
    %v1459 = vld [vmem:[#allocation5 + $0x2aa0] sm:$0xff]
    %v1460 = vld [vmem:[#allocation5 + $0x2aa8] sm:$0xff]
    %v1461 = vld [vmem:[#allocation5 + $0x2ab0] sm:$0xff]
    %v1462 = vld [vmem:[#allocation5 + $0x2ab8] sm:$0xff]
    %v1463 = vld [vmem:[#allocation5 + $0x2ac0] sm:$0xff]
    %v1464 = vld [vmem:[#allocation5 + $0x2ac8] sm:$0xff]
    %v1465 = vld [vmem:[#allocation5 + $0x2ad0] sm:$0xff]
    %v1466 = vld [vmem:[#allocation5 + $0x2ad8] sm:$0xff]
    %v1467 = vld [vmem:[#allocation5 + $0x2ae0] sm:$0xff]
    %v1468 = vld [vmem:[#allocation5 + $0x2ae8] sm:$0xff]
    %v1469 = vld [vmem:[#allocation5 + $0x2af0] sm:$0xff]
    %v1470 = vld [vmem:[#allocation5 + $0x2af8] sm:$0xff]
    %v1471 = vld [vmem:[#allocation5 + $0x2b00] sm:$0xff]
    %v1472 = vld [vmem:[#allocation5 + $0x2b08] sm:$0xff]
    %v1473 = vld [vmem:[#allocation5 + $0x2b10] sm:$0xff]
    %v1474 = vld [vmem:[#allocation5 + $0x2b18] sm:$0xff]
    %v1475 = vld [vmem:[#allocation5 + $0x2b20] sm:$0xff]
    %v1476 = vld [vmem:[#allocation5 + $0x2b28] sm:$0xff]
    %v1477 = vld [vmem:[#allocation5 + $0x2b30] sm:$0xff]
    %v1478 = vld [vmem:[#allocation5 + $0x2b38] sm:$0xff]
    %v1479 = vld [vmem:[#allocation5 + $0x2b40] sm:$0xff]
    %v1480 = vld [vmem:[#allocation5 + $0x2b48] sm:$0xff]
    %v1481 = vld [vmem:[#allocation5 + $0x2b50] sm:$0xff]
    %v1482 = vld [vmem:[#allocation5 + $0x2b58] sm:$0xff]
    %v1483 = vld [vmem:[#allocation5 + $0x2b60] sm:$0xff]
    %v1484 = vld [vmem:[#allocation5 + $0x2b68] sm:$0xff]
    %v1485 = vld [vmem:[#allocation5 + $0x2b70] sm:$0xff]
    %v1486 = vld [vmem:[#allocation5 + $0x2b78] sm:$0xff]
    %v1487 = vld [vmem:[#allocation5 + $0x2b80] sm:$0xff]
    %v1488 = vld [vmem:[#allocation5 + $0x2b88] sm:$0xff]
    %v1489 = vld [vmem:[#allocation5 + $0x2b90] sm:$0xff]
    %v1490 = vld [vmem:[#allocation5 + $0x2b98] sm:$0xff]
    %v1491 = vld [vmem:[#allocation5 + $0x2ba0] sm:$0xff]
    %v1492 = vld [vmem:[#allocation5 + $0x2ba8] sm:$0xff]
    %v1493 = vld [vmem:[#allocation5 + $0x2bb0] sm:$0xff]
    %v1494 = vld [vmem:[#allocation5 + $0x2bb8] sm:$0xff]
    %v1495 = vld [vmem:[#allocation5 + $0x2bc0] sm:$0xff]
    %v1496 = vld [vmem:[#allocation5 + $0x2bc8] sm:$0xff]
    %v1497 = vld [vmem:[#allocation5 + $0x2bd0] sm:$0xff]
    %v1498 = vld [vmem:[#allocation5 + $0x2bd8] sm:$0xff]
    %v1499 = vld [vmem:[#allocation5 + $0x2be0] sm:$0xff]
    %v1500 = vld [vmem:[#allocation5 + $0x2be8] sm:$0xff]
    %v1501 = vld [vmem:[#allocation5 + $0x2bf0] sm:$0xff]
    %v1502 = vld [vmem:[#allocation5 + $0x2bf8] sm:$0xff]
    %v1503 = vld [vmem:[#allocation5 + $0x2c00] sm:$0xff]
    %v1504 = vld [vmem:[#allocation5 + $0x2c08] sm:$0xff]
    %v1505 = vld [vmem:[#allocation5 + $0x2c10] sm:$0xff]
    %v1506 = vld [vmem:[#allocation5 + $0x2c18] sm:$0xff]
    %v1507 = vld [vmem:[#allocation5 + $0x2c20] sm:$0xff]
    %v1508 = vld [vmem:[#allocation5 + $0x2c28] sm:$0xff]
    %v1509 = vld [vmem:[#allocation5 + $0x2c30] sm:$0xff]
    %v1510 = vld [vmem:[#allocation5 + $0x2c38] sm:$0xff]
    %v1511 = vld [vmem:[#allocation5 + $0x2c40] sm:$0xff]
    %v1512 = vld [vmem:[#allocation5 + $0x2c48] sm:$0xff]
    %v1513 = vld [vmem:[#allocation5 + $0x2c50] sm:$0xff]
    %v1514 = vld [vmem:[#allocation5 + $0x2c58] sm:$0xff]
    %v1515 = vld [vmem:[#allocation5 + $0x2c60] sm:$0xff]
    %v1516 = vld [vmem:[#allocation5 + $0x2c68] sm:$0xff]
    %v1517 = vld [vmem:[#allocation5 + $0x2c70] sm:$0xff]
    %v1518 = vld [vmem:[#allocation5 + $0x2c78] sm:$0xff]
    %v1519 = vld [vmem:[#allocation5 + $0x2c80] sm:$0xff]
    %v1520 = vld [vmem:[#allocation5 + $0x2c88] sm:$0xff]
    %v1521 = vld [vmem:[#allocation5 + $0x2c90] sm:$0xff]
    %v1522 = vld [vmem:[#allocation5 + $0x2c98] sm:$0xff]
    %v1523 = vld [vmem:[#allocation5 + $0x2ca0] sm:$0xff]
    %v1524 = vld [vmem:[#allocation5 + $0x2ca8] sm:$0xff]
    %v1525 = vld [vmem:[#allocation5 + $0x2cb0] sm:$0xff]
    %v1526 = vld [vmem:[#allocation5 + $0x2cb8] sm:$0xff]
    %v1527 = vld [vmem:[#allocation5 + $0x2cc0] sm:$0xff]
    %v1528 = vld [vmem:[#allocation5 + $0x2cc8] sm:$0xff]
    %v1529 = vld [vmem:[#allocation5 + $0x2cd0] sm:$0xff]
    %v1530 = vld [vmem:[#allocation5 + $0x2cd8] sm:$0xff]
    %v1531 = vld [vmem:[#allocation5 + $0x2ce0] sm:$0xff]
    %v1532 = vld [vmem:[#allocation5 + $0x2ce8] sm:$0xff]
    %v1533 = vld [vmem:[#allocation5 + $0x2cf0] sm:$0xff]
    %v1534 = vld [vmem:[#allocation5 + $0x2cf8] sm:$0xff]
    %v1535 = vld [vmem:[#allocation5 + $0x2d00] sm:$0xff]
    %v1536 = vld [vmem:[#allocation5 + $0x2d08] sm:$0xff]
    %v1537 = vld [vmem:[#allocation5 + $0x2d10] sm:$0xff]
    %v1538 = vld [vmem:[#allocation5 + $0x2d18] sm:$0xff]
    %v1539 = vld [vmem:[#allocation5 + $0x2d20] sm:$0xff]
    %v1540 = vld [vmem:[#allocation5 + $0x2d28] sm:$0xff]
    %v1541 = vld [vmem:[#allocation5 + $0x2d30] sm:$0xff]
    %v1542 = vld [vmem:[#allocation5 + $0x2d38] sm:$0xff]
    %v1543 = vld [vmem:[#allocation5 + $0x2d40] sm:$0xff]
    %v1544 = vld [vmem:[#allocation5 + $0x2d48] sm:$0xff]
    %v1545 = vld [vmem:[#allocation5 + $0x2d50] sm:$0xff]
    %v1546 = vld [vmem:[#allocation5 + $0x2d58] sm:$0xff]
    %v1547 = vld [vmem:[#allocation5 + $0x2d60] sm:$0xff]
    %v1548 = vld [vmem:[#allocation5 + $0x2d68] sm:$0xff]
    %v1549 = vld [vmem:[#allocation5 + $0x2d70] sm:$0xff]
    %v1550 = vld [vmem:[#allocation5 + $0x2d78] sm:$0xff]
    %v1551 = vld [vmem:[#allocation5 + $0x2d80] sm:$0xff]
    %v1552 = vld [vmem:[#allocation5 + $0x2d88] sm:$0xff]
    %v1553 = vld [vmem:[#allocation5 + $0x2d90] sm:$0xff]
    %v1554 = vld [vmem:[#allocation5 + $0x2d98] sm:$0xff]
    %v1555 = vld [vmem:[#allocation5 + $0x2da0] sm:$0xff]
    %v1556 = vld [vmem:[#allocation5 + $0x2da8] sm:$0xff]
    %v1557 = vld [vmem:[#allocation5 + $0x2db0] sm:$0xff]
    %v1558 = vld [vmem:[#allocation5 + $0x2db8] sm:$0xff]
    %v1559 = vld [vmem:[#allocation5 + $0x2dc0] sm:$0xff]
    %v1560 = vld [vmem:[#allocation5 + $0x2dc8] sm:$0xff]
    %v1561 = vld [vmem:[#allocation5 + $0x2dd0] sm:$0xff]
    %v1562 = vld [vmem:[#allocation5 + $0x2dd8] sm:$0xff]
    %v1563 = vld [vmem:[#allocation5 + $0x2de0] sm:$0xff]
    %v1564 = vld [vmem:[#allocation5 + $0x2de8] sm:$0xff]
    %v1565 = vld [vmem:[#allocation5 + $0x2df0] sm:$0xff]
    %v1566 = vld [vmem:[#allocation5 + $0x2df8] sm:$0xff]
    %v1567 = vld [vmem:[#allocation5 + $0x2e00] sm:$0xff]
    %v1568 = vld [vmem:[#allocation5 + $0x2e08] sm:$0xff]
    %v1569 = vld [vmem:[#allocation5 + $0x2e10] sm:$0xff]
    %v1570 = vld [vmem:[#allocation5 + $0x2e18] sm:$0xff]
    %v1571 = vld [vmem:[#allocation5 + $0x2e20] sm:$0xff]
    %v1572 = vld [vmem:[#allocation5 + $0x2e28] sm:$0xff]
    %v1573 = vld [vmem:[#allocation5 + $0x2e30] sm:$0xff]
    %v1574 = vld [vmem:[#allocation5 + $0x2e38] sm:$0xff]
    %v1575 = vld [vmem:[#allocation5 + $0x2e40] sm:$0xff]
    %v1576 = vld [vmem:[#allocation5 + $0x2e48] sm:$0xff]
    %v1577 = vld [vmem:[#allocation5 + $0x2e50] sm:$0xff]
    %v1578 = vld [vmem:[#allocation5 + $0x2e58] sm:$0xff]
    %v1579 = vld [vmem:[#allocation5 + $0x2e60] sm:$0xff]
    %v1580 = vld [vmem:[#allocation5 + $0x2e68] sm:$0xff]
    %v1581 = vld [vmem:[#allocation5 + $0x2e70] sm:$0xff]
    %v1582 = vld [vmem:[#allocation5 + $0x2e78] sm:$0xff]
    %v1583 = vld [vmem:[#allocation5 + $0x2e80] sm:$0xff]
    %v1584 = vld [vmem:[#allocation5 + $0x2e88] sm:$0xff]
    %v1585 = vld [vmem:[#allocation5 + $0x2e90] sm:$0xff]
    %v1586 = vld [vmem:[#allocation5 + $0x2e98] sm:$0xff]
    %v1587 = vld [vmem:[#allocation5 + $0x2ea0] sm:$0xff]
    %v1588 = vld [vmem:[#allocation5 + $0x2ea8] sm:$0xff]
    %v1589 = vld [vmem:[#allocation5 + $0x2eb0] sm:$0xff]
    %v1590 = vld [vmem:[#allocation5 + $0x2eb8] sm:$0xff]
    %v1591 = vld [vmem:[#allocation5 + $0x2ec0] sm:$0xff]
    %v1592 = vld [vmem:[#allocation5 + $0x2ec8] sm:$0xff]
    %v1593 = vld [vmem:[#allocation5 + $0x2ed0] sm:$0xff]
    %v1594 = vld [vmem:[#allocation5 + $0x2ed8] sm:$0xff]
    %v1595 = vld [vmem:[#allocation5 + $0x2ee0] sm:$0xff]
    %v1596 = vld [vmem:[#allocation5 + $0x2ee8] sm:$0xff]
    %v1597 = vld [vmem:[#allocation5 + $0x2ef0] sm:$0xff]
    %v1598 = vld [vmem:[#allocation5 + $0x2ef8] sm:$0xff]
    %v1599 = vld [vmem:[#allocation5 + $0x2f00] sm:$0xff]
    %v1600 = vld [vmem:[#allocation5 + $0x2f08] sm:$0xff]
    %v1601 = vld [vmem:[#allocation5 + $0x2f10] sm:$0xff]
    %v1602 = vld [vmem:[#allocation5 + $0x2f18] sm:$0xff]
    %v1603 = vld [vmem:[#allocation5 + $0x2f20] sm:$0xff]
    %v1604 = vld [vmem:[#allocation5 + $0x2f28] sm:$0xff]
    %v1605 = vld [vmem:[#allocation5 + $0x2f30] sm:$0xff]
    %v1606 = vld [vmem:[#allocation5 + $0x2f38] sm:$0xff]
    %v1607 = vld [vmem:[#allocation5 + $0x2f40] sm:$0xff]
    %v1608 = vld [vmem:[#allocation5 + $0x2f48] sm:$0xff]
    %v1609 = vld [vmem:[#allocation5 + $0x2f50] sm:$0xff]
    %v1610 = vld [vmem:[#allocation5 + $0x2f58] sm:$0xff]
    %v1611 = vld [vmem:[#allocation5 + $0x2f60] sm:$0xff]
    %v1612 = vld [vmem:[#allocation5 + $0x2f68] sm:$0xff]
    %v1613 = vld [vmem:[#allocation5 + $0x2f70] sm:$0xff]
    %v1614 = vld [vmem:[#allocation5 + $0x2f78] sm:$0xff]
    %v1615 = vld [vmem:[#allocation5 + $0x2f80] sm:$0xff]
    %v1616 = vld [vmem:[#allocation5 + $0x2f88] sm:$0xff]
    %v1617 = vld [vmem:[#allocation5 + $0x2f90] sm:$0xff]
    %v1618 = vld [vmem:[#allocation5 + $0x2f98] sm:$0xff]
    %v1619 = vld [vmem:[#allocation5 + $0x2fa0] sm:$0xff]
    %v1620 = vld [vmem:[#allocation5 + $0x2fa8] sm:$0xff]
    %v1621 = vld [vmem:[#allocation5 + $0x2fb0] sm:$0xff]
    %v1622 = vld [vmem:[#allocation5 + $0x2fb8] sm:$0xff]
    %v1623 = vld [vmem:[#allocation5 + $0x2fc0] sm:$0xff]
    %v1624 = vld [vmem:[#allocation5 + $0x2fc8] sm:$0xff]
    %v1625 = vld [vmem:[#allocation5 + $0x2fd0] sm:$0xff]
    %v1626 = vld [vmem:[#allocation5 + $0x2fd8] sm:$0xff]
    %v1627 = vld [vmem:[#allocation5 + $0x2fe0] sm:$0xff]
    %v1628 = vld [vmem:[#allocation5 + $0x2fe8] sm:$0xff]
    %v1629 = vld [vmem:[#allocation5 + $0x2ff0] sm:$0xff]
    %v1630 = vld [vmem:[#allocation5 + $0x2ff8] sm:$0xff]
    %v1631 = vld [vmem:[#allocation5 + $0x3000] sm:$0xff]
    %v1632 = vld [vmem:[#allocation5 + $0x3008] sm:$0xff]
    %v1633 = vld [vmem:[#allocation5 + $0x3010] sm:$0xff]
    %v1634 = vld [vmem:[#allocation5 + $0x3018] sm:$0xff]
    %v1635 = vld [vmem:[#allocation5 + $0x3020] sm:$0xff]
    %v1636 = vld [vmem:[#allocation5 + $0x3028] sm:$0xff]
    %v1637 = vld [vmem:[#allocation5 + $0x3030] sm:$0xff]
    %v1638 = vld [vmem:[#allocation5 + $0x3038] sm:$0xff]
    %v1639 = vld [vmem:[#allocation5 + $0x3040] sm:$0xff]
    %v1640 = vld [vmem:[#allocation5 + $0x3048] sm:$0xff]
    %v1641 = vld [vmem:[#allocation5 + $0x3050] sm:$0xff]
    %v1642 = vld [vmem:[#allocation5 + $0x3058] sm:$0xff]
    %v1643 = vld [vmem:[#allocation5 + $0x3060] sm:$0xff]
    %v1644 = vld [vmem:[#allocation5 + $0x3068] sm:$0xff]
    %v1645 = vld [vmem:[#allocation5 + $0x3070] sm:$0xff]
    %v1646 = vld [vmem:[#allocation5 + $0x3078] sm:$0xff]
    %v1647 = vld [vmem:[#allocation5 + $0x3080] sm:$0xff]
    %v1648 = vld [vmem:[#allocation5 + $0x3088] sm:$0xff]
    %v1649 = vld [vmem:[#allocation5 + $0x3090] sm:$0xff]
    %v1650 = vld [vmem:[#allocation5 + $0x3098] sm:$0xff]
    %v1651 = vld [vmem:[#allocation5 + $0x30a0] sm:$0xff]
    %v1652 = vld [vmem:[#allocation5 + $0x30a8] sm:$0xff]
    %v1653 = vld [vmem:[#allocation5 + $0x30b0] sm:$0xff]
    %v1654 = vld [vmem:[#allocation5 + $0x30b8] sm:$0xff]
    %v1655 = vld [vmem:[#allocation5 + $0x30c0] sm:$0xff]
    %v1656 = vld [vmem:[#allocation5 + $0x30c8] sm:$0xff]
    %v1657 = vld [vmem:[#allocation5 + $0x30d0] sm:$0xff]
    %v1658 = vld [vmem:[#allocation5 + $0x30d8] sm:$0xff]
    %v1659 = vld [vmem:[#allocation5 + $0x30e0] sm:$0xff]
    %v1660 = vld [vmem:[#allocation5 + $0x30e8] sm:$0xff]
    %v1661 = vld [vmem:[#allocation5 + $0x30f0] sm:$0xff]
    %v1662 = vld [vmem:[#allocation5 + $0x30f8] sm:$0xff]
    %v1663 = vld [vmem:[#allocation5 + $0x3100] sm:$0xff]
    %v1664 = vld [vmem:[#allocation5 + $0x3108] sm:$0xff]
    %v1665 = vld [vmem:[#allocation5 + $0x3110] sm:$0xff]
    %v1666 = vld [vmem:[#allocation5 + $0x3118] sm:$0xff]
    %v1667 = vld [vmem:[#allocation5 + $0x3120] sm:$0xff]
    %v1668 = vld [vmem:[#allocation5 + $0x3128] sm:$0xff]
    %v1669 = vld [vmem:[#allocation5 + $0x3130] sm:$0xff]
    %v1670 = vld [vmem:[#allocation5 + $0x3138] sm:$0xff]
    %v1671 = vld [vmem:[#allocation5 + $0x3140] sm:$0xff]
    %v1672 = vld [vmem:[#allocation5 + $0x3148] sm:$0xff]
    %v1673 = vld [vmem:[#allocation5 + $0x3150] sm:$0xff]
    %v1674 = vld [vmem:[#allocation5 + $0x3158] sm:$0xff]
    %v1675 = vld [vmem:[#allocation5 + $0x3160] sm:$0xff]
    %v1676 = vld [vmem:[#allocation5 + $0x3168] sm:$0xff]
    %v1677 = vld [vmem:[#allocation5 + $0x3170] sm:$0xff]
    %v1678 = vld [vmem:[#allocation5 + $0x3178] sm:$0xff]
    %v1679 = vld [vmem:[#allocation5 + $0x3180] sm:$0xff]
    %v1680 = vld [vmem:[#allocation5 + $0x3188] sm:$0xff]
    %v1681 = vld [vmem:[#allocation5 + $0x3190] sm:$0xff]
    %v1682 = vld [vmem:[#allocation5 + $0x3198] sm:$0xff]
    %v1683 = vld [vmem:[#allocation5 + $0x31a0] sm:$0xff]
    %v1684 = vld [vmem:[#allocation5 + $0x31a8] sm:$0xff]
    %v1685 = vld [vmem:[#allocation5 + $0x31b0] sm:$0xff]
    %v1686 = vld [vmem:[#allocation5 + $0x31b8] sm:$0xff]
    %v1687 = vld [vmem:[#allocation5 + $0x31c0] sm:$0xff]
    %v1688 = vld [vmem:[#allocation5 + $0x31c8] sm:$0xff]
    %v1689 = vld [vmem:[#allocation5 + $0x31d0] sm:$0xff]
    %v1690 = vld [vmem:[#allocation5 + $0x31d8] sm:$0xff]
    %v1691 = vld [vmem:[#allocation5 + $0x31e0] sm:$0xff]
    %v1692 = vld [vmem:[#allocation5 + $0x31e8] sm:$0xff]
    %v1693 = vld [vmem:[#allocation5 + $0x31f0] sm:$0xff]
    %v1694 = vld [vmem:[#allocation5 + $0x31f8] sm:$0xff]
    %v1695 = vld [vmem:[#allocation5 + $0x3200] sm:$0xff]
    %v1696 = vld [vmem:[#allocation5 + $0x3208] sm:$0xff]
    %v1697 = vld [vmem:[#allocation5 + $0x3210] sm:$0xff]
    %v1698 = vld [vmem:[#allocation5 + $0x3218] sm:$0xff]
    %v1699 = vld [vmem:[#allocation5 + $0x3220] sm:$0xff]
    %v1700 = vld [vmem:[#allocation5 + $0x3228] sm:$0xff]
    %v1701 = vld [vmem:[#allocation5 + $0x3230] sm:$0xff]
    %v1702 = vld [vmem:[#allocation5 + $0x3238] sm:$0xff]
    %v1703 = vld [vmem:[#allocation5 + $0x3240] sm:$0xff]
    %v1704 = vld [vmem:[#allocation5 + $0x3248] sm:$0xff]
    %v1705 = vld [vmem:[#allocation5 + $0x3250] sm:$0xff]
    %v1706 = vld [vmem:[#allocation5 + $0x3258] sm:$0xff]
    %v1707 = vld [vmem:[#allocation5 + $0x3260] sm:$0xff]
    %v1708 = vld [vmem:[#allocation5 + $0x3268] sm:$0xff]
    %v1709 = vld [vmem:[#allocation5 + $0x3270] sm:$0xff]
    %v1710 = vld [vmem:[#allocation5 + $0x3278] sm:$0xff]
    %v1711 = vld [vmem:[#allocation5 + $0x3280] sm:$0xff]
    %v1712 = vld [vmem:[#allocation5 + $0x3288] sm:$0xff]
    %v1713 = vld [vmem:[#allocation5 + $0x3290] sm:$0xff]
    %v1714 = vld [vmem:[#allocation5 + $0x3298] sm:$0xff]
    %v1715 = vld [vmem:[#allocation5 + $0x32a0] sm:$0xff]
    %v1716 = vld [vmem:[#allocation5 + $0x32a8] sm:$0xff]
    %v1717 = vld [vmem:[#allocation5 + $0x32b0] sm:$0xff]
    %v1718 = vld [vmem:[#allocation5 + $0x32b8] sm:$0xff]
    %v1719 = vld [vmem:[#allocation5 + $0x32c0] sm:$0xff]
    %v1720 = vld [vmem:[#allocation5 + $0x32c8] sm:$0xff]
    %v1721 = vld [vmem:[#allocation5 + $0x32d0] sm:$0xff]
    %v1722 = vld [vmem:[#allocation5 + $0x32d8] sm:$0xff]
    %v1723 = vld [vmem:[#allocation5 + $0x32e0] sm:$0xff]
    %v1724 = vld [vmem:[#allocation5 + $0x32e8] sm:$0xff]
    %v1725 = vld [vmem:[#allocation5 + $0x32f0] sm:$0xff]
    %v1726 = vld [vmem:[#allocation5 + $0x32f8] sm:$0xff]
    %v1727 = vld [vmem:[#allocation5 + $0x3300] sm:$0xff]
    %v1728 = vld [vmem:[#allocation5 + $0x3308] sm:$0xff]
    %v1729 = vld [vmem:[#allocation5 + $0x3310] sm:$0xff]
    %v1730 = vld [vmem:[#allocation5 + $0x3318] sm:$0xff]
    %v1731 = vld [vmem:[#allocation5 + $0x3320] sm:$0xff]
    %v1732 = vld [vmem:[#allocation5 + $0x3328] sm:$0xff]
    %v1733 = vld [vmem:[#allocation5 + $0x3330] sm:$0xff]
    %v1734 = vld [vmem:[#allocation5 + $0x3338] sm:$0xff]
    %v1735 = vld [vmem:[#allocation5 + $0x3340] sm:$0xff]
    %v1736 = vld [vmem:[#allocation5 + $0x3348] sm:$0xff]
    %v1737 = vld [vmem:[#allocation5 + $0x3350] sm:$0xff]
    %v1738 = vld [vmem:[#allocation5 + $0x3358] sm:$0xff]
    %v1739 = vld [vmem:[#allocation5 + $0x3360] sm:$0xff]
    %v1740 = vld [vmem:[#allocation5 + $0x3368] sm:$0xff]
    %v1741 = vld [vmem:[#allocation5 + $0x3370] sm:$0xff]
    %v1742 = vld [vmem:[#allocation5 + $0x3378] sm:$0xff]
    %v1743 = vld [vmem:[#allocation5 + $0x3380] sm:$0xff]
    %v1744 = vld [vmem:[#allocation5 + $0x3388] sm:$0xff]
    %v1745 = vld [vmem:[#allocation5 + $0x3390] sm:$0xff]
    %v1746 = vld [vmem:[#allocation5 + $0x3398] sm:$0xff]
    %v1747 = vld [vmem:[#allocation5 + $0x33a0] sm:$0xff]
    %v1748 = vld [vmem:[#allocation5 + $0x33a8] sm:$0xff]
    %v1749 = vld [vmem:[#allocation5 + $0x33b0] sm:$0xff]
    %v1750 = vld [vmem:[#allocation5 + $0x33b8] sm:$0xff]
    %v1751 = vld [vmem:[#allocation5 + $0x33c0] sm:$0xff]
    %v1752 = vld [vmem:[#allocation5 + $0x33c8] sm:$0xff]
    %v1753 = vld [vmem:[#allocation5 + $0x33d0] sm:$0xff]
    %v1754 = vld [vmem:[#allocation5 + $0x33d8] sm:$0xff]
    %v1755 = vld [vmem:[#allocation5 + $0x33e0] sm:$0xff]
    %v1756 = vld [vmem:[#allocation5 + $0x33e8] sm:$0xff]
    %v1757 = vld [vmem:[#allocation5 + $0x33f0] sm:$0xff]
    %v1758 = vld [vmem:[#allocation5 + $0x33f8] sm:$0xff]
    %v1759 = vld [vmem:[#allocation5 + $0x3400] sm:$0xff]
    %v1760 = vld [vmem:[#allocation5 + $0x3408] sm:$0xff]
    %v1761 = vld [vmem:[#allocation5 + $0x3410] sm:$0xff]
    %v1762 = vld [vmem:[#allocation5 + $0x3418] sm:$0xff]
    %v1763 = vld [vmem:[#allocation5 + $0x3420] sm:$0xff]
    %v1764 = vld [vmem:[#allocation5 + $0x3428] sm:$0xff]
    %v1765 = vld [vmem:[#allocation5 + $0x3430] sm:$0xff]
    %v1766 = vld [vmem:[#allocation5 + $0x3438] sm:$0xff]
    %v1767 = vld [vmem:[#allocation5 + $0x3440] sm:$0xff]
    %v1768 = vld [vmem:[#allocation5 + $0x3448] sm:$0xff]
    %v1769 = vld [vmem:[#allocation5 + $0x3450] sm:$0xff]
    %v1770 = vld [vmem:[#allocation5 + $0x3458] sm:$0xff]
    %v1771 = vld [vmem:[#allocation5 + $0x3460] sm:$0xff]
    %v1772 = vld [vmem:[#allocation5 + $0x3468] sm:$0xff]
    %v1773 = vld [vmem:[#allocation5 + $0x3470] sm:$0xff]
    %v1774 = vld [vmem:[#allocation5 + $0x3478] sm:$0xff]
    %v1775 = vld [vmem:[#allocation5 + $0x3480] sm:$0xff]
    %v1776 = vld [vmem:[#allocation5 + $0x3488] sm:$0xff]
    %v1777 = vld [vmem:[#allocation5 + $0x3490] sm:$0xff]
    %v1778 = vld [vmem:[#allocation5 + $0x3498] sm:$0xff]
    %v1779 = vld [vmem:[#allocation5 + $0x34a0] sm:$0xff]
    %v1780 = vld [vmem:[#allocation5 + $0x34a8] sm:$0xff]
    %v1781 = vld [vmem:[#allocation5 + $0x34b0] sm:$0xff]
    %v1782 = vld [vmem:[#allocation5 + $0x34b8] sm:$0xff]
    %v1783 = vld [vmem:[#allocation5 + $0x34c0] sm:$0xff]
    %v1784 = vld [vmem:[#allocation5 + $0x34c8] sm:$0xff]
    %v1785 = vld [vmem:[#allocation5 + $0x34d0] sm:$0xff]
    %v1786 = vld [vmem:[#allocation5 + $0x34d8] sm:$0xff]
    %v1787 = vld [vmem:[#allocation5 + $0x34e0] sm:$0xff]
    %v1788 = vld [vmem:[#allocation5 + $0x34e8] sm:$0xff]
    %v1789 = vld [vmem:[#allocation5 + $0x34f0] sm:$0xff]
    %v1790 = vld [vmem:[#allocation5 + $0x34f8] sm:$0xff]
    %v1791 = vld [vmem:[#allocation5 + $0x3500] sm:$0xff]
    %v1792 = vld [vmem:[#allocation5 + $0x3508] sm:$0xff]
    %v1793 = vld [vmem:[#allocation5 + $0x3510] sm:$0xff]
    %v1794 = vld [vmem:[#allocation5 + $0x3518] sm:$0xff]
    %v1795 = vld [vmem:[#allocation5 + $0x3520] sm:$0xff]
    %v1796 = vld [vmem:[#allocation5 + $0x3528] sm:$0xff]
    %v1797 = vld [vmem:[#allocation5 + $0x3530] sm:$0xff]
    %v1798 = vld [vmem:[#allocation5 + $0x3538] sm:$0xff]
    %v1799 = vld [vmem:[#allocation5 + $0x3540] sm:$0xff]
    %v1800 = vld [vmem:[#allocation5 + $0x3548] sm:$0xff]
    %v1801 = vld [vmem:[#allocation5 + $0x3550] sm:$0xff]
    %v1802 = vld [vmem:[#allocation5 + $0x3558] sm:$0xff]
    %v1803 = vld [vmem:[#allocation5 + $0x3560] sm:$0xff]
    %v1804 = vld [vmem:[#allocation5 + $0x3568] sm:$0xff]
    %v1805 = vld [vmem:[#allocation5 + $0x3570] sm:$0xff]
    %v1806 = vld [vmem:[#allocation5 + $0x3578] sm:$0xff]
    %v1807 = vld [vmem:[#allocation5 + $0x3580] sm:$0xff]
    %v1808 = vld [vmem:[#allocation5 + $0x3588] sm:$0xff]
    %v1809 = vld [vmem:[#allocation5 + $0x3590] sm:$0xff]
    %v1810 = vld [vmem:[#allocation5 + $0x3598] sm:$0xff]
    %v1811 = vld [vmem:[#allocation5 + $0x35a0] sm:$0xff]
    %v1812 = vld [vmem:[#allocation5 + $0x35a8] sm:$0xff]
    %v1813 = vld [vmem:[#allocation5 + $0x35b0] sm:$0xff]
    %v1814 = vld [vmem:[#allocation5 + $0x35b8] sm:$0xff]
    %v1815 = vld [vmem:[#allocation5 + $0x35c0] sm:$0xff]
    %v1816 = vld [vmem:[#allocation5 + $0x35c8] sm:$0xff]
    %v1817 = vld [vmem:[#allocation5 + $0x35d0] sm:$0xff]
    %v1818 = vld [vmem:[#allocation5 + $0x35d8] sm:$0xff]
    %v1819 = vld [vmem:[#allocation5 + $0x35e0] sm:$0xff]
    %v1820 = vld [vmem:[#allocation5 + $0x35e8] sm:$0xff]
    %v1821 = vld [vmem:[#allocation5 + $0x35f0] sm:$0xff]
    %v1822 = vld [vmem:[#allocation5 + $0x35f8] sm:$0xff]
    %v1823 = vld [vmem:[#allocation5 + $0x3600] sm:$0xff]
    %v1824 = vld [vmem:[#allocation5 + $0x3608] sm:$0xff]
    %v1825 = vld [vmem:[#allocation5 + $0x3610] sm:$0xff]
    %v1826 = vld [vmem:[#allocation5 + $0x3618] sm:$0xff]
    %v1827 = vld [vmem:[#allocation5 + $0x3620] sm:$0xff]
    %v1828 = vld [vmem:[#allocation5 + $0x3628] sm:$0xff]
    %v1829 = vld [vmem:[#allocation5 + $0x3630] sm:$0xff]
    %v1830 = vld [vmem:[#allocation5 + $0x3638] sm:$0xff]
    %v1831 = vld [vmem:[#allocation5 + $0x3640] sm:$0xff]
    %v1832 = vld [vmem:[#allocation5 + $0x3648] sm:$0xff]
    %v1833 = vld [vmem:[#allocation5 + $0x3650] sm:$0xff]
    %v1834 = vld [vmem:[#allocation5 + $0x3658] sm:$0xff]
    %v1835 = vld [vmem:[#allocation5 + $0x3660] sm:$0xff]
    %v1836 = vld [vmem:[#allocation5 + $0x3668] sm:$0xff]
    %v1837 = vld [vmem:[#allocation5 + $0x3670] sm:$0xff]
    %v1838 = vld [vmem:[#allocation5 + $0x3678] sm:$0xff]
    %v1839 = vld [vmem:[#allocation5 + $0x3680] sm:$0xff]
    %v1840 = vld [vmem:[#allocation5 + $0x3688] sm:$0xff]
    %v1841 = vld [vmem:[#allocation5 + $0x3690] sm:$0xff]
    %v1842 = vld [vmem:[#allocation5 + $0x3698] sm:$0xff]
    %v1843 = vld [vmem:[#allocation5 + $0x36a0] sm:$0xff]
    %v1844 = vld [vmem:[#allocation5 + $0x36a8] sm:$0xff]
    %v1845 = vld [vmem:[#allocation5 + $0x36b0] sm:$0xff]
    %v1846 = vld [vmem:[#allocation5 + $0x36b8] sm:$0xff]
    %v1847 = vld [vmem:[#allocation5 + $0x36c0] sm:$0xff]
    %v1848 = vld [vmem:[#allocation5 + $0x36c8] sm:$0xff]
    %v1849 = vld [vmem:[#allocation5 + $0x36d0] sm:$0xff]
    %v1850 = vld [vmem:[#allocation5 + $0x36d8] sm:$0xff]
    %v1851 = vld [vmem:[#allocation5 + $0x36e0] sm:$0xff]
    %v1852 = vld [vmem:[#allocation5 + $0x36e8] sm:$0xff]
    %v1853 = vld [vmem:[#allocation5 + $0x36f0] sm:$0xff]
    %v1854 = vld [vmem:[#allocation5 + $0x36f8] sm:$0xff]
    %v1855 = vld [vmem:[#allocation5 + $0x3700] sm:$0xff]
    %v1856 = vld [vmem:[#allocation5 + $0x3708] sm:$0xff]
    %v1857 = vld [vmem:[#allocation5 + $0x3710] sm:$0xff]
    %v1858 = vld [vmem:[#allocation5 + $0x3718] sm:$0xff]
    %v1859 = vld [vmem:[#allocation5 + $0x3720] sm:$0xff]
    %v1860 = vld [vmem:[#allocation5 + $0x3728] sm:$0xff]
    %v1861 = vld [vmem:[#allocation5 + $0x3730] sm:$0xff]
    %v1862 = vld [vmem:[#allocation5 + $0x3738] sm:$0xff]
    %v1863 = vld [vmem:[#allocation5 + $0x3740] sm:$0xff]
    %v1864 = vld [vmem:[#allocation5 + $0x3748] sm:$0xff]
    %v1865 = vld [vmem:[#allocation5 + $0x3750] sm:$0xff]
    %v1866 = vld [vmem:[#allocation5 + $0x3758] sm:$0xff]
    %v1867 = vld [vmem:[#allocation5 + $0x3760] sm:$0xff]
    %v1868 = vld [vmem:[#allocation5 + $0x3768] sm:$0xff]
    %v1869 = vld [vmem:[#allocation5 + $0x3770] sm:$0xff]
    %v1870 = vld [vmem:[#allocation5 + $0x3778] sm:$0xff]
    %v1871 = vld [vmem:[#allocation5 + $0x3780] sm:$0xff]
    %v1872 = vld [vmem:[#allocation5 + $0x3788] sm:$0xff]
    %v1873 = vld [vmem:[#allocation5 + $0x3790] sm:$0xff]
    %v1874 = vld [vmem:[#allocation5 + $0x3798] sm:$0xff]
    %v1875 = vld [vmem:[#allocation5 + $0x37a0] sm:$0xff]
    %v1876 = vld [vmem:[#allocation5 + $0x37a8] sm:$0xff]
    %v1877 = vld [vmem:[#allocation5 + $0x37b0] sm:$0xff]
    %v1878 = vld [vmem:[#allocation5 + $0x37b8] sm:$0xff]
    %v1879 = vld [vmem:[#allocation5 + $0x37c0] sm:$0xff]
    %v1880 = vld [vmem:[#allocation5 + $0x37c8] sm:$0xff]
    %v1881 = vld [vmem:[#allocation5 + $0x37d0] sm:$0xff]
    %v1882 = vld [vmem:[#allocation5 + $0x37d8] sm:$0xff]
    %v1883 = vld [vmem:[#allocation5 + $0x37e0] sm:$0xff]
    %v1884 = vld [vmem:[#allocation5 + $0x37e8] sm:$0xff]
    %v1885 = vld [vmem:[#allocation5 + $0x37f0] sm:$0xff]
    %v1886 = vld [vmem:[#allocation5 + $0x37f8] sm:$0xff]
    %v1887 = vld [vmem:[#allocation5 + $0x3800] sm:$0xff]
    %v1888 = vld [vmem:[#allocation5 + $0x3808] sm:$0xff]
    %v1889 = vld [vmem:[#allocation5 + $0x3810] sm:$0xff]
    %v1890 = vld [vmem:[#allocation5 + $0x3818] sm:$0xff]
    %v1891 = vld [vmem:[#allocation5 + $0x3820] sm:$0xff]
    %v1892 = vld [vmem:[#allocation5 + $0x3828] sm:$0xff]
    %v1893 = vld [vmem:[#allocation5 + $0x3830] sm:$0xff]
    %v1894 = vld [vmem:[#allocation5 + $0x3838] sm:$0xff]
    %v1895 = vld [vmem:[#allocation5 + $0x3840] sm:$0xff]
    %v1896 = vld [vmem:[#allocation5 + $0x3848] sm:$0xff]
    %v1897 = vld [vmem:[#allocation5 + $0x3850] sm:$0xff]
    %v1898 = vld [vmem:[#allocation5 + $0x3858] sm:$0xff]
    %v1899 = vld [vmem:[#allocation5 + $0x3860] sm:$0xff]
    %v1900 = vld [vmem:[#allocation5 + $0x3868] sm:$0xff]
    %v1901 = vld [vmem:[#allocation5 + $0x3870] sm:$0xff]
    %v1902 = vld [vmem:[#allocation5 + $0x3878] sm:$0xff]
    %v1903 = vld [vmem:[#allocation5 + $0x3880] sm:$0xff]
    %v1904 = vld [vmem:[#allocation5 + $0x3888] sm:$0xff]
    %v1905 = vld [vmem:[#allocation5 + $0x3890] sm:$0xff]
    %v1906 = vld [vmem:[#allocation5 + $0x3898] sm:$0xff]
    %v1907 = vld [vmem:[#allocation5 + $0x38a0] sm:$0xff]
    %v1908 = vld [vmem:[#allocation5 + $0x38a8] sm:$0xff]
    %v1909 = vld [vmem:[#allocation5 + $0x38b0] sm:$0xff]
    %v1910 = vld [vmem:[#allocation5 + $0x38b8] sm:$0xff]
    %v1911 = vld [vmem:[#allocation5 + $0x38c0] sm:$0xff]
    %v1912 = vld [vmem:[#allocation5 + $0x38c8] sm:$0xff]
    %v1913 = vld [vmem:[#allocation5 + $0x38d0] sm:$0xff]
    %v1914 = vld [vmem:[#allocation5 + $0x38d8] sm:$0xff]
    %v1915 = vld [vmem:[#allocation5 + $0x38e0] sm:$0xff]
    %v1916 = vld [vmem:[#allocation5 + $0x38e8] sm:$0xff]
    %v1917 = vld [vmem:[#allocation5 + $0x38f0] sm:$0xff]
    %v1918 = vld [vmem:[#allocation5 + $0x38f8] sm:$0xff]
    %v1919 = vld [vmem:[#allocation5 + $0x3900] sm:$0xff]
    %v1920 = vld [vmem:[#allocation5 + $0x3908] sm:$0xff]
    %v1921 = vld [vmem:[#allocation5 + $0x3910] sm:$0xff]
    %v1922 = vld [vmem:[#allocation5 + $0x3918] sm:$0xff]
    %v1923 = vld [vmem:[#allocation5 + $0x3920] sm:$0xff]
    %v1924 = vld [vmem:[#allocation5 + $0x3928] sm:$0xff]
    %v1925 = vld [vmem:[#allocation5 + $0x3930] sm:$0xff]
    %v1926 = vld [vmem:[#allocation5 + $0x3938] sm:$0xff]
    %v1927 = vld [vmem:[#allocation5 + $0x3940] sm:$0xff]
    %v1928 = vld [vmem:[#allocation5 + $0x3948] sm:$0xff]
    %v1929 = vld [vmem:[#allocation5 + $0x3950] sm:$0xff]
    %v1930 = vld [vmem:[#allocation5 + $0x3958] sm:$0xff]
    %v1931 = vld [vmem:[#allocation5 + $0x3960] sm:$0xff]
    %v1932 = vld [vmem:[#allocation5 + $0x3968] sm:$0xff]
    %v1933 = vld [vmem:[#allocation5 + $0x3970] sm:$0xff]
    %v1934 = vld [vmem:[#allocation5 + $0x3978] sm:$0xff]
    %v1935 = vld [vmem:[#allocation5 + $0x3980] sm:$0xff]
    %v1936 = vld [vmem:[#allocation5 + $0x3988] sm:$0xff]
    %v1937 = vld [vmem:[#allocation5 + $0x3990] sm:$0xff]
    %v1938 = vld [vmem:[#allocation5 + $0x3998] sm:$0xff]
    %v1939 = vld [vmem:[#allocation5 + $0x39a0] sm:$0xff]
    %v1940 = vld [vmem:[#allocation5 + $0x39a8] sm:$0xff]
    %v1941 = vld [vmem:[#allocation5 + $0x39b0] sm:$0xff]
    %v1942 = vld [vmem:[#allocation5 + $0x39b8] sm:$0xff]
    %v1943 = vld [vmem:[#allocation5 + $0x39c0] sm:$0xff]
    %v1944 = vld [vmem:[#allocation5 + $0x39c8] sm:$0xff]
    %v1945 = vld [vmem:[#allocation5 + $0x39d0] sm:$0xff]
    %v1946 = vld [vmem:[#allocation5 + $0x39d8] sm:$0xff]
    %v1947 = vld [vmem:[#allocation5 + $0x39e0] sm:$0xff]
    %v1948 = vld [vmem:[#allocation5 + $0x39e8] sm:$0xff]
    %v1949 = vld [vmem:[#allocation5 + $0x39f0] sm:$0xff]
    %v1950 = vld [vmem:[#allocation5 + $0x39f8] sm:$0xff]
    %v1951 = vld [vmem:[#allocation5 + $0x3a00] sm:$0xff]
    %v1952 = vld [vmem:[#allocation5 + $0x3a08] sm:$0xff]
    %v1953 = vld [vmem:[#allocation5 + $0x3a10] sm:$0xff]
    %v1954 = vld [vmem:[#allocation5 + $0x3a18] sm:$0xff]
    %v1955 = vld [vmem:[#allocation5 + $0x3a20] sm:$0xff]
    %v1956 = vld [vmem:[#allocation5 + $0x3a28] sm:$0xff]
    %v1957 = vld [vmem:[#allocation5 + $0x3a30] sm:$0xff]
    %v1958 = vld [vmem:[#allocation5 + $0x3a38] sm:$0xff]
    %v1959 = vld [vmem:[#allocation5 + $0x3a40] sm:$0xff]
    %v1960 = vld [vmem:[#allocation5 + $0x3a48] sm:$0xff]
    %v1961 = vld [vmem:[#allocation5 + $0x3a50] sm:$0xff]
    %v1962 = vld [vmem:[#allocation5 + $0x3a58] sm:$0xff]
    %v1963 = vld [vmem:[#allocation5 + $0x3a60] sm:$0xff]
    %v1964 = vld [vmem:[#allocation5 + $0x3a68] sm:$0xff]
    %v1965 = vld [vmem:[#allocation5 + $0x3a70] sm:$0xff]
    %v1966 = vld [vmem:[#allocation5 + $0x3a78] sm:$0xff]
    %v1967 = vld [vmem:[#allocation5 + $0x3a80] sm:$0xff]
    %v1968 = vld [vmem:[#allocation5 + $0x3a88] sm:$0xff]
    %v1969 = vld [vmem:[#allocation5 + $0x3a90] sm:$0xff]
    %v1970 = vld [vmem:[#allocation5 + $0x3a98] sm:$0xff]
    %v1971 = vld [vmem:[#allocation5 + $0x3aa0] sm:$0xff]
    %v1972 = vld [vmem:[#allocation5 + $0x3aa8] sm:$0xff]
    %v1973 = vld [vmem:[#allocation5 + $0x3ab0] sm:$0xff]
    %v1974 = vld [vmem:[#allocation5 + $0x3ab8] sm:$0xff]
    %v1975 = vld [vmem:[#allocation5 + $0x3ac0] sm:$0xff]
    %v1976 = vld [vmem:[#allocation5 + $0x3ac8] sm:$0xff]
    %v1977 = vld [vmem:[#allocation5 + $0x3ad0] sm:$0xff]
    %v1978 = vld [vmem:[#allocation5 + $0x3ad8] sm:$0xff]
    %v1979 = vld [vmem:[#allocation5 + $0x3ae0] sm:$0xff]
    %v1980 = vld [vmem:[#allocation5 + $0x3ae8] sm:$0xff]
    %v1981 = vld [vmem:[#allocation5 + $0x3af0] sm:$0xff]
    %v1982 = vld [vmem:[#allocation5 + $0x3af8] sm:$0xff]
    %v1983 = vld [vmem:[#allocation5 + $0x3b00] sm:$0xff]
    %v1984 = vld [vmem:[#allocation5 + $0x3b08] sm:$0xff]
    %v1985 = vld [vmem:[#allocation5 + $0x3b10] sm:$0xff]
    %v1986 = vld [vmem:[#allocation5 + $0x3b18] sm:$0xff]
    %v1987 = vld [vmem:[#allocation5 + $0x3b20] sm:$0xff]
    %v1988 = vld [vmem:[#allocation5 + $0x3b28] sm:$0xff]
    %v1989 = vld [vmem:[#allocation5 + $0x3b30] sm:$0xff]
    %v1990 = vld [vmem:[#allocation5 + $0x3b38] sm:$0xff]
    %v1991 = vld [vmem:[#allocation5 + $0x3b40] sm:$0xff]
    %v1992 = vld [vmem:[#allocation5 + $0x3b48] sm:$0xff]
    %v1993 = vld [vmem:[#allocation5 + $0x3b50] sm:$0xff]
    %v1994 = vld [vmem:[#allocation5 + $0x3b58] sm:$0xff]
    %v1995 = vld [vmem:[#allocation5 + $0x3b60] sm:$0xff]
    %v1996 = vld [vmem:[#allocation5 + $0x3b68] sm:$0xff]
    %v1997 = vld [vmem:[#allocation5 + $0x3b70] sm:$0xff]
    %v1998 = vld [vmem:[#allocation5 + $0x3b78] sm:$0xff]
    %v1999 = vld [vmem:[#allocation5 + $0x3b80] sm:$0xff]
    %v2000 = vld [vmem:[#allocation5 + $0x3b88] sm:$0xff]
    %v2001 = vld [vmem:[#allocation5 + $0x3b90] sm:$0xff]
    %v2002 = vld [vmem:[#allocation5 + $0x3b98] sm:$0xff]
    %v2003 = vld [vmem:[#allocation5 + $0x3ba0] sm:$0xff]
    %v2004 = vld [vmem:[#allocation5 + $0x3ba8] sm:$0xff]
    %v2005 = vld [vmem:[#allocation5 + $0x3bb0] sm:$0xff]
    %v2006 = vld [vmem:[#allocation5 + $0x3bb8] sm:$0xff]
    %v2007 = vld [vmem:[#allocation5 + $0x3bc0] sm:$0xff]
    %v2008 = vld [vmem:[#allocation5 + $0x3bc8] sm:$0xff]
    %v2009 = vld [vmem:[#allocation5 + $0x3bd0] sm:$0xff]
    %v2010 = vld [vmem:[#allocation5 + $0x3bd8] sm:$0xff]
    %v2011 = vld [vmem:[#allocation5 + $0x3be0] sm:$0xff]
    %v2012 = vld [vmem:[#allocation5 + $0x3be8] sm:$0xff]
    %v2013 = vld [vmem:[#allocation5 + $0x3bf0] sm:$0xff]
    %v2014 = vld [vmem:[#allocation5 + $0x3bf8] sm:$0xff]
    %v2015 = vld [vmem:[#allocation5 + $0x3c00] sm:$0xff]
    %v2016 = vld [vmem:[#allocation5 + $0x3c08] sm:$0xff]
    %v2017 = vld [vmem:[#allocation5 + $0x3c10] sm:$0xff]
    %v2018 = vld [vmem:[#allocation5 + $0x3c18] sm:$0xff]
    %v2019 = vld [vmem:[#allocation5 + $0x3c20] sm:$0xff]
    %v2020 = vld [vmem:[#allocation5 + $0x3c28] sm:$0xff]
    %v2021 = vld [vmem:[#allocation5 + $0x3c30] sm:$0xff]
    %v2022 = vld [vmem:[#allocation5 + $0x3c38] sm:$0xff]
    %v2023 = vld [vmem:[#allocation5 + $0x3c40] sm:$0xff]
    %v2024 = vld [vmem:[#allocation5 + $0x3c48] sm:$0xff]
    %v2025 = vld [vmem:[#allocation5 + $0x3c50] sm:$0xff]
    %v2026 = vld [vmem:[#allocation5 + $0x3c58] sm:$0xff]
    %v2027 = vld [vmem:[#allocation5 + $0x3c60] sm:$0xff]
    %v2028 = vld [vmem:[#allocation5 + $0x3c68] sm:$0xff]
    %v2029 = vld [vmem:[#allocation5 + $0x3c70] sm:$0xff]
    %v2030 = vld [vmem:[#allocation5 + $0x3c78] sm:$0xff]
    %v2031 = vld [vmem:[#allocation5 + $0x3c80] sm:$0xff]
    %v2032 = vld [vmem:[#allocation5 + $0x3c88] sm:$0xff]
    %v2033 = vld [vmem:[#allocation5 + $0x3c90] sm:$0xff]
    %v2034 = vld [vmem:[#allocation5 + $0x3c98] sm:$0xff]
    %v2035 = vld [vmem:[#allocation5 + $0x3ca0] sm:$0xff]
    %v2036 = vld [vmem:[#allocation5 + $0x3ca8] sm:$0xff]
    %v2037 = vld [vmem:[#allocation5 + $0x3cb0] sm:$0xff]
    %v2038 = vld [vmem:[#allocation5 + $0x3cb8] sm:$0xff]
    %v2039 = vld [vmem:[#allocation5 + $0x3cc0] sm:$0xff]
    %v2040 = vld [vmem:[#allocation5 + $0x3cc8] sm:$0xff]
    %v2041 = vld [vmem:[#allocation5 + $0x3cd0] sm:$0xff]
    %v2042 = vld [vmem:[#allocation5 + $0x3cd8] sm:$0xff]
    %v2043 = vld [vmem:[#allocation5 + $0x3ce0] sm:$0xff]
    %v2044 = vld [vmem:[#allocation5 + $0x3ce8] sm:$0xff]
    %v2045 = vld [vmem:[#allocation5 + $0x3cf0] sm:$0xff]
    %v2046 = vld [vmem:[#allocation5 + $0x3cf8] sm:$0xff]
    %v2047 = vld [vmem:[#allocation5 + $0x3d00] sm:$0xff]
    %v2048 = vld [vmem:[#allocation5 + $0x3d08] sm:$0xff]
    %v2049 = vld [vmem:[#allocation5 + $0x3d10] sm:$0xff]
    %v2050 = vld [vmem:[#allocation5 + $0x3d18] sm:$0xff]
    %v2051 = vld [vmem:[#allocation5 + $0x3d20] sm:$0xff]
    %v2052 = vld [vmem:[#allocation5 + $0x3d28] sm:$0xff]
    %v2053 = vld [vmem:[#allocation5 + $0x3d30] sm:$0xff]
    %v2054 = vld [vmem:[#allocation5 + $0x3d38] sm:$0xff]
    %v2055 = vld [vmem:[#allocation5 + $0x3d40] sm:$0xff]
    %v2056 = vld [vmem:[#allocation5 + $0x3d48] sm:$0xff]
    %v2057 = vld [vmem:[#allocation5 + $0x3d50] sm:$0xff]
    %v2058 = vld [vmem:[#allocation5 + $0x3d58] sm:$0xff]
    %v2059 = vld [vmem:[#allocation5 + $0x3d60] sm:$0xff]
    %v2060 = vld [vmem:[#allocation5 + $0x3d68] sm:$0xff]
    %v2061 = vld [vmem:[#allocation5 + $0x3d70] sm:$0xff]
    %v2062 = vld [vmem:[#allocation5 + $0x3d78] sm:$0xff]
    %v2063 = vld [vmem:[#allocation5 + $0x3d80] sm:$0xff]
    %v2064 = vld [vmem:[#allocation5 + $0x3d88] sm:$0xff]
    %v2065 = vld [vmem:[#allocation5 + $0x3d90] sm:$0xff]
    %v2066 = vld [vmem:[#allocation5 + $0x3d98] sm:$0xff]
    %v2067 = vld [vmem:[#allocation5 + $0x3da0] sm:$0xff]
    %v2068 = vld [vmem:[#allocation5 + $0x3da8] sm:$0xff]
    %v2069 = vld [vmem:[#allocation5 + $0x3db0] sm:$0xff]
    %v2070 = vld [vmem:[#allocation5 + $0x3db8] sm:$0xff]
    %v2071 = vld [vmem:[#allocation5 + $0x3dc0] sm:$0xff]
    %v2072 = vld [vmem:[#allocation5 + $0x3dc8] sm:$0xff]
    %v2073 = vld [vmem:[#allocation5 + $0x3dd0] sm:$0xff]
    %v2074 = vld [vmem:[#allocation5 + $0x3dd8] sm:$0xff]
    %v2075 = vld [vmem:[#allocation5 + $0x3de0] sm:$0xff]
    %v2076 = vld [vmem:[#allocation5 + $0x3de8] sm:$0xff]
    %v2077 = vld [vmem:[#allocation5 + $0x3df0] sm:$0xff]
    %v2078 = vld [vmem:[#allocation5 + $0x3df8] sm:$0xff]
    %v2079 = vld [vmem:[#allocation5 + $0x3e00] sm:$0xff]
    %v2080 = vld [vmem:[#allocation5 + $0x3e08] sm:$0xff]
    %v2081 = vld [vmem:[#allocation5 + $0x3e10] sm:$0xff]
    %v2082 = vld [vmem:[#allocation5 + $0x3e18] sm:$0xff]
    %v2083 = vld [vmem:[#allocation5 + $0x3e20] sm:$0xff]
    %v2084 = vld [vmem:[#allocation5 + $0x3e28] sm:$0xff]
    %v2085 = vld [vmem:[#allocation5 + $0x3e30] sm:$0xff]
    %v2086 = vld [vmem:[#allocation5 + $0x3e38] sm:$0xff]
    %v2087 = vld [vmem:[#allocation5 + $0x3e40] sm:$0xff]
    %v2088 = vld [vmem:[#allocation5 + $0x3e48] sm:$0xff]
    %v2089 = vld [vmem:[#allocation5 + $0x3e50] sm:$0xff]
    %v2090 = vld [vmem:[#allocation5 + $0x3e58] sm:$0xff]
    %v2091 = vld [vmem:[#allocation5 + $0x3e60] sm:$0xff]
    %v2092 = vld [vmem:[#allocation5 + $0x3e68] sm:$0xff]
    %v2093 = vld [vmem:[#allocation5 + $0x3e70] sm:$0xff]
    %v2094 = vld [vmem:[#allocation5 + $0x3e78] sm:$0xff]
    %v2095 = vld [vmem:[#allocation5 + $0x3e80] sm:$0xff]
    %v2096 = vld [vmem:[#allocation5 + $0x3e88] sm:$0xff]
    %v2097 = vld [vmem:[#allocation5 + $0x3e90] sm:$0xff]
    %v2098 = vld [vmem:[#allocation5 + $0x3e98] sm:$0xff]
    %v2099 = vld [vmem:[#allocation5 + $0x3ea0] sm:$0xff]
    %v2100 = vld [vmem:[#allocation5 + $0x3ea8] sm:$0xff]
    %v2101 = vld [vmem:[#allocation5 + $0x3eb0] sm:$0xff]
    %v2102 = vld [vmem:[#allocation5 + $0x3eb8] sm:$0xff]
    %v2103 = vld [vmem:[#allocation5 + $0x3ec0] sm:$0xff]
    %v2104 = vld [vmem:[#allocation5 + $0x3ec8] sm:$0xff]
    %v2105 = vld [vmem:[#allocation5 + $0x3ed0] sm:$0xff]
    %v2106 = vld [vmem:[#allocation5 + $0x3ed8] sm:$0xff]
    %v2107 = vld [vmem:[#allocation5 + $0x3ee0] sm:$0xff]
    %v2108 = vld [vmem:[#allocation5 + $0x3ee8] sm:$0xff]
    %v2109 = vld [vmem:[#allocation5 + $0x3ef0] sm:$0xff]
    %v2110 = vld [vmem:[#allocation5 + $0x3ef8] sm:$0xff]
    %v2111 = vld [vmem:[#allocation5 + $0x3f00] sm:$0xff]
    %v2112 = vld [vmem:[#allocation5 + $0x3f08] sm:$0xff]
    %v2113 = vld [vmem:[#allocation5 + $0x3f10] sm:$0xff]
    %v2114 = vld [vmem:[#allocation5 + $0x3f18] sm:$0xff]
    %v2115 = vld [vmem:[#allocation5 + $0x3f20] sm:$0xff]
    %v2116 = vld [vmem:[#allocation5 + $0x3f28] sm:$0xff]
    %v2117 = vld [vmem:[#allocation5 + $0x3f30] sm:$0xff]
    %v2118 = vld [vmem:[#allocation5 + $0x3f38] sm:$0xff]
    %v2119 = vld [vmem:[#allocation5 + $0x3f40] sm:$0xff]
    %v2120 = vld [vmem:[#allocation5 + $0x3f48] sm:$0xff]
    %v2121 = vld [vmem:[#allocation5 + $0x3f50] sm:$0xff]
    %v2122 = vld [vmem:[#allocation5 + $0x3f58] sm:$0xff]
    %v2123 = vld [vmem:[#allocation5 + $0x3f60] sm:$0xff]
    %v2124 = vld [vmem:[#allocation5 + $0x3f68] sm:$0xff]
    %v2125 = vld [vmem:[#allocation5 + $0x3f70] sm:$0xff]
    %v2126 = vld [vmem:[#allocation5 + $0x3f78] sm:$0xff]
    %v2127 = vld [vmem:[#allocation5 + $0x3f80] sm:$0xff]
    %v2128 = vld [vmem:[#allocation5 + $0x3f88] sm:$0xff]
    %v2129 = vld [vmem:[#allocation5 + $0x3f90] sm:$0xff]
    %v2130 = vld [vmem:[#allocation5 + $0x3f98] sm:$0xff]
    %v2131 = vld [vmem:[#allocation5 + $0x3fa0] sm:$0xff]
    %v2132 = vld [vmem:[#allocation5 + $0x3fa8] sm:$0xff]
    %v2133 = vld [vmem:[#allocation5 + $0x3fb0] sm:$0xff]
    %v2134 = vld [vmem:[#allocation5 + $0x3fb8] sm:$0xff]
    %v2135 = vld [vmem:[#allocation5 + $0x3fc0] sm:$0xff]
    %v2136 = vld [vmem:[#allocation5 + $0x3fc8] sm:$0xff]
    %v2137 = vld [vmem:[#allocation5 + $0x3fd0] sm:$0xff]
    %v2138 = vld [vmem:[#allocation5 + $0x3fd8] sm:$0xff]
    %v2139 = vld [vmem:[#allocation5 + $0x3fe0] sm:$0xff]
    %v2140 = vld [vmem:[#allocation5 + $0x3fe8] sm:$0xff]
    %v2141 = vld [vmem:[#allocation5 + $0x3ff0] sm:$0xff]
    %v2142 = vld [vmem:[#allocation5 + $0x3ff8] sm:$0xff]
    %v2143 = vld [vmem:[#allocation7] sm:$0xff]
    %v2144 = vld [vmem:[#allocation7 + $0x8] sm:$0xff]
    %v2147 = vperm.slane %v2143, 0
    %v2148 = vperm.slane %v2143, 1
    %v2149 = vperm.slane %v2143, 2
    %v2150 = vperm.slane %v2143, 3
    %v2151 = vperm.slane %v2143, 4
    %v2152 = vperm.slane %v2143, 5
    %v2153 = vperm.slane %v2143, 6
    %v2154 = vperm.slane %v2143, 7
    %v2155 = vperm.slane %v2144, 0
    %v2156 = vperm.slane %v2144, 1
    %v2157 = vperm.slane %v2144, 2
    %v2158 = vperm.slane %v2144, 3
    %v2159 = vperm.slane %v2144, 4
    %v2160 = vperm.slane %v2144, 5
    %v2161 = vperm.slane %v2144, 6
    %v2162 = vperm.slane %v2144, 7
    %2181 = vst [vmem:[#allocation1] ss:$4 sm:$0xff] %v93
    %s2182 = scalar_lea.vmem [#allocation1], 32
    %2183 = vst [vmem:[%s2182] ss:$4 sm:$0xff] %v94
    %v2184 = vld.sshfl [vmem:[#allocation1] sm:$0xff pattern:$0x73625140]
    %v2185 = vld.sshfl [vmem:[#allocation1 + $0x8] sm:$0xff pattern:$0x73625140]
    %v2186 = vld.sshfl [vmem:[#allocation1 + $0x10] sm:$0xff pattern:$0x73625140]
    %v2187 = vld.sshfl [vmem:[#allocation1 + $0x18] sm:$0xff pattern:$0x73625140]
    %v2188 = vld.sshfl [vmem:[#allocation1 + $0x20] sm:$0xff pattern:$0x73625140]
    %v2189 = vld.sshfl [vmem:[#allocation1 + $0x28] sm:$0xff pattern:$0x73625140]
    %v2190 = vld.sshfl [vmem:[#allocation1 + $0x30] sm:$0xff pattern:$0x73625140]
    %v2191 = vld.sshfl [vmem:[#allocation1 + $0x38] sm:$0xff pattern:$0x73625140]
    %2200 = vmatpush.msra.mxu0 %v335
    %2201 = vmatpush.msra.mxu0 %v319
    %2202 = vmatpush.msra.mxu0 %v303
    %2203 = vmatpush.msra.mxu0 %v287
    %2204 = vmatpush.msra.mxu0 %v271
    %2205 = vmatpush.msra.mxu0 %v255
    %2206 = vmatpush.msra.mxu0 %v239
    %2207 = vmatpush.msra.mxu0 %v223
    %2208 = vmatpush.msra.mxu0 %v207
    %2209 = vmatpush.msra.mxu0 %v191
    %2210 = vmatpush.msra.mxu0 %v175
    %2211 = vmatpush.msra.mxu0 %v159
    %2212 = vmatpush.msra.mxu0 %v143
    %2213 = vmatpush.msra.mxu0 %v127
    %2214 = vmatpush.msra.mxu0 %v111
    %2215 = vmatpush.msra.mxu0 %v95
    %2216 = vmatmul.f32.gmra.mxu0 %v2184
    %v2217 = vpop.f32.mrf.mxu0
    %v2218 = vadd.f32 %v2147, %v2217
    %2219 = vdwg.mxu0
    %2220 = vmatpush.msra.mxu0 %v591
    %2221 = vmatpush.msra.mxu0 %v575
    %2222 = vmatpush.msra.mxu0 %v559
    %2223 = vmatpush.msra.mxu0 %v543
    %2224 = vmatpush.msra.mxu0 %v527
    %2225 = vmatpush.msra.mxu0 %v511
    %2226 = vmatpush.msra.mxu0 %v495
    %2227 = vmatpush.msra.mxu0 %v479
    %2228 = vmatpush.msra.mxu0 %v463
    %2229 = vmatpush.msra.mxu0 %v447
    %2230 = vmatpush.msra.mxu0 %v431
    %2231 = vmatpush.msra.mxu0 %v415
    %2232 = vmatpush.msra.mxu0 %v399
    %2233 = vmatpush.msra.mxu0 %v383
    %2234 = vmatpush.msra.mxu0 %v367
    %2235 = vmatpush.msra.mxu0 %v351
    %2236 = vmatmul.f32.gmra.mxu0 %v2185
    %v2237 = vpop.f32.mrf.mxu0
    %v2238 = vadd.f32 %v2218, %v2237
    %2239 = vdwg.mxu0
    %2240 = vmatpush.msra.mxu0 %v847
    %2241 = vmatpush.msra.mxu0 %v831
    %2242 = vmatpush.msra.mxu0 %v815
    %2243 = vmatpush.msra.mxu0 %v799
    %2244 = vmatpush.msra.mxu0 %v783
    %2245 = vmatpush.msra.mxu0 %v767
    %2246 = vmatpush.msra.mxu0 %v751
    %2247 = vmatpush.msra.mxu0 %v735
    %2248 = vmatpush.msra.mxu0 %v719
    %2249 = vmatpush.msra.mxu0 %v703
    %2250 = vmatpush.msra.mxu0 %v687
    %2251 = vmatpush.msra.mxu0 %v671
    %2252 = vmatpush.msra.mxu0 %v655
    %2253 = vmatpush.msra.mxu0 %v639
    %2254 = vmatpush.msra.mxu0 %v623
    %2255 = vmatpush.msra.mxu0 %v607
    %2256 = vmatmul.f32.gmra.mxu0 %v2186
    %v2257 = vpop.f32.mrf.mxu0
    %v2258 = vadd.f32 %v2238, %v2257
    %2259 = vdwg.mxu0
    %2260 = vmatpush.msra.mxu0 %v1103
    %2261 = vmatpush.msra.mxu0 %v1087
    %2262 = vmatpush.msra.mxu0 %v1071
    %2263 = vmatpush.msra.mxu0 %v1055
    %2264 = vmatpush.msra.mxu0 %v1039
    %2265 = vmatpush.msra.mxu0 %v1023
    %2266 = vmatpush.msra.mxu0 %v1007
    %2267 = vmatpush.msra.mxu0 %v991
    %2268 = vmatpush.msra.mxu0 %v975
    %2269 = vmatpush.msra.mxu0 %v959
    %2270 = vmatpush.msra.mxu0 %v943
    %2271 = vmatpush.msra.mxu0 %v927
    %2272 = vmatpush.msra.mxu0 %v911
    %2273 = vmatpush.msra.mxu0 %v895
    %2274 = vmatpush.msra.mxu0 %v879
    %2275 = vmatpush.msra.mxu0 %v863
    %2276 = vmatmul.f32.gmra.mxu0 %v2187
    %v2277 = vpop.f32.mrf.mxu0
    %v2278 = vadd.f32 %v2258, %v2277
    %2279 = vdwg.mxu0
    %2280 = vmatpush.msra.mxu0 %v1359
    %2281 = vmatpush.msra.mxu0 %v1343
    %2282 = vmatpush.msra.mxu0 %v1327
    %2283 = vmatpush.msra.mxu0 %v1311
    %2284 = vmatpush.msra.mxu0 %v1295
    %2285 = vmatpush.msra.mxu0 %v1279
    %2286 = vmatpush.msra.mxu0 %v1263
    %2287 = vmatpush.msra.mxu0 %v1247
    %2288 = vmatpush.msra.mxu0 %v1231
    %2289 = vmatpush.msra.mxu0 %v1215
    %2290 = vmatpush.msra.mxu0 %v1199
    %2291 = vmatpush.msra.mxu0 %v1183
    %2292 = vmatpush.msra.mxu0 %v1167
    %2293 = vmatpush.msra.mxu0 %v1151
    %2294 = vmatpush.msra.mxu0 %v1135
    %2295 = vmatpush.msra.mxu0 %v1119
    %2296 = vmatmul.f32.gmra.mxu0 %v2188
    %v2297 = vpop.f32.mrf.mxu0
    %v2298 = vadd.f32 %v2278, %v2297
    %2299 = vdwg.mxu0
    %2300 = vmatpush.msra.mxu0 %v1615
    %2301 = vmatpush.msra.mxu0 %v1599
    %2302 = vmatpush.msra.mxu0 %v1583
    %2303 = vmatpush.msra.mxu0 %v1567
    %2304 = vmatpush.msra.mxu0 %v1551
    %2305 = vmatpush.msra.mxu0 %v1535
    %2306 = vmatpush.msra.mxu0 %v1519
    %2307 = vmatpush.msra.mxu0 %v1503
    %2308 = vmatpush.msra.mxu0 %v1487
    %2309 = vmatpush.msra.mxu0 %v1471
    %2310 = vmatpush.msra.mxu0 %v1455
    %2311 = vmatpush.msra.mxu0 %v1439
    %2312 = vmatpush.msra.mxu0 %v1423
    %2313 = vmatpush.msra.mxu0 %v1407
    %2314 = vmatpush.msra.mxu0 %v1391
    %2315 = vmatpush.msra.mxu0 %v1375
    %2316 = vmatmul.f32.gmra.mxu0 %v2189
    %v2317 = vpop.f32.mrf.mxu0
    %v2318 = vadd.f32 %v2298, %v2317
    %2319 = vdwg.mxu0
    %2320 = vmatpush.msra.mxu0 %v1871
    %2321 = vmatpush.msra.mxu0 %v1855
    %2322 = vmatpush.msra.mxu0 %v1839
    %2323 = vmatpush.msra.mxu0 %v1823
    %2324 = vmatpush.msra.mxu0 %v1807
    %2325 = vmatpush.msra.mxu0 %v1791
    %2326 = vmatpush.msra.mxu0 %v1775
    %2327 = vmatpush.msra.mxu0 %v1759
    %2328 = vmatpush.msra.mxu0 %v1743
    %2329 = vmatpush.msra.mxu0 %v1727
    %2330 = vmatpush.msra.mxu0 %v1711
    %2331 = vmatpush.msra.mxu0 %v1695
    %2332 = vmatpush.msra.mxu0 %v1679
    %2333 = vmatpush.msra.mxu0 %v1663
    %2334 = vmatpush.msra.mxu0 %v1647
    %2335 = vmatpush.msra.mxu0 %v1631
    %2336 = vmatmul.f32.gmra.mxu0 %v2190
    %v2337 = vpop.f32.mrf.mxu0
    %v2338 = vadd.f32 %v2318, %v2337
    %2339 = vdwg.mxu0
    %2340 = vmatpush.msra.mxu0 %v2127
    %2341 = vmatpush.msra.mxu0 %v2111
    %2342 = vmatpush.msra.mxu0 %v2095
    %2343 = vmatpush.msra.mxu0 %v2079
    %2344 = vmatpush.msra.mxu0 %v2063
    %2345 = vmatpush.msra.mxu0 %v2047
    %2346 = vmatpush.msra.mxu0 %v2031
    %2347 = vmatpush.msra.mxu0 %v2015
    %2348 = vmatpush.msra.mxu0 %v1999
    %2349 = vmatpush.msra.mxu0 %v1983
    %2350 = vmatpush.msra.mxu0 %v1967
    %2351 = vmatpush.msra.mxu0 %v1951
    %2352 = vmatpush.msra.mxu0 %v1935
    %2353 = vmatpush.msra.mxu0 %v1919
    %2354 = vmatpush.msra.mxu0 %v1903
    %2355 = vmatpush.msra.mxu0 %v1887
    %2356 = vmatmul.f32.gmra.mxu0 %v2191
    %v2357 = vpop.f32.mrf.mxu0
    %v2358 = vadd.f32 %v2338, %v2357
    %2359 = vdwg.mxu0
    %2360 = vmatpush.msra.mxu0 %v336
    %2361 = vmatpush.msra.mxu0 %v320
    %2362 = vmatpush.msra.mxu0 %v304
    %2363 = vmatpush.msra.mxu0 %v288
    %2364 = vmatpush.msra.mxu0 %v272
    %2365 = vmatpush.msra.mxu0 %v256
    %2366 = vmatpush.msra.mxu0 %v240
    %2367 = vmatpush.msra.mxu0 %v224
    %2368 = vmatpush.msra.mxu0 %v208
    %2369 = vmatpush.msra.mxu0 %v192
    %2370 = vmatpush.msra.mxu0 %v176
    %2371 = vmatpush.msra.mxu0 %v160
    %2372 = vmatpush.msra.mxu0 %v144
    %2373 = vmatpush.msra.mxu0 %v128
    %2374 = vmatpush.msra.mxu0 %v112
    %2375 = vmatpush.msra.mxu0 %v96
    %2376 = vmatmul.f32.gmra.mxu0 %v2184
    %v2377 = vpop.f32.mrf.mxu0
    %v2378 = vadd.f32 %v2148, %v2377
    %2379 = vdwg.mxu0
    %2380 = vmatpush.msra.mxu0 %v592
    %2381 = vmatpush.msra.mxu0 %v576
    %2382 = vmatpush.msra.mxu0 %v560
    %2383 = vmatpush.msra.mxu0 %v544
    %2384 = vmatpush.msra.mxu0 %v528
    %2385 = vmatpush.msra.mxu0 %v512
    %2386 = vmatpush.msra.mxu0 %v496
    %2387 = vmatpush.msra.mxu0 %v480
    %2388 = vmatpush.msra.mxu0 %v464
    %2389 = vmatpush.msra.mxu0 %v448
    %2390 = vmatpush.msra.mxu0 %v432
    %2391 = vmatpush.msra.mxu0 %v416
    %2392 = vmatpush.msra.mxu0 %v400
    %2393 = vmatpush.msra.mxu0 %v384
    %2394 = vmatpush.msra.mxu0 %v368
    %2395 = vmatpush.msra.mxu0 %v352
    %2396 = vmatmul.f32.gmra.mxu0 %v2185
    %v2397 = vpop.f32.mrf.mxu0
    %v2398 = vadd.f32 %v2378, %v2397
    %2399 = vdwg.mxu0
    %2400 = vmatpush.msra.mxu0 %v848
    %2401 = vmatpush.msra.mxu0 %v832
    %2402 = vmatpush.msra.mxu0 %v816
    %2403 = vmatpush.msra.mxu0 %v800
    %2404 = vmatpush.msra.mxu0 %v784
    %2405 = vmatpush.msra.mxu0 %v768
    %2406 = vmatpush.msra.mxu0 %v752
    %2407 = vmatpush.msra.mxu0 %v736
    %2408 = vmatpush.msra.mxu0 %v720
    %2409 = vmatpush.msra.mxu0 %v704
    %2410 = vmatpush.msra.mxu0 %v688
    %2411 = vmatpush.msra.mxu0 %v672
    %2412 = vmatpush.msra.mxu0 %v656
    %2413 = vmatpush.msra.mxu0 %v640
    %2414 = vmatpush.msra.mxu0 %v624
    %2415 = vmatpush.msra.mxu0 %v608
    %2416 = vmatmul.f32.gmra.mxu0 %v2186
    %v2417 = vpop.f32.mrf.mxu0
    %v2418 = vadd.f32 %v2398, %v2417
    %2419 = vdwg.mxu0
    %2420 = vmatpush.msra.mxu0 %v1104
    %2421 = vmatpush.msra.mxu0 %v1088
    %2422 = vmatpush.msra.mxu0 %v1072
    %2423 = vmatpush.msra.mxu0 %v1056
    %2424 = vmatpush.msra.mxu0 %v1040
    %2425 = vmatpush.msra.mxu0 %v1024
    %2426 = vmatpush.msra.mxu0 %v1008
    %2427 = vmatpush.msra.mxu0 %v992
    %2428 = vmatpush.msra.mxu0 %v976
    %2429 = vmatpush.msra.mxu0 %v960
    %2430 = vmatpush.msra.mxu0 %v944
    %2431 = vmatpush.msra.mxu0 %v928
    %2432 = vmatpush.msra.mxu0 %v912
    %2433 = vmatpush.msra.mxu0 %v896
    %2434 = vmatpush.msra.mxu0 %v880
    %2435 = vmatpush.msra.mxu0 %v864
    %2436 = vmatmul.f32.gmra.mxu0 %v2187
    %v2437 = vpop.f32.mrf.mxu0
    %v2438 = vadd.f32 %v2418, %v2437
    %2439 = vdwg.mxu0
    %2440 = vmatpush.msra.mxu0 %v1360
    %2441 = vmatpush.msra.mxu0 %v1344
    %2442 = vmatpush.msra.mxu0 %v1328
    %2443 = vmatpush.msra.mxu0 %v1312
    %2444 = vmatpush.msra.mxu0 %v1296
    %2445 = vmatpush.msra.mxu0 %v1280
    %2446 = vmatpush.msra.mxu0 %v1264
    %2447 = vmatpush.msra.mxu0 %v1248
    %2448 = vmatpush.msra.mxu0 %v1232
    %2449 = vmatpush.msra.mxu0 %v1216
    %2450 = vmatpush.msra.mxu0 %v1200
    %2451 = vmatpush.msra.mxu0 %v1184
    %2452 = vmatpush.msra.mxu0 %v1168
    %2453 = vmatpush.msra.mxu0 %v1152
    %2454 = vmatpush.msra.mxu0 %v1136
    %2455 = vmatpush.msra.mxu0 %v1120
    %2456 = vmatmul.f32.gmra.mxu0 %v2188
    %v2457 = vpop.f32.mrf.mxu0
    %v2458 = vadd.f32 %v2438, %v2457
    %2459 = vdwg.mxu0
    %2460 = vmatpush.msra.mxu0 %v1616
    %2461 = vmatpush.msra.mxu0 %v1600
    %2462 = vmatpush.msra.mxu0 %v1584
    %2463 = vmatpush.msra.mxu0 %v1568
    %2464 = vmatpush.msra.mxu0 %v1552
    %2465 = vmatpush.msra.mxu0 %v1536
    %2466 = vmatpush.msra.mxu0 %v1520
    %2467 = vmatpush.msra.mxu0 %v1504
    %2468 = vmatpush.msra.mxu0 %v1488
    %2469 = vmatpush.msra.mxu0 %v1472
    %2470 = vmatpush.msra.mxu0 %v1456
    %2471 = vmatpush.msra.mxu0 %v1440
    %2472 = vmatpush.msra.mxu0 %v1424
    %2473 = vmatpush.msra.mxu0 %v1408
    %2474 = vmatpush.msra.mxu0 %v1392
    %2475 = vmatpush.msra.mxu0 %v1376
    %2476 = vmatmul.f32.gmra.mxu0 %v2189
    %v2477 = vpop.f32.mrf.mxu0
    %v2478 = vadd.f32 %v2458, %v2477
    %2479 = vdwg.mxu0
    %2480 = vmatpush.msra.mxu0 %v1872
    %2481 = vmatpush.msra.mxu0 %v1856
    %2482 = vmatpush.msra.mxu0 %v1840
    %2483 = vmatpush.msra.mxu0 %v1824
    %2484 = vmatpush.msra.mxu0 %v1808
    %2485 = vmatpush.msra.mxu0 %v1792
    %2486 = vmatpush.msra.mxu0 %v1776
    %2487 = vmatpush.msra.mxu0 %v1760
    %2488 = vmatpush.msra.mxu0 %v1744
    %2489 = vmatpush.msra.mxu0 %v1728
    %2490 = vmatpush.msra.mxu0 %v1712
    %2491 = vmatpush.msra.mxu0 %v1696
    %2492 = vmatpush.msra.mxu0 %v1680
    %2493 = vmatpush.msra.mxu0 %v1664
    %2494 = vmatpush.msra.mxu0 %v1648
    %2495 = vmatpush.msra.mxu0 %v1632
    %2496 = vmatmul.f32.gmra.mxu0 %v2190
    %v2497 = vpop.f32.mrf.mxu0
    %v2498 = vadd.f32 %v2478, %v2497
    %2499 = vdwg.mxu0
    %2500 = vmatpush.msra.mxu0 %v2128
    %2501 = vmatpush.msra.mxu0 %v2112
    %2502 = vmatpush.msra.mxu0 %v2096
    %2503 = vmatpush.msra.mxu0 %v2080
    %2504 = vmatpush.msra.mxu0 %v2064
    %2505 = vmatpush.msra.mxu0 %v2048
    %2506 = vmatpush.msra.mxu0 %v2032
    %2507 = vmatpush.msra.mxu0 %v2016
    %2508 = vmatpush.msra.mxu0 %v2000
    %2509 = vmatpush.msra.mxu0 %v1984
    %2510 = vmatpush.msra.mxu0 %v1968
    %2511 = vmatpush.msra.mxu0 %v1952
    %2512 = vmatpush.msra.mxu0 %v1936
    %2513 = vmatpush.msra.mxu0 %v1920
    %2514 = vmatpush.msra.mxu0 %v1904
    %2515 = vmatpush.msra.mxu0 %v1888
    %2516 = vmatmul.f32.gmra.mxu0 %v2191
    %v2517 = vpop.f32.mrf.mxu0
    %v2518 = vadd.f32 %v2498, %v2517
    %2519 = vdwg.mxu0
    %2520 = vmatpush.msra.mxu0 %v337
    %2521 = vmatpush.msra.mxu0 %v321
    %2522 = vmatpush.msra.mxu0 %v305
    %2523 = vmatpush.msra.mxu0 %v289
    %2524 = vmatpush.msra.mxu0 %v273
    %2525 = vmatpush.msra.mxu0 %v257
    %2526 = vmatpush.msra.mxu0 %v241
    %2527 = vmatpush.msra.mxu0 %v225
    %2528 = vmatpush.msra.mxu0 %v209
    %2529 = vmatpush.msra.mxu0 %v193
    %2530 = vmatpush.msra.mxu0 %v177
    %2531 = vmatpush.msra.mxu0 %v161
    %2532 = vmatpush.msra.mxu0 %v145
    %2533 = vmatpush.msra.mxu0 %v129
    %2534 = vmatpush.msra.mxu0 %v113
    %2535 = vmatpush.msra.mxu0 %v97
    %2536 = vmatmul.f32.gmra.mxu0 %v2184
    %v2537 = vpop.f32.mrf.mxu0
    %v2538 = vadd.f32 %v2149, %v2537
    %2539 = vdwg.mxu0
    %2540 = vmatpush.msra.mxu0 %v593
    %2541 = vmatpush.msra.mxu0 %v577
    %2542 = vmatpush.msra.mxu0 %v561
    %2543 = vmatpush.msra.mxu0 %v545
    %2544 = vmatpush.msra.mxu0 %v529
    %2545 = vmatpush.msra.mxu0 %v513
    %2546 = vmatpush.msra.mxu0 %v497
    %2547 = vmatpush.msra.mxu0 %v481
    %2548 = vmatpush.msra.mxu0 %v465
    %2549 = vmatpush.msra.mxu0 %v449
    %2550 = vmatpush.msra.mxu0 %v433
    %2551 = vmatpush.msra.mxu0 %v417
    %2552 = vmatpush.msra.mxu0 %v401
    %2553 = vmatpush.msra.mxu0 %v385
    %2554 = vmatpush.msra.mxu0 %v369
    %2555 = vmatpush.msra.mxu0 %v353
    %2556 = vmatmul.f32.gmra.mxu0 %v2185
    %v2557 = vpop.f32.mrf.mxu0
    %v2558 = vadd.f32 %v2538, %v2557
    %2559 = vdwg.mxu0
    %2560 = vmatpush.msra.mxu0 %v849
    %2561 = vmatpush.msra.mxu0 %v833
    %2562 = vmatpush.msra.mxu0 %v817
    %2563 = vmatpush.msra.mxu0 %v801
    %2564 = vmatpush.msra.mxu0 %v785
    %2565 = vmatpush.msra.mxu0 %v769
    %2566 = vmatpush.msra.mxu0 %v753
    %2567 = vmatpush.msra.mxu0 %v737
    %2568 = vmatpush.msra.mxu0 %v721
    %2569 = vmatpush.msra.mxu0 %v705
    %2570 = vmatpush.msra.mxu0 %v689
    %2571 = vmatpush.msra.mxu0 %v673
    %2572 = vmatpush.msra.mxu0 %v657
    %2573 = vmatpush.msra.mxu0 %v641
    %2574 = vmatpush.msra.mxu0 %v625
    %2575 = vmatpush.msra.mxu0 %v609
    %2576 = vmatmul.f32.gmra.mxu0 %v2186
    %v2577 = vpop.f32.mrf.mxu0
    %v2578 = vadd.f32 %v2558, %v2577
    %2579 = vdwg.mxu0
    %2580 = vmatpush.msra.mxu0 %v1105
    %2581 = vmatpush.msra.mxu0 %v1089
    %2582 = vmatpush.msra.mxu0 %v1073
    %2583 = vmatpush.msra.mxu0 %v1057
    %2584 = vmatpush.msra.mxu0 %v1041
    %2585 = vmatpush.msra.mxu0 %v1025
    %2586 = vmatpush.msra.mxu0 %v1009
    %2587 = vmatpush.msra.mxu0 %v993
    %2588 = vmatpush.msra.mxu0 %v977
    %2589 = vmatpush.msra.mxu0 %v961
    %2590 = vmatpush.msra.mxu0 %v945
    %2591 = vmatpush.msra.mxu0 %v929
    %2592 = vmatpush.msra.mxu0 %v913
    %2593 = vmatpush.msra.mxu0 %v897
    %2594 = vmatpush.msra.mxu0 %v881
    %2595 = vmatpush.msra.mxu0 %v865
    %2596 = vmatmul.f32.gmra.mxu0 %v2187
    %v2597 = vpop.f32.mrf.mxu0
    %v2598 = vadd.f32 %v2578, %v2597
    %2599 = vdwg.mxu0
    %2600 = vmatpush.msra.mxu0 %v1361
    %2601 = vmatpush.msra.mxu0 %v1345
    %2602 = vmatpush.msra.mxu0 %v1329
    %2603 = vmatpush.msra.mxu0 %v1313
    %2604 = vmatpush.msra.mxu0 %v1297
    %2605 = vmatpush.msra.mxu0 %v1281
    %2606 = vmatpush.msra.mxu0 %v1265
    %2607 = vmatpush.msra.mxu0 %v1249
    %2608 = vmatpush.msra.mxu0 %v1233
    %2609 = vmatpush.msra.mxu0 %v1217
    %2610 = vmatpush.msra.mxu0 %v1201
    %2611 = vmatpush.msra.mxu0 %v1185
    %2612 = vmatpush.msra.mxu0 %v1169
    %2613 = vmatpush.msra.mxu0 %v1153
    %2614 = vmatpush.msra.mxu0 %v1137
    %2615 = vmatpush.msra.mxu0 %v1121
    %2616 = vmatmul.f32.gmra.mxu0 %v2188
    %v2617 = vpop.f32.mrf.mxu0
    %v2618 = vadd.f32 %v2598, %v2617
    %2619 = vdwg.mxu0
    %2620 = vmatpush.msra.mxu0 %v1617
    %2621 = vmatpush.msra.mxu0 %v1601
    %2622 = vmatpush.msra.mxu0 %v1585
    %2623 = vmatpush.msra.mxu0 %v1569
    %2624 = vmatpush.msra.mxu0 %v1553
    %2625 = vmatpush.msra.mxu0 %v1537
    %2626 = vmatpush.msra.mxu0 %v1521
    %2627 = vmatpush.msra.mxu0 %v1505
    %2628 = vmatpush.msra.mxu0 %v1489
    %2629 = vmatpush.msra.mxu0 %v1473
    %2630 = vmatpush.msra.mxu0 %v1457
    %2631 = vmatpush.msra.mxu0 %v1441
    %2632 = vmatpush.msra.mxu0 %v1425
    %2633 = vmatpush.msra.mxu0 %v1409
    %2634 = vmatpush.msra.mxu0 %v1393
    %2635 = vmatpush.msra.mxu0 %v1377
    %2636 = vmatmul.f32.gmra.mxu0 %v2189
    %v2637 = vpop.f32.mrf.mxu0
    %v2638 = vadd.f32 %v2618, %v2637
    %2639 = vdwg.mxu0
    %2640 = vmatpush.msra.mxu0 %v1873
    %2641 = vmatpush.msra.mxu0 %v1857
    %2642 = vmatpush.msra.mxu0 %v1841
    %2643 = vmatpush.msra.mxu0 %v1825
    %2644 = vmatpush.msra.mxu0 %v1809
    %2645 = vmatpush.msra.mxu0 %v1793
    %2646 = vmatpush.msra.mxu0 %v1777
    %2647 = vmatpush.msra.mxu0 %v1761
    %2648 = vmatpush.msra.mxu0 %v1745
    %2649 = vmatpush.msra.mxu0 %v1729
    %2650 = vmatpush.msra.mxu0 %v1713
    %2651 = vmatpush.msra.mxu0 %v1697
    %2652 = vmatpush.msra.mxu0 %v1681
    %2653 = vmatpush.msra.mxu0 %v1665
    %2654 = vmatpush.msra.mxu0 %v1649
    %2655 = vmatpush.msra.mxu0 %v1633
    %2656 = vmatmul.f32.gmra.mxu0 %v2190
    %v2657 = vpop.f32.mrf.mxu0
    %v2658 = vadd.f32 %v2638, %v2657
    %2659 = vdwg.mxu0
    %2660 = vmatpush.msra.mxu0 %v2129
    %2661 = vmatpush.msra.mxu0 %v2113
    %2662 = vmatpush.msra.mxu0 %v2097
    %2663 = vmatpush.msra.mxu0 %v2081
    %2664 = vmatpush.msra.mxu0 %v2065
    %2665 = vmatpush.msra.mxu0 %v2049
    %2666 = vmatpush.msra.mxu0 %v2033
    %2667 = vmatpush.msra.mxu0 %v2017
    %2668 = vmatpush.msra.mxu0 %v2001
    %2669 = vmatpush.msra.mxu0 %v1985
    %2670 = vmatpush.msra.mxu0 %v1969
    %2671 = vmatpush.msra.mxu0 %v1953
    %2672 = vmatpush.msra.mxu0 %v1937
    %2673 = vmatpush.msra.mxu0 %v1921
    %2674 = vmatpush.msra.mxu0 %v1905
    %2675 = vmatpush.msra.mxu0 %v1889
    %2676 = vmatmul.f32.gmra.mxu0 %v2191
    %v2677 = vpop.f32.mrf.mxu0
    %v2678 = vadd.f32 %v2658, %v2677
    %2679 = vdwg.mxu0
    %2680 = vmatpush.msra.mxu0 %v338
    %2681 = vmatpush.msra.mxu0 %v322
    %2682 = vmatpush.msra.mxu0 %v306
    %2683 = vmatpush.msra.mxu0 %v290
    %2684 = vmatpush.msra.mxu0 %v274
    %2685 = vmatpush.msra.mxu0 %v258
    %2686 = vmatpush.msra.mxu0 %v242
    %2687 = vmatpush.msra.mxu0 %v226
    %2688 = vmatpush.msra.mxu0 %v210
    %2689 = vmatpush.msra.mxu0 %v194
    %2690 = vmatpush.msra.mxu0 %v178
    %2691 = vmatpush.msra.mxu0 %v162
    %2692 = vmatpush.msra.mxu0 %v146
    %2693 = vmatpush.msra.mxu0 %v130
    %2694 = vmatpush.msra.mxu0 %v114
    %2695 = vmatpush.msra.mxu0 %v98
    %2696 = vmatmul.f32.gmra.mxu0 %v2184
    %v2697 = vpop.f32.mrf.mxu0
    %v2698 = vadd.f32 %v2150, %v2697
    %2699 = vdwg.mxu0
    %2700 = vmatpush.msra.mxu0 %v594
    %2701 = vmatpush.msra.mxu0 %v578
    %2702 = vmatpush.msra.mxu0 %v562
    %2703 = vmatpush.msra.mxu0 %v546
    %2704 = vmatpush.msra.mxu0 %v530
    %2705 = vmatpush.msra.mxu0 %v514
    %2706 = vmatpush.msra.mxu0 %v498
    %2707 = vmatpush.msra.mxu0 %v482
    %2708 = vmatpush.msra.mxu0 %v466
    %2709 = vmatpush.msra.mxu0 %v450
    %2710 = vmatpush.msra.mxu0 %v434
    %2711 = vmatpush.msra.mxu0 %v418
    %2712 = vmatpush.msra.mxu0 %v402
    %2713 = vmatpush.msra.mxu0 %v386
    %2714 = vmatpush.msra.mxu0 %v370
    %2715 = vmatpush.msra.mxu0 %v354
    %2716 = vmatmul.f32.gmra.mxu0 %v2185
    %v2717 = vpop.f32.mrf.mxu0
    %v2718 = vadd.f32 %v2698, %v2717
    %2719 = vdwg.mxu0
    %2720 = vmatpush.msra.mxu0 %v850
    %2721 = vmatpush.msra.mxu0 %v834
    %2722 = vmatpush.msra.mxu0 %v818
    %2723 = vmatpush.msra.mxu0 %v802
    %2724 = vmatpush.msra.mxu0 %v786
    %2725 = vmatpush.msra.mxu0 %v770
    %2726 = vmatpush.msra.mxu0 %v754
    %2727 = vmatpush.msra.mxu0 %v738
    %2728 = vmatpush.msra.mxu0 %v722
    %2729 = vmatpush.msra.mxu0 %v706
    %2730 = vmatpush.msra.mxu0 %v690
    %2731 = vmatpush.msra.mxu0 %v674
    %2732 = vmatpush.msra.mxu0 %v658
    %2733 = vmatpush.msra.mxu0 %v642
    %2734 = vmatpush.msra.mxu0 %v626
    %2735 = vmatpush.msra.mxu0 %v610
    %2736 = vmatmul.f32.gmra.mxu0 %v2186
    %v2737 = vpop.f32.mrf.mxu0
    %v2738 = vadd.f32 %v2718, %v2737
    %2739 = vdwg.mxu0
    %2740 = vmatpush.msra.mxu0 %v1106
    %2741 = vmatpush.msra.mxu0 %v1090
    %2742 = vmatpush.msra.mxu0 %v1074
    %2743 = vmatpush.msra.mxu0 %v1058
    %2744 = vmatpush.msra.mxu0 %v1042
    %2745 = vmatpush.msra.mxu0 %v1026
    %2746 = vmatpush.msra.mxu0 %v1010
    %2747 = vmatpush.msra.mxu0 %v994
    %2748 = vmatpush.msra.mxu0 %v978
    %2749 = vmatpush.msra.mxu0 %v962
    %2750 = vmatpush.msra.mxu0 %v946
    %2751 = vmatpush.msra.mxu0 %v930
    %2752 = vmatpush.msra.mxu0 %v914
    %2753 = vmatpush.msra.mxu0 %v898
    %2754 = vmatpush.msra.mxu0 %v882
    %2755 = vmatpush.msra.mxu0 %v866
    %2756 = vmatmul.f32.gmra.mxu0 %v2187
    %v2757 = vpop.f32.mrf.mxu0
    %v2758 = vadd.f32 %v2738, %v2757
    %2759 = vdwg.mxu0
    %2760 = vmatpush.msra.mxu0 %v1362
    %2761 = vmatpush.msra.mxu0 %v1346
    %2762 = vmatpush.msra.mxu0 %v1330
    %2763 = vmatpush.msra.mxu0 %v1314
    %2764 = vmatpush.msra.mxu0 %v1298
    %2765 = vmatpush.msra.mxu0 %v1282
    %2766 = vmatpush.msra.mxu0 %v1266
    %2767 = vmatpush.msra.mxu0 %v1250
    %2768 = vmatpush.msra.mxu0 %v1234
    %2769 = vmatpush.msra.mxu0 %v1218
    %2770 = vmatpush.msra.mxu0 %v1202
    %2771 = vmatpush.msra.mxu0 %v1186
    %2772 = vmatpush.msra.mxu0 %v1170
    %2773 = vmatpush.msra.mxu0 %v1154
    %2774 = vmatpush.msra.mxu0 %v1138
    %2775 = vmatpush.msra.mxu0 %v1122
    %2776 = vmatmul.f32.gmra.mxu0 %v2188
    %v2777 = vpop.f32.mrf.mxu0
    %v2778 = vadd.f32 %v2758, %v2777
    %2779 = vdwg.mxu0
    %2780 = vmatpush.msra.mxu0 %v1618
    %2781 = vmatpush.msra.mxu0 %v1602
    %2782 = vmatpush.msra.mxu0 %v1586
    %2783 = vmatpush.msra.mxu0 %v1570
    %2784 = vmatpush.msra.mxu0 %v1554
    %2785 = vmatpush.msra.mxu0 %v1538
    %2786 = vmatpush.msra.mxu0 %v1522
    %2787 = vmatpush.msra.mxu0 %v1506
    %2788 = vmatpush.msra.mxu0 %v1490
    %2789 = vmatpush.msra.mxu0 %v1474
    %2790 = vmatpush.msra.mxu0 %v1458
    %2791 = vmatpush.msra.mxu0 %v1442
    %2792 = vmatpush.msra.mxu0 %v1426
    %2793 = vmatpush.msra.mxu0 %v1410
    %2794 = vmatpush.msra.mxu0 %v1394
    %2795 = vmatpush.msra.mxu0 %v1378
    %2796 = vmatmul.f32.gmra.mxu0 %v2189
    %v2797 = vpop.f32.mrf.mxu0
    %v2798 = vadd.f32 %v2778, %v2797
    %2799 = vdwg.mxu0
    %2800 = vmatpush.msra.mxu0 %v1874
    %2801 = vmatpush.msra.mxu0 %v1858
    %2802 = vmatpush.msra.mxu0 %v1842
    %2803 = vmatpush.msra.mxu0 %v1826
    %2804 = vmatpush.msra.mxu0 %v1810
    %2805 = vmatpush.msra.mxu0 %v1794
    %2806 = vmatpush.msra.mxu0 %v1778
    %2807 = vmatpush.msra.mxu0 %v1762
    %2808 = vmatpush.msra.mxu0 %v1746
    %2809 = vmatpush.msra.mxu0 %v1730
    %2810 = vmatpush.msra.mxu0 %v1714
    %2811 = vmatpush.msra.mxu0 %v1698
    %2812 = vmatpush.msra.mxu0 %v1682
    %2813 = vmatpush.msra.mxu0 %v1666
    %2814 = vmatpush.msra.mxu0 %v1650
    %2815 = vmatpush.msra.mxu0 %v1634
    %2816 = vmatmul.f32.gmra.mxu0 %v2190
    %v2817 = vpop.f32.mrf.mxu0
    %v2818 = vadd.f32 %v2798, %v2817
    %2819 = vdwg.mxu0
    %2820 = vmatpush.msra.mxu0 %v2130
    %2821 = vmatpush.msra.mxu0 %v2114
    %2822 = vmatpush.msra.mxu0 %v2098
    %2823 = vmatpush.msra.mxu0 %v2082
    %2824 = vmatpush.msra.mxu0 %v2066
    %2825 = vmatpush.msra.mxu0 %v2050
    %2826 = vmatpush.msra.mxu0 %v2034
    %2827 = vmatpush.msra.mxu0 %v2018
    %2828 = vmatpush.msra.mxu0 %v2002
    %2829 = vmatpush.msra.mxu0 %v1986
    %2830 = vmatpush.msra.mxu0 %v1970
    %2831 = vmatpush.msra.mxu0 %v1954
    %2832 = vmatpush.msra.mxu0 %v1938
    %2833 = vmatpush.msra.mxu0 %v1922
    %2834 = vmatpush.msra.mxu0 %v1906
    %2835 = vmatpush.msra.mxu0 %v1890
    %2836 = vmatmul.f32.gmra.mxu0 %v2191
    %v2837 = vpop.f32.mrf.mxu0
    %v2838 = vadd.f32 %v2818, %v2837
    %2839 = vdwg.mxu0
    %2840 = vmatpush.msra.mxu0 %v339
    %2841 = vmatpush.msra.mxu0 %v323
    %2842 = vmatpush.msra.mxu0 %v307
    %2843 = vmatpush.msra.mxu0 %v291
    %2844 = vmatpush.msra.mxu0 %v275
    %2845 = vmatpush.msra.mxu0 %v259
    %2846 = vmatpush.msra.mxu0 %v243
    %2847 = vmatpush.msra.mxu0 %v227
    %2848 = vmatpush.msra.mxu0 %v211
    %2849 = vmatpush.msra.mxu0 %v195
    %2850 = vmatpush.msra.mxu0 %v179
    %2851 = vmatpush.msra.mxu0 %v163
    %2852 = vmatpush.msra.mxu0 %v147
    %2853 = vmatpush.msra.mxu0 %v131
    %2854 = vmatpush.msra.mxu0 %v115
    %2855 = vmatpush.msra.mxu0 %v99
    %2856 = vmatmul.f32.gmra.mxu0 %v2184
    %v2857 = vpop.f32.mrf.mxu0
    %v2858 = vadd.f32 %v2151, %v2857
    %2859 = vdwg.mxu0
    %2860 = vmatpush.msra.mxu0 %v595
    %2861 = vmatpush.msra.mxu0 %v579
    %2862 = vmatpush.msra.mxu0 %v563
    %2863 = vmatpush.msra.mxu0 %v547
    %2864 = vmatpush.msra.mxu0 %v531
    %2865 = vmatpush.msra.mxu0 %v515
    %2866 = vmatpush.msra.mxu0 %v499
    %2867 = vmatpush.msra.mxu0 %v483
    %2868 = vmatpush.msra.mxu0 %v467
    %2869 = vmatpush.msra.mxu0 %v451
    %2870 = vmatpush.msra.mxu0 %v435
    %2871 = vmatpush.msra.mxu0 %v419
    %2872 = vmatpush.msra.mxu0 %v403
    %2873 = vmatpush.msra.mxu0 %v387
    %2874 = vmatpush.msra.mxu0 %v371
    %2875 = vmatpush.msra.mxu0 %v355
    %2876 = vmatmul.f32.gmra.mxu0 %v2185
    %v2877 = vpop.f32.mrf.mxu0
    %v2878 = vadd.f32 %v2858, %v2877
    %2879 = vdwg.mxu0
    %2880 = vmatpush.msra.mxu0 %v851
    %2881 = vmatpush.msra.mxu0 %v835
    %2882 = vmatpush.msra.mxu0 %v819
    %2883 = vmatpush.msra.mxu0 %v803
    %2884 = vmatpush.msra.mxu0 %v787
    %2885 = vmatpush.msra.mxu0 %v771
    %2886 = vmatpush.msra.mxu0 %v755
    %2887 = vmatpush.msra.mxu0 %v739
    %2888 = vmatpush.msra.mxu0 %v723
    %2889 = vmatpush.msra.mxu0 %v707
    %2890 = vmatpush.msra.mxu0 %v691
    %2891 = vmatpush.msra.mxu0 %v675
    %2892 = vmatpush.msra.mxu0 %v659
    %2893 = vmatpush.msra.mxu0 %v643
    %2894 = vmatpush.msra.mxu0 %v627
    %2895 = vmatpush.msra.mxu0 %v611
    %2896 = vmatmul.f32.gmra.mxu0 %v2186
    %v2897 = vpop.f32.mrf.mxu0
    %v2898 = vadd.f32 %v2878, %v2897
    %2899 = vdwg.mxu0
    %2900 = vmatpush.msra.mxu0 %v1107
    %2901 = vmatpush.msra.mxu0 %v1091
    %2902 = vmatpush.msra.mxu0 %v1075
    %2903 = vmatpush.msra.mxu0 %v1059
    %2904 = vmatpush.msra.mxu0 %v1043
    %2905 = vmatpush.msra.mxu0 %v1027
    %2906 = vmatpush.msra.mxu0 %v1011
    %2907 = vmatpush.msra.mxu0 %v995
    %2908 = vmatpush.msra.mxu0 %v979
    %2909 = vmatpush.msra.mxu0 %v963
    %2910 = vmatpush.msra.mxu0 %v947
    %2911 = vmatpush.msra.mxu0 %v931
    %2912 = vmatpush.msra.mxu0 %v915
    %2913 = vmatpush.msra.mxu0 %v899
    %2914 = vmatpush.msra.mxu0 %v883
    %2915 = vmatpush.msra.mxu0 %v867
    %2916 = vmatmul.f32.gmra.mxu0 %v2187
    %v2917 = vpop.f32.mrf.mxu0
    %v2918 = vadd.f32 %v2898, %v2917
    %2919 = vdwg.mxu0
    %2920 = vmatpush.msra.mxu0 %v1363
    %2921 = vmatpush.msra.mxu0 %v1347
    %2922 = vmatpush.msra.mxu0 %v1331
    %2923 = vmatpush.msra.mxu0 %v1315
    %2924 = vmatpush.msra.mxu0 %v1299
    %2925 = vmatpush.msra.mxu0 %v1283
    %2926 = vmatpush.msra.mxu0 %v1267
    %2927 = vmatpush.msra.mxu0 %v1251
    %2928 = vmatpush.msra.mxu0 %v1235
    %2929 = vmatpush.msra.mxu0 %v1219
    %2930 = vmatpush.msra.mxu0 %v1203
    %2931 = vmatpush.msra.mxu0 %v1187
    %2932 = vmatpush.msra.mxu0 %v1171
    %2933 = vmatpush.msra.mxu0 %v1155
    %2934 = vmatpush.msra.mxu0 %v1139
    %2935 = vmatpush.msra.mxu0 %v1123
    %2936 = vmatmul.f32.gmra.mxu0 %v2188
    %v2937 = vpop.f32.mrf.mxu0
    %v2938 = vadd.f32 %v2918, %v2937
    %2939 = vdwg.mxu0
    %2940 = vmatpush.msra.mxu0 %v1619
    %2941 = vmatpush.msra.mxu0 %v1603
    %2942 = vmatpush.msra.mxu0 %v1587
    %2943 = vmatpush.msra.mxu0 %v1571
    %2944 = vmatpush.msra.mxu0 %v1555
    %2945 = vmatpush.msra.mxu0 %v1539
    %2946 = vmatpush.msra.mxu0 %v1523
    %2947 = vmatpush.msra.mxu0 %v1507
    %2948 = vmatpush.msra.mxu0 %v1491
    %2949 = vmatpush.msra.mxu0 %v1475
    %2950 = vmatpush.msra.mxu0 %v1459
    %2951 = vmatpush.msra.mxu0 %v1443
    %2952 = vmatpush.msra.mxu0 %v1427
    %2953 = vmatpush.msra.mxu0 %v1411
    %2954 = vmatpush.msra.mxu0 %v1395
    %2955 = vmatpush.msra.mxu0 %v1379
    %2956 = vmatmul.f32.gmra.mxu0 %v2189
    %v2957 = vpop.f32.mrf.mxu0
    %v2958 = vadd.f32 %v2938, %v2957
    %2959 = vdwg.mxu0
    %2960 = vmatpush.msra.mxu0 %v1875
    %2961 = vmatpush.msra.mxu0 %v1859
    %2962 = vmatpush.msra.mxu0 %v1843
    %2963 = vmatpush.msra.mxu0 %v1827
    %2964 = vmatpush.msra.mxu0 %v1811
    %2965 = vmatpush.msra.mxu0 %v1795
    %2966 = vmatpush.msra.mxu0 %v1779
    %2967 = vmatpush.msra.mxu0 %v1763
    %2968 = vmatpush.msra.mxu0 %v1747
    %2969 = vmatpush.msra.mxu0 %v1731
    %2970 = vmatpush.msra.mxu0 %v1715
    %2971 = vmatpush.msra.mxu0 %v1699
    %2972 = vmatpush.msra.mxu0 %v1683
    %2973 = vmatpush.msra.mxu0 %v1667
    %2974 = vmatpush.msra.mxu0 %v1651
    %2975 = vmatpush.msra.mxu0 %v1635
    %2976 = vmatmul.f32.gmra.mxu0 %v2190
    %v2977 = vpop.f32.mrf.mxu0
    %v2978 = vadd.f32 %v2958, %v2977
    %2979 = vdwg.mxu0
    %2980 = vmatpush.msra.mxu0 %v2131
    %2981 = vmatpush.msra.mxu0 %v2115
    %2982 = vmatpush.msra.mxu0 %v2099
    %2983 = vmatpush.msra.mxu0 %v2083
    %2984 = vmatpush.msra.mxu0 %v2067
    %2985 = vmatpush.msra.mxu0 %v2051
    %2986 = vmatpush.msra.mxu0 %v2035
    %2987 = vmatpush.msra.mxu0 %v2019
    %2988 = vmatpush.msra.mxu0 %v2003
    %2989 = vmatpush.msra.mxu0 %v1987
    %2990 = vmatpush.msra.mxu0 %v1971
    %2991 = vmatpush.msra.mxu0 %v1955
    %2992 = vmatpush.msra.mxu0 %v1939
    %2993 = vmatpush.msra.mxu0 %v1923
    %2994 = vmatpush.msra.mxu0 %v1907
    %2995 = vmatpush.msra.mxu0 %v1891
    %2996 = vmatmul.f32.gmra.mxu0 %v2191
    %v2997 = vpop.f32.mrf.mxu0
    %v2998 = vadd.f32 %v2978, %v2997
    %2999 = vdwg.mxu0
    %3000 = vmatpush.msra.mxu0 %v340
    %3001 = vmatpush.msra.mxu0 %v324
    %3002 = vmatpush.msra.mxu0 %v308
    %3003 = vmatpush.msra.mxu0 %v292
    %3004 = vmatpush.msra.mxu0 %v276
    %3005 = vmatpush.msra.mxu0 %v260
    %3006 = vmatpush.msra.mxu0 %v244
    %3007 = vmatpush.msra.mxu0 %v228
    %3008 = vmatpush.msra.mxu0 %v212
    %3009 = vmatpush.msra.mxu0 %v196
    %3010 = vmatpush.msra.mxu0 %v180
    %3011 = vmatpush.msra.mxu0 %v164
    %3012 = vmatpush.msra.mxu0 %v148
    %3013 = vmatpush.msra.mxu0 %v132
    %3014 = vmatpush.msra.mxu0 %v116
    %3015 = vmatpush.msra.mxu0 %v100
    %3016 = vmatmul.f32.gmra.mxu0 %v2184
    %v3017 = vpop.f32.mrf.mxu0
    %v3018 = vadd.f32 %v2152, %v3017
    %3019 = vdwg.mxu0
    %3020 = vmatpush.msra.mxu0 %v596
    %3021 = vmatpush.msra.mxu0 %v580
    %3022 = vmatpush.msra.mxu0 %v564
    %3023 = vmatpush.msra.mxu0 %v548
    %3024 = vmatpush.msra.mxu0 %v532
    %3025 = vmatpush.msra.mxu0 %v516
    %3026 = vmatpush.msra.mxu0 %v500
    %3027 = vmatpush.msra.mxu0 %v484
    %3028 = vmatpush.msra.mxu0 %v468
    %3029 = vmatpush.msra.mxu0 %v452
    %3030 = vmatpush.msra.mxu0 %v436
    %3031 = vmatpush.msra.mxu0 %v420
    %3032 = vmatpush.msra.mxu0 %v404
    %3033 = vmatpush.msra.mxu0 %v388
    %3034 = vmatpush.msra.mxu0 %v372
    %3035 = vmatpush.msra.mxu0 %v356
    %3036 = vmatmul.f32.gmra.mxu0 %v2185
    %v3037 = vpop.f32.mrf.mxu0
    %v3038 = vadd.f32 %v3018, %v3037
    %3039 = vdwg.mxu0
    %3040 = vmatpush.msra.mxu0 %v852
    %3041 = vmatpush.msra.mxu0 %v836
    %3042 = vmatpush.msra.mxu0 %v820
    %3043 = vmatpush.msra.mxu0 %v804
    %3044 = vmatpush.msra.mxu0 %v788
    %3045 = vmatpush.msra.mxu0 %v772
    %3046 = vmatpush.msra.mxu0 %v756
    %3047 = vmatpush.msra.mxu0 %v740
    %3048 = vmatpush.msra.mxu0 %v724
    %3049 = vmatpush.msra.mxu0 %v708
    %3050 = vmatpush.msra.mxu0 %v692
    %3051 = vmatpush.msra.mxu0 %v676
    %3052 = vmatpush.msra.mxu0 %v660
    %3053 = vmatpush.msra.mxu0 %v644
    %3054 = vmatpush.msra.mxu0 %v628
    %3055 = vmatpush.msra.mxu0 %v612
    %3056 = vmatmul.f32.gmra.mxu0 %v2186
    %v3057 = vpop.f32.mrf.mxu0
    %v3058 = vadd.f32 %v3038, %v3057
    %3059 = vdwg.mxu0
    %3060 = vmatpush.msra.mxu0 %v1108
    %3061 = vmatpush.msra.mxu0 %v1092
    %3062 = vmatpush.msra.mxu0 %v1076
    %3063 = vmatpush.msra.mxu0 %v1060
    %3064 = vmatpush.msra.mxu0 %v1044
    %3065 = vmatpush.msra.mxu0 %v1028
    %3066 = vmatpush.msra.mxu0 %v1012
    %3067 = vmatpush.msra.mxu0 %v996
    %3068 = vmatpush.msra.mxu0 %v980
    %3069 = vmatpush.msra.mxu0 %v964
    %3070 = vmatpush.msra.mxu0 %v948
    %3071 = vmatpush.msra.mxu0 %v932
    %3072 = vmatpush.msra.mxu0 %v916
    %3073 = vmatpush.msra.mxu0 %v900
    %3074 = vmatpush.msra.mxu0 %v884
    %3075 = vmatpush.msra.mxu0 %v868
    %3076 = vmatmul.f32.gmra.mxu0 %v2187
    %v3077 = vpop.f32.mrf.mxu0
    %v3078 = vadd.f32 %v3058, %v3077
    %3079 = vdwg.mxu0
    %3080 = vmatpush.msra.mxu0 %v1364
    %3081 = vmatpush.msra.mxu0 %v1348
    %3082 = vmatpush.msra.mxu0 %v1332
    %3083 = vmatpush.msra.mxu0 %v1316
    %3084 = vmatpush.msra.mxu0 %v1300
    %3085 = vmatpush.msra.mxu0 %v1284
    %3086 = vmatpush.msra.mxu0 %v1268
    %3087 = vmatpush.msra.mxu0 %v1252
    %3088 = vmatpush.msra.mxu0 %v1236
    %3089 = vmatpush.msra.mxu0 %v1220
    %3090 = vmatpush.msra.mxu0 %v1204
    %3091 = vmatpush.msra.mxu0 %v1188
    %3092 = vmatpush.msra.mxu0 %v1172
    %3093 = vmatpush.msra.mxu0 %v1156
    %3094 = vmatpush.msra.mxu0 %v1140
    %3095 = vmatpush.msra.mxu0 %v1124
    %3096 = vmatmul.f32.gmra.mxu0 %v2188
    %v3097 = vpop.f32.mrf.mxu0
    %v3098 = vadd.f32 %v3078, %v3097
    %3099 = vdwg.mxu0
    %3100 = vmatpush.msra.mxu0 %v1620
    %3101 = vmatpush.msra.mxu0 %v1604
    %3102 = vmatpush.msra.mxu0 %v1588
    %3103 = vmatpush.msra.mxu0 %v1572
    %3104 = vmatpush.msra.mxu0 %v1556
    %3105 = vmatpush.msra.mxu0 %v1540
    %3106 = vmatpush.msra.mxu0 %v1524
    %3107 = vmatpush.msra.mxu0 %v1508
    %3108 = vmatpush.msra.mxu0 %v1492
    %3109 = vmatpush.msra.mxu0 %v1476
    %3110 = vmatpush.msra.mxu0 %v1460
    %3111 = vmatpush.msra.mxu0 %v1444
    %3112 = vmatpush.msra.mxu0 %v1428
    %3113 = vmatpush.msra.mxu0 %v1412
    %3114 = vmatpush.msra.mxu0 %v1396
    %3115 = vmatpush.msra.mxu0 %v1380
    %3116 = vmatmul.f32.gmra.mxu0 %v2189
    %v3117 = vpop.f32.mrf.mxu0
    %v3118 = vadd.f32 %v3098, %v3117
    %3119 = vdwg.mxu0
    %3120 = vmatpush.msra.mxu0 %v1876
    %3121 = vmatpush.msra.mxu0 %v1860
    %3122 = vmatpush.msra.mxu0 %v1844
    %3123 = vmatpush.msra.mxu0 %v1828
    %3124 = vmatpush.msra.mxu0 %v1812
    %3125 = vmatpush.msra.mxu0 %v1796
    %3126 = vmatpush.msra.mxu0 %v1780
    %3127 = vmatpush.msra.mxu0 %v1764
    %3128 = vmatpush.msra.mxu0 %v1748
    %3129 = vmatpush.msra.mxu0 %v1732
    %3130 = vmatpush.msra.mxu0 %v1716
    %3131 = vmatpush.msra.mxu0 %v1700
    %3132 = vmatpush.msra.mxu0 %v1684
    %3133 = vmatpush.msra.mxu0 %v1668
    %3134 = vmatpush.msra.mxu0 %v1652
    %3135 = vmatpush.msra.mxu0 %v1636
    %3136 = vmatmul.f32.gmra.mxu0 %v2190
    %v3137 = vpop.f32.mrf.mxu0
    %v3138 = vadd.f32 %v3118, %v3137
    %3139 = vdwg.mxu0
    %3140 = vmatpush.msra.mxu0 %v2132
    %3141 = vmatpush.msra.mxu0 %v2116
    %3142 = vmatpush.msra.mxu0 %v2100
    %3143 = vmatpush.msra.mxu0 %v2084
    %3144 = vmatpush.msra.mxu0 %v2068
    %3145 = vmatpush.msra.mxu0 %v2052
    %3146 = vmatpush.msra.mxu0 %v2036
    %3147 = vmatpush.msra.mxu0 %v2020
    %3148 = vmatpush.msra.mxu0 %v2004
    %3149 = vmatpush.msra.mxu0 %v1988
    %3150 = vmatpush.msra.mxu0 %v1972
    %3151 = vmatpush.msra.mxu0 %v1956
    %3152 = vmatpush.msra.mxu0 %v1940
    %3153 = vmatpush.msra.mxu0 %v1924
    %3154 = vmatpush.msra.mxu0 %v1908
    %3155 = vmatpush.msra.mxu0 %v1892
    %3156 = vmatmul.f32.gmra.mxu0 %v2191
    %v3157 = vpop.f32.mrf.mxu0
    %v3158 = vadd.f32 %v3138, %v3157
    %3159 = vdwg.mxu0
    %3160 = vmatpush.msra.mxu0 %v341
    %3161 = vmatpush.msra.mxu0 %v325
    %3162 = vmatpush.msra.mxu0 %v309
    %3163 = vmatpush.msra.mxu0 %v293
    %3164 = vmatpush.msra.mxu0 %v277
    %3165 = vmatpush.msra.mxu0 %v261
    %3166 = vmatpush.msra.mxu0 %v245
    %3167 = vmatpush.msra.mxu0 %v229
    %3168 = vmatpush.msra.mxu0 %v213
    %3169 = vmatpush.msra.mxu0 %v197
    %3170 = vmatpush.msra.mxu0 %v181
    %3171 = vmatpush.msra.mxu0 %v165
    %3172 = vmatpush.msra.mxu0 %v149
    %3173 = vmatpush.msra.mxu0 %v133
    %3174 = vmatpush.msra.mxu0 %v117
    %3175 = vmatpush.msra.mxu0 %v101
    %3176 = vmatmul.f32.gmra.mxu0 %v2184
    %v3177 = vpop.f32.mrf.mxu0
    %v3178 = vadd.f32 %v2153, %v3177
    %3179 = vdwg.mxu0
    %3180 = vmatpush.msra.mxu0 %v597
    %3181 = vmatpush.msra.mxu0 %v581
    %3182 = vmatpush.msra.mxu0 %v565
    %3183 = vmatpush.msra.mxu0 %v549
    %3184 = vmatpush.msra.mxu0 %v533
    %3185 = vmatpush.msra.mxu0 %v517
    %3186 = vmatpush.msra.mxu0 %v501
    %3187 = vmatpush.msra.mxu0 %v485
    %3188 = vmatpush.msra.mxu0 %v469
    %3189 = vmatpush.msra.mxu0 %v453
    %3190 = vmatpush.msra.mxu0 %v437
    %3191 = vmatpush.msra.mxu0 %v421
    %3192 = vmatpush.msra.mxu0 %v405
    %3193 = vmatpush.msra.mxu0 %v389
    %3194 = vmatpush.msra.mxu0 %v373
    %3195 = vmatpush.msra.mxu0 %v357
    %3196 = vmatmul.f32.gmra.mxu0 %v2185
    %v3197 = vpop.f32.mrf.mxu0
    %v3198 = vadd.f32 %v3178, %v3197
    %3199 = vdwg.mxu0
    %3200 = vmatpush.msra.mxu0 %v853
    %3201 = vmatpush.msra.mxu0 %v837
    %3202 = vmatpush.msra.mxu0 %v821
    %3203 = vmatpush.msra.mxu0 %v805
    %3204 = vmatpush.msra.mxu0 %v789
    %3205 = vmatpush.msra.mxu0 %v773
    %3206 = vmatpush.msra.mxu0 %v757
    %3207 = vmatpush.msra.mxu0 %v741
    %3208 = vmatpush.msra.mxu0 %v725
    %3209 = vmatpush.msra.mxu0 %v709
    %3210 = vmatpush.msra.mxu0 %v693
    %3211 = vmatpush.msra.mxu0 %v677
    %3212 = vmatpush.msra.mxu0 %v661
    %3213 = vmatpush.msra.mxu0 %v645
    %3214 = vmatpush.msra.mxu0 %v629
    %3215 = vmatpush.msra.mxu0 %v613
    %3216 = vmatmul.f32.gmra.mxu0 %v2186
    %v3217 = vpop.f32.mrf.mxu0
    %v3218 = vadd.f32 %v3198, %v3217
    %3219 = vdwg.mxu0
    %3220 = vmatpush.msra.mxu0 %v1109
    %3221 = vmatpush.msra.mxu0 %v1093
    %3222 = vmatpush.msra.mxu0 %v1077
    %3223 = vmatpush.msra.mxu0 %v1061
    %3224 = vmatpush.msra.mxu0 %v1045
    %3225 = vmatpush.msra.mxu0 %v1029
    %3226 = vmatpush.msra.mxu0 %v1013
    %3227 = vmatpush.msra.mxu0 %v997
    %3228 = vmatpush.msra.mxu0 %v981
    %3229 = vmatpush.msra.mxu0 %v965
    %3230 = vmatpush.msra.mxu0 %v949
    %3231 = vmatpush.msra.mxu0 %v933
    %3232 = vmatpush.msra.mxu0 %v917
    %3233 = vmatpush.msra.mxu0 %v901
    %3234 = vmatpush.msra.mxu0 %v885
    %3235 = vmatpush.msra.mxu0 %v869
    %3236 = vmatmul.f32.gmra.mxu0 %v2187
    %v3237 = vpop.f32.mrf.mxu0
    %v3238 = vadd.f32 %v3218, %v3237
    %3239 = vdwg.mxu0
    %3240 = vmatpush.msra.mxu0 %v1365
    %3241 = vmatpush.msra.mxu0 %v1349
    %3242 = vmatpush.msra.mxu0 %v1333
    %3243 = vmatpush.msra.mxu0 %v1317
    %3244 = vmatpush.msra.mxu0 %v1301
    %3245 = vmatpush.msra.mxu0 %v1285
    %3246 = vmatpush.msra.mxu0 %v1269
    %3247 = vmatpush.msra.mxu0 %v1253
    %3248 = vmatpush.msra.mxu0 %v1237
    %3249 = vmatpush.msra.mxu0 %v1221
    %3250 = vmatpush.msra.mxu0 %v1205
    %3251 = vmatpush.msra.mxu0 %v1189
    %3252 = vmatpush.msra.mxu0 %v1173
    %3253 = vmatpush.msra.mxu0 %v1157
    %3254 = vmatpush.msra.mxu0 %v1141
    %3255 = vmatpush.msra.mxu0 %v1125
    %3256 = vmatmul.f32.gmra.mxu0 %v2188
    %v3257 = vpop.f32.mrf.mxu0
    %v3258 = vadd.f32 %v3238, %v3257
    %3259 = vdwg.mxu0
    %3260 = vmatpush.msra.mxu0 %v1621
    %3261 = vmatpush.msra.mxu0 %v1605
    %3262 = vmatpush.msra.mxu0 %v1589
    %3263 = vmatpush.msra.mxu0 %v1573
    %3264 = vmatpush.msra.mxu0 %v1557
    %3265 = vmatpush.msra.mxu0 %v1541
    %3266 = vmatpush.msra.mxu0 %v1525
    %3267 = vmatpush.msra.mxu0 %v1509
    %3268 = vmatpush.msra.mxu0 %v1493
    %3269 = vmatpush.msra.mxu0 %v1477
    %3270 = vmatpush.msra.mxu0 %v1461
    %3271 = vmatpush.msra.mxu0 %v1445
    %3272 = vmatpush.msra.mxu0 %v1429
    %3273 = vmatpush.msra.mxu0 %v1413
    %3274 = vmatpush.msra.mxu0 %v1397
    %3275 = vmatpush.msra.mxu0 %v1381
    %3276 = vmatmul.f32.gmra.mxu0 %v2189
    %v3277 = vpop.f32.mrf.mxu0
    %v3278 = vadd.f32 %v3258, %v3277
    %3279 = vdwg.mxu0
    %3280 = vmatpush.msra.mxu0 %v1877
    %3281 = vmatpush.msra.mxu0 %v1861
    %3282 = vmatpush.msra.mxu0 %v1845
    %3283 = vmatpush.msra.mxu0 %v1829
    %3284 = vmatpush.msra.mxu0 %v1813
    %3285 = vmatpush.msra.mxu0 %v1797
    %3286 = vmatpush.msra.mxu0 %v1781
    %3287 = vmatpush.msra.mxu0 %v1765
    %3288 = vmatpush.msra.mxu0 %v1749
    %3289 = vmatpush.msra.mxu0 %v1733
    %3290 = vmatpush.msra.mxu0 %v1717
    %3291 = vmatpush.msra.mxu0 %v1701
    %3292 = vmatpush.msra.mxu0 %v1685
    %3293 = vmatpush.msra.mxu0 %v1669
    %3294 = vmatpush.msra.mxu0 %v1653
    %3295 = vmatpush.msra.mxu0 %v1637
    %3296 = vmatmul.f32.gmra.mxu0 %v2190
    %v3297 = vpop.f32.mrf.mxu0
    %v3298 = vadd.f32 %v3278, %v3297
    %3299 = vdwg.mxu0
    %3300 = vmatpush.msra.mxu0 %v2133
    %3301 = vmatpush.msra.mxu0 %v2117
    %3302 = vmatpush.msra.mxu0 %v2101
    %3303 = vmatpush.msra.mxu0 %v2085
    %3304 = vmatpush.msra.mxu0 %v2069
    %3305 = vmatpush.msra.mxu0 %v2053
    %3306 = vmatpush.msra.mxu0 %v2037
    %3307 = vmatpush.msra.mxu0 %v2021
    %3308 = vmatpush.msra.mxu0 %v2005
    %3309 = vmatpush.msra.mxu0 %v1989
    %3310 = vmatpush.msra.mxu0 %v1973
    %3311 = vmatpush.msra.mxu0 %v1957
    %3312 = vmatpush.msra.mxu0 %v1941
    %3313 = vmatpush.msra.mxu0 %v1925
    %3314 = vmatpush.msra.mxu0 %v1909
    %3315 = vmatpush.msra.mxu0 %v1893
    %3316 = vmatmul.f32.gmra.mxu0 %v2191
    %v3317 = vpop.f32.mrf.mxu0
    %v3318 = vadd.f32 %v3298, %v3317
    %3319 = vdwg.mxu0
    %3320 = vmatpush.msra.mxu0 %v342
    %3321 = vmatpush.msra.mxu0 %v326
    %3322 = vmatpush.msra.mxu0 %v310
    %3323 = vmatpush.msra.mxu0 %v294
    %3324 = vmatpush.msra.mxu0 %v278
    %3325 = vmatpush.msra.mxu0 %v262
    %3326 = vmatpush.msra.mxu0 %v246
    %3327 = vmatpush.msra.mxu0 %v230
    %3328 = vmatpush.msra.mxu0 %v214
    %3329 = vmatpush.msra.mxu0 %v198
    %3330 = vmatpush.msra.mxu0 %v182
    %3331 = vmatpush.msra.mxu0 %v166
    %3332 = vmatpush.msra.mxu0 %v150
    %3333 = vmatpush.msra.mxu0 %v134
    %3334 = vmatpush.msra.mxu0 %v118
    %3335 = vmatpush.msra.mxu0 %v102
    %3336 = vmatmul.f32.gmra.mxu0 %v2184
    %v3337 = vpop.f32.mrf.mxu0
    %v3338 = vadd.f32 %v2154, %v3337
    %3339 = vdwg.mxu0
    %3340 = vmatpush.msra.mxu0 %v598
    %3341 = vmatpush.msra.mxu0 %v582
    %3342 = vmatpush.msra.mxu0 %v566
    %3343 = vmatpush.msra.mxu0 %v550
    %3344 = vmatpush.msra.mxu0 %v534
    %3345 = vmatpush.msra.mxu0 %v518
    %3346 = vmatpush.msra.mxu0 %v502
    %3347 = vmatpush.msra.mxu0 %v486
    %3348 = vmatpush.msra.mxu0 %v470
    %3349 = vmatpush.msra.mxu0 %v454
    %3350 = vmatpush.msra.mxu0 %v438
    %3351 = vmatpush.msra.mxu0 %v422
    %3352 = vmatpush.msra.mxu0 %v406
    %3353 = vmatpush.msra.mxu0 %v390
    %3354 = vmatpush.msra.mxu0 %v374
    %3355 = vmatpush.msra.mxu0 %v358
    %3356 = vmatmul.f32.gmra.mxu0 %v2185
    %v3357 = vpop.f32.mrf.mxu0
    %v3358 = vadd.f32 %v3338, %v3357
    %3359 = vdwg.mxu0
    %3360 = vmatpush.msra.mxu0 %v854
    %3361 = vmatpush.msra.mxu0 %v838
    %3362 = vmatpush.msra.mxu0 %v822
    %3363 = vmatpush.msra.mxu0 %v806
    %3364 = vmatpush.msra.mxu0 %v790
    %3365 = vmatpush.msra.mxu0 %v774
    %3366 = vmatpush.msra.mxu0 %v758
    %3367 = vmatpush.msra.mxu0 %v742
    %3368 = vmatpush.msra.mxu0 %v726
    %3369 = vmatpush.msra.mxu0 %v710
    %3370 = vmatpush.msra.mxu0 %v694
    %3371 = vmatpush.msra.mxu0 %v678
    %3372 = vmatpush.msra.mxu0 %v662
    %3373 = vmatpush.msra.mxu0 %v646
    %3374 = vmatpush.msra.mxu0 %v630
    %3375 = vmatpush.msra.mxu0 %v614
    %3376 = vmatmul.f32.gmra.mxu0 %v2186
    %v3377 = vpop.f32.mrf.mxu0
    %v3378 = vadd.f32 %v3358, %v3377
    %3379 = vdwg.mxu0
    %3380 = vmatpush.msra.mxu0 %v1110
    %3381 = vmatpush.msra.mxu0 %v1094
    %3382 = vmatpush.msra.mxu0 %v1078
    %3383 = vmatpush.msra.mxu0 %v1062
    %3384 = vmatpush.msra.mxu0 %v1046
    %3385 = vmatpush.msra.mxu0 %v1030
    %3386 = vmatpush.msra.mxu0 %v1014
    %3387 = vmatpush.msra.mxu0 %v998
    %3388 = vmatpush.msra.mxu0 %v982
    %3389 = vmatpush.msra.mxu0 %v966
    %3390 = vmatpush.msra.mxu0 %v950
    %3391 = vmatpush.msra.mxu0 %v934
    %3392 = vmatpush.msra.mxu0 %v918
    %3393 = vmatpush.msra.mxu0 %v902
    %3394 = vmatpush.msra.mxu0 %v886
    %3395 = vmatpush.msra.mxu0 %v870
    %3396 = vmatmul.f32.gmra.mxu0 %v2187
    %v3397 = vpop.f32.mrf.mxu0
    %v3398 = vadd.f32 %v3378, %v3397
    %3399 = vdwg.mxu0
    %3400 = vmatpush.msra.mxu0 %v1366
    %3401 = vmatpush.msra.mxu0 %v1350
    %3402 = vmatpush.msra.mxu0 %v1334
    %3403 = vmatpush.msra.mxu0 %v1318
    %3404 = vmatpush.msra.mxu0 %v1302
    %3405 = vmatpush.msra.mxu0 %v1286
    %3406 = vmatpush.msra.mxu0 %v1270
    %3407 = vmatpush.msra.mxu0 %v1254
    %3408 = vmatpush.msra.mxu0 %v1238
    %3409 = vmatpush.msra.mxu0 %v1222
    %3410 = vmatpush.msra.mxu0 %v1206
    %3411 = vmatpush.msra.mxu0 %v1190
    %3412 = vmatpush.msra.mxu0 %v1174
    %3413 = vmatpush.msra.mxu0 %v1158
    %3414 = vmatpush.msra.mxu0 %v1142
    %3415 = vmatpush.msra.mxu0 %v1126
    %3416 = vmatmul.f32.gmra.mxu0 %v2188
    %v3417 = vpop.f32.mrf.mxu0
    %v3418 = vadd.f32 %v3398, %v3417
    %3419 = vdwg.mxu0
    %3420 = vmatpush.msra.mxu0 %v1622
    %3421 = vmatpush.msra.mxu0 %v1606
    %3422 = vmatpush.msra.mxu0 %v1590
    %3423 = vmatpush.msra.mxu0 %v1574
    %3424 = vmatpush.msra.mxu0 %v1558
    %3425 = vmatpush.msra.mxu0 %v1542
    %3426 = vmatpush.msra.mxu0 %v1526
    %3427 = vmatpush.msra.mxu0 %v1510
    %3428 = vmatpush.msra.mxu0 %v1494
    %3429 = vmatpush.msra.mxu0 %v1478
    %3430 = vmatpush.msra.mxu0 %v1462
    %3431 = vmatpush.msra.mxu0 %v1446
    %3432 = vmatpush.msra.mxu0 %v1430
    %3433 = vmatpush.msra.mxu0 %v1414
    %3434 = vmatpush.msra.mxu0 %v1398
    %3435 = vmatpush.msra.mxu0 %v1382
    %3436 = vmatmul.f32.gmra.mxu0 %v2189
    %v3437 = vpop.f32.mrf.mxu0
    %v3438 = vadd.f32 %v3418, %v3437
    %3439 = vdwg.mxu0
    %3440 = vmatpush.msra.mxu0 %v1878
    %3441 = vmatpush.msra.mxu0 %v1862
    %3442 = vmatpush.msra.mxu0 %v1846
    %3443 = vmatpush.msra.mxu0 %v1830
    %3444 = vmatpush.msra.mxu0 %v1814
    %3445 = vmatpush.msra.mxu0 %v1798
    %3446 = vmatpush.msra.mxu0 %v1782
    %3447 = vmatpush.msra.mxu0 %v1766
    %3448 = vmatpush.msra.mxu0 %v1750
    %3449 = vmatpush.msra.mxu0 %v1734
    %3450 = vmatpush.msra.mxu0 %v1718
    %3451 = vmatpush.msra.mxu0 %v1702
    %3452 = vmatpush.msra.mxu0 %v1686
    %3453 = vmatpush.msra.mxu0 %v1670
    %3454 = vmatpush.msra.mxu0 %v1654
    %3455 = vmatpush.msra.mxu0 %v1638
    %3456 = vmatmul.f32.gmra.mxu0 %v2190
    %v3457 = vpop.f32.mrf.mxu0
    %v3458 = vadd.f32 %v3438, %v3457
    %3459 = vdwg.mxu0
    %3460 = vmatpush.msra.mxu0 %v2134
    %3461 = vmatpush.msra.mxu0 %v2118
    %3462 = vmatpush.msra.mxu0 %v2102
    %3463 = vmatpush.msra.mxu0 %v2086
    %3464 = vmatpush.msra.mxu0 %v2070
    %3465 = vmatpush.msra.mxu0 %v2054
    %3466 = vmatpush.msra.mxu0 %v2038
    %3467 = vmatpush.msra.mxu0 %v2022
    %3468 = vmatpush.msra.mxu0 %v2006
    %3469 = vmatpush.msra.mxu0 %v1990
    %3470 = vmatpush.msra.mxu0 %v1974
    %3471 = vmatpush.msra.mxu0 %v1958
    %3472 = vmatpush.msra.mxu0 %v1942
    %3473 = vmatpush.msra.mxu0 %v1926
    %3474 = vmatpush.msra.mxu0 %v1910
    %3475 = vmatpush.msra.mxu0 %v1894
    %3476 = vmatmul.f32.gmra.mxu0 %v2191
    %v3477 = vpop.f32.mrf.mxu0
    %v3478 = vadd.f32 %v3458, %v3477
    %3479 = vdwg.mxu0
    %3480 = vmatpush.msra.mxu0 %v343
    %3481 = vmatpush.msra.mxu0 %v327
    %3482 = vmatpush.msra.mxu0 %v311
    %3483 = vmatpush.msra.mxu0 %v295
    %3484 = vmatpush.msra.mxu0 %v279
    %3485 = vmatpush.msra.mxu0 %v263
    %3486 = vmatpush.msra.mxu0 %v247
    %3487 = vmatpush.msra.mxu0 %v231
    %3488 = vmatpush.msra.mxu0 %v215
    %3489 = vmatpush.msra.mxu0 %v199
    %3490 = vmatpush.msra.mxu0 %v183
    %3491 = vmatpush.msra.mxu0 %v167
    %3492 = vmatpush.msra.mxu0 %v151
    %3493 = vmatpush.msra.mxu0 %v135
    %3494 = vmatpush.msra.mxu0 %v119
    %3495 = vmatpush.msra.mxu0 %v103
    %3496 = vmatmul.f32.gmra.mxu0 %v2184
    %v3497 = vpop.f32.mrf.mxu0
    %v3498 = vadd.f32 %v2155, %v3497
    %3499 = vdwg.mxu0
    %3500 = vmatpush.msra.mxu0 %v599
    %3501 = vmatpush.msra.mxu0 %v583
    %3502 = vmatpush.msra.mxu0 %v567
    %3503 = vmatpush.msra.mxu0 %v551
    %3504 = vmatpush.msra.mxu0 %v535
    %3505 = vmatpush.msra.mxu0 %v519
    %3506 = vmatpush.msra.mxu0 %v503
    %3507 = vmatpush.msra.mxu0 %v487
    %3508 = vmatpush.msra.mxu0 %v471
    %3509 = vmatpush.msra.mxu0 %v455
    %3510 = vmatpush.msra.mxu0 %v439
    %3511 = vmatpush.msra.mxu0 %v423
    %3512 = vmatpush.msra.mxu0 %v407
    %3513 = vmatpush.msra.mxu0 %v391
    %3514 = vmatpush.msra.mxu0 %v375
    %3515 = vmatpush.msra.mxu0 %v359
    %3516 = vmatmul.f32.gmra.mxu0 %v2185
    %v3517 = vpop.f32.mrf.mxu0
    %v3518 = vadd.f32 %v3498, %v3517
    %3519 = vdwg.mxu0
    %3520 = vmatpush.msra.mxu0 %v855
    %3521 = vmatpush.msra.mxu0 %v839
    %3522 = vmatpush.msra.mxu0 %v823
    %3523 = vmatpush.msra.mxu0 %v807
    %3524 = vmatpush.msra.mxu0 %v791
    %3525 = vmatpush.msra.mxu0 %v775
    %3526 = vmatpush.msra.mxu0 %v759
    %3527 = vmatpush.msra.mxu0 %v743
    %3528 = vmatpush.msra.mxu0 %v727
    %3529 = vmatpush.msra.mxu0 %v711
    %3530 = vmatpush.msra.mxu0 %v695
    %3531 = vmatpush.msra.mxu0 %v679
    %3532 = vmatpush.msra.mxu0 %v663
    %3533 = vmatpush.msra.mxu0 %v647
    %3534 = vmatpush.msra.mxu0 %v631
    %3535 = vmatpush.msra.mxu0 %v615
    %3536 = vmatmul.f32.gmra.mxu0 %v2186
    %v3537 = vpop.f32.mrf.mxu0
    %v3538 = vadd.f32 %v3518, %v3537
    %3539 = vdwg.mxu0
    %3540 = vmatpush.msra.mxu0 %v1111
    %3541 = vmatpush.msra.mxu0 %v1095
    %3542 = vmatpush.msra.mxu0 %v1079
    %3543 = vmatpush.msra.mxu0 %v1063
    %3544 = vmatpush.msra.mxu0 %v1047
    %3545 = vmatpush.msra.mxu0 %v1031
    %3546 = vmatpush.msra.mxu0 %v1015
    %3547 = vmatpush.msra.mxu0 %v999
    %3548 = vmatpush.msra.mxu0 %v983
    %3549 = vmatpush.msra.mxu0 %v967
    %3550 = vmatpush.msra.mxu0 %v951
    %3551 = vmatpush.msra.mxu0 %v935
    %3552 = vmatpush.msra.mxu0 %v919
    %3553 = vmatpush.msra.mxu0 %v903
    %3554 = vmatpush.msra.mxu0 %v887
    %3555 = vmatpush.msra.mxu0 %v871
    %3556 = vmatmul.f32.gmra.mxu0 %v2187
    %v3557 = vpop.f32.mrf.mxu0
    %v3558 = vadd.f32 %v3538, %v3557
    %3559 = vdwg.mxu0
    %3560 = vmatpush.msra.mxu0 %v1367
    %3561 = vmatpush.msra.mxu0 %v1351
    %3562 = vmatpush.msra.mxu0 %v1335
    %3563 = vmatpush.msra.mxu0 %v1319
    %3564 = vmatpush.msra.mxu0 %v1303
    %3565 = vmatpush.msra.mxu0 %v1287
    %3566 = vmatpush.msra.mxu0 %v1271
    %3567 = vmatpush.msra.mxu0 %v1255
    %3568 = vmatpush.msra.mxu0 %v1239
    %3569 = vmatpush.msra.mxu0 %v1223
    %3570 = vmatpush.msra.mxu0 %v1207
    %3571 = vmatpush.msra.mxu0 %v1191
    %3572 = vmatpush.msra.mxu0 %v1175
    %3573 = vmatpush.msra.mxu0 %v1159
    %3574 = vmatpush.msra.mxu0 %v1143
    %3575 = vmatpush.msra.mxu0 %v1127
    %3576 = vmatmul.f32.gmra.mxu0 %v2188
    %v3577 = vpop.f32.mrf.mxu0
    %v3578 = vadd.f32 %v3558, %v3577
    %3579 = vdwg.mxu0
    %3580 = vmatpush.msra.mxu0 %v1623
    %3581 = vmatpush.msra.mxu0 %v1607
    %3582 = vmatpush.msra.mxu0 %v1591
    %3583 = vmatpush.msra.mxu0 %v1575
    %3584 = vmatpush.msra.mxu0 %v1559
    %3585 = vmatpush.msra.mxu0 %v1543
    %3586 = vmatpush.msra.mxu0 %v1527
    %3587 = vmatpush.msra.mxu0 %v1511
    %3588 = vmatpush.msra.mxu0 %v1495
    %3589 = vmatpush.msra.mxu0 %v1479
    %3590 = vmatpush.msra.mxu0 %v1463
    %3591 = vmatpush.msra.mxu0 %v1447
    %3592 = vmatpush.msra.mxu0 %v1431
    %3593 = vmatpush.msra.mxu0 %v1415
    %3594 = vmatpush.msra.mxu0 %v1399
    %3595 = vmatpush.msra.mxu0 %v1383
    %3596 = vmatmul.f32.gmra.mxu0 %v2189
    %v3597 = vpop.f32.mrf.mxu0
    %v3598 = vadd.f32 %v3578, %v3597
    %3599 = vdwg.mxu0
    %3600 = vmatpush.msra.mxu0 %v1879
    %3601 = vmatpush.msra.mxu0 %v1863
    %3602 = vmatpush.msra.mxu0 %v1847
    %3603 = vmatpush.msra.mxu0 %v1831
    %3604 = vmatpush.msra.mxu0 %v1815
    %3605 = vmatpush.msra.mxu0 %v1799
    %3606 = vmatpush.msra.mxu0 %v1783
    %3607 = vmatpush.msra.mxu0 %v1767
    %3608 = vmatpush.msra.mxu0 %v1751
    %3609 = vmatpush.msra.mxu0 %v1735
    %3610 = vmatpush.msra.mxu0 %v1719
    %3611 = vmatpush.msra.mxu0 %v1703
    %3612 = vmatpush.msra.mxu0 %v1687
    %3613 = vmatpush.msra.mxu0 %v1671
    %3614 = vmatpush.msra.mxu0 %v1655
    %3615 = vmatpush.msra.mxu0 %v1639
    %3616 = vmatmul.f32.gmra.mxu0 %v2190
    %v3617 = vpop.f32.mrf.mxu0
    %v3618 = vadd.f32 %v3598, %v3617
    %3619 = vdwg.mxu0
    %3620 = vmatpush.msra.mxu0 %v2135
    %3621 = vmatpush.msra.mxu0 %v2119
    %3622 = vmatpush.msra.mxu0 %v2103
    %3623 = vmatpush.msra.mxu0 %v2087
    %3624 = vmatpush.msra.mxu0 %v2071
    %3625 = vmatpush.msra.mxu0 %v2055
    %3626 = vmatpush.msra.mxu0 %v2039
    %3627 = vmatpush.msra.mxu0 %v2023
    %3628 = vmatpush.msra.mxu0 %v2007
    %3629 = vmatpush.msra.mxu0 %v1991
    %3630 = vmatpush.msra.mxu0 %v1975
    %3631 = vmatpush.msra.mxu0 %v1959
    %3632 = vmatpush.msra.mxu0 %v1943
    %3633 = vmatpush.msra.mxu0 %v1927
    %3634 = vmatpush.msra.mxu0 %v1911
    %3635 = vmatpush.msra.mxu0 %v1895
    %3636 = vmatmul.f32.gmra.mxu0 %v2191
    %v3637 = vpop.f32.mrf.mxu0
    %v3638 = vadd.f32 %v3618, %v3637
    %3639 = vdwg.mxu0
    %3640 = vmatpush.msra.mxu0 %v344
    %3641 = vmatpush.msra.mxu0 %v328
    %3642 = vmatpush.msra.mxu0 %v312
    %3643 = vmatpush.msra.mxu0 %v296
    %3644 = vmatpush.msra.mxu0 %v280
    %3645 = vmatpush.msra.mxu0 %v264
    %3646 = vmatpush.msra.mxu0 %v248
    %3647 = vmatpush.msra.mxu0 %v232
    %3648 = vmatpush.msra.mxu0 %v216
    %3649 = vmatpush.msra.mxu0 %v200
    %3650 = vmatpush.msra.mxu0 %v184
    %3651 = vmatpush.msra.mxu0 %v168
    %3652 = vmatpush.msra.mxu0 %v152
    %3653 = vmatpush.msra.mxu0 %v136
    %3654 = vmatpush.msra.mxu0 %v120
    %3655 = vmatpush.msra.mxu0 %v104
    %3656 = vmatmul.f32.gmra.mxu0 %v2184
    %v3657 = vpop.f32.mrf.mxu0
    %v3658 = vadd.f32 %v2156, %v3657
    %3659 = vdwg.mxu0
    %3660 = vmatpush.msra.mxu0 %v600
    %3661 = vmatpush.msra.mxu0 %v584
    %3662 = vmatpush.msra.mxu0 %v568
    %3663 = vmatpush.msra.mxu0 %v552
    %3664 = vmatpush.msra.mxu0 %v536
    %3665 = vmatpush.msra.mxu0 %v520
    %3666 = vmatpush.msra.mxu0 %v504
    %3667 = vmatpush.msra.mxu0 %v488
    %3668 = vmatpush.msra.mxu0 %v472
    %3669 = vmatpush.msra.mxu0 %v456
    %3670 = vmatpush.msra.mxu0 %v440
    %3671 = vmatpush.msra.mxu0 %v424
    %3672 = vmatpush.msra.mxu0 %v408
    %3673 = vmatpush.msra.mxu0 %v392
    %3674 = vmatpush.msra.mxu0 %v376
    %3675 = vmatpush.msra.mxu0 %v360
    %3676 = vmatmul.f32.gmra.mxu0 %v2185
    %v3677 = vpop.f32.mrf.mxu0
    %v3678 = vadd.f32 %v3658, %v3677
    %3679 = vdwg.mxu0
    %3680 = vmatpush.msra.mxu0 %v856
    %3681 = vmatpush.msra.mxu0 %v840
    %3682 = vmatpush.msra.mxu0 %v824
    %3683 = vmatpush.msra.mxu0 %v808
    %3684 = vmatpush.msra.mxu0 %v792
    %3685 = vmatpush.msra.mxu0 %v776
    %3686 = vmatpush.msra.mxu0 %v760
    %3687 = vmatpush.msra.mxu0 %v744
    %3688 = vmatpush.msra.mxu0 %v728
    %3689 = vmatpush.msra.mxu0 %v712
    %3690 = vmatpush.msra.mxu0 %v696
    %3691 = vmatpush.msra.mxu0 %v680
    %3692 = vmatpush.msra.mxu0 %v664
    %3693 = vmatpush.msra.mxu0 %v648
    %3694 = vmatpush.msra.mxu0 %v632
    %3695 = vmatpush.msra.mxu0 %v616
    %3696 = vmatmul.f32.gmra.mxu0 %v2186
    %v3697 = vpop.f32.mrf.mxu0
    %v3698 = vadd.f32 %v3678, %v3697
    %3699 = vdwg.mxu0
    %3700 = vmatpush.msra.mxu0 %v1112
    %3701 = vmatpush.msra.mxu0 %v1096
    %3702 = vmatpush.msra.mxu0 %v1080
    %3703 = vmatpush.msra.mxu0 %v1064
    %3704 = vmatpush.msra.mxu0 %v1048
    %3705 = vmatpush.msra.mxu0 %v1032
    %3706 = vmatpush.msra.mxu0 %v1016
    %3707 = vmatpush.msra.mxu0 %v1000
    %3708 = vmatpush.msra.mxu0 %v984
    %3709 = vmatpush.msra.mxu0 %v968
    %3710 = vmatpush.msra.mxu0 %v952
    %3711 = vmatpush.msra.mxu0 %v936
    %3712 = vmatpush.msra.mxu0 %v920
    %3713 = vmatpush.msra.mxu0 %v904
    %3714 = vmatpush.msra.mxu0 %v888
    %3715 = vmatpush.msra.mxu0 %v872
    %3716 = vmatmul.f32.gmra.mxu0 %v2187
    %v3717 = vpop.f32.mrf.mxu0
    %v3718 = vadd.f32 %v3698, %v3717
    %3719 = vdwg.mxu0
    %3720 = vmatpush.msra.mxu0 %v1368
    %3721 = vmatpush.msra.mxu0 %v1352
    %3722 = vmatpush.msra.mxu0 %v1336
    %3723 = vmatpush.msra.mxu0 %v1320
    %3724 = vmatpush.msra.mxu0 %v1304
    %3725 = vmatpush.msra.mxu0 %v1288
    %3726 = vmatpush.msra.mxu0 %v1272
    %3727 = vmatpush.msra.mxu0 %v1256
    %3728 = vmatpush.msra.mxu0 %v1240
    %3729 = vmatpush.msra.mxu0 %v1224
    %3730 = vmatpush.msra.mxu0 %v1208
    %3731 = vmatpush.msra.mxu0 %v1192
    %3732 = vmatpush.msra.mxu0 %v1176
    %3733 = vmatpush.msra.mxu0 %v1160
    %3734 = vmatpush.msra.mxu0 %v1144
    %3735 = vmatpush.msra.mxu0 %v1128
    %3736 = vmatmul.f32.gmra.mxu0 %v2188
    %v3737 = vpop.f32.mrf.mxu0
    %v3738 = vadd.f32 %v3718, %v3737
    %3739 = vdwg.mxu0
    %3740 = vmatpush.msra.mxu0 %v1624
    %3741 = vmatpush.msra.mxu0 %v1608
    %3742 = vmatpush.msra.mxu0 %v1592
    %3743 = vmatpush.msra.mxu0 %v1576
    %3744 = vmatpush.msra.mxu0 %v1560
    %3745 = vmatpush.msra.mxu0 %v1544
    %3746 = vmatpush.msra.mxu0 %v1528
    %3747 = vmatpush.msra.mxu0 %v1512
    %3748 = vmatpush.msra.mxu0 %v1496
    %3749 = vmatpush.msra.mxu0 %v1480
    %3750 = vmatpush.msra.mxu0 %v1464
    %3751 = vmatpush.msra.mxu0 %v1448
    %3752 = vmatpush.msra.mxu0 %v1432
    %3753 = vmatpush.msra.mxu0 %v1416
    %3754 = vmatpush.msra.mxu0 %v1400
    %3755 = vmatpush.msra.mxu0 %v1384
    %3756 = vmatmul.f32.gmra.mxu0 %v2189
    %v3757 = vpop.f32.mrf.mxu0
    %v3758 = vadd.f32 %v3738, %v3757
    %3759 = vdwg.mxu0
    %3760 = vmatpush.msra.mxu0 %v1880
    %3761 = vmatpush.msra.mxu0 %v1864
    %3762 = vmatpush.msra.mxu0 %v1848
    %3763 = vmatpush.msra.mxu0 %v1832
    %3764 = vmatpush.msra.mxu0 %v1816
    %3765 = vmatpush.msra.mxu0 %v1800
    %3766 = vmatpush.msra.mxu0 %v1784
    %3767 = vmatpush.msra.mxu0 %v1768
    %3768 = vmatpush.msra.mxu0 %v1752
    %3769 = vmatpush.msra.mxu0 %v1736
    %3770 = vmatpush.msra.mxu0 %v1720
    %3771 = vmatpush.msra.mxu0 %v1704
    %3772 = vmatpush.msra.mxu0 %v1688
    %3773 = vmatpush.msra.mxu0 %v1672
    %3774 = vmatpush.msra.mxu0 %v1656
    %3775 = vmatpush.msra.mxu0 %v1640
    %3776 = vmatmul.f32.gmra.mxu0 %v2190
    %v3777 = vpop.f32.mrf.mxu0
    %v3778 = vadd.f32 %v3758, %v3777
    %3779 = vdwg.mxu0
    %3780 = vmatpush.msra.mxu0 %v2136
    %3781 = vmatpush.msra.mxu0 %v2120
    %3782 = vmatpush.msra.mxu0 %v2104
    %3783 = vmatpush.msra.mxu0 %v2088
    %3784 = vmatpush.msra.mxu0 %v2072
    %3785 = vmatpush.msra.mxu0 %v2056
    %3786 = vmatpush.msra.mxu0 %v2040
    %3787 = vmatpush.msra.mxu0 %v2024
    %3788 = vmatpush.msra.mxu0 %v2008
    %3789 = vmatpush.msra.mxu0 %v1992
    %3790 = vmatpush.msra.mxu0 %v1976
    %3791 = vmatpush.msra.mxu0 %v1960
    %3792 = vmatpush.msra.mxu0 %v1944
    %3793 = vmatpush.msra.mxu0 %v1928
    %3794 = vmatpush.msra.mxu0 %v1912
    %3795 = vmatpush.msra.mxu0 %v1896
    %3796 = vmatmul.f32.gmra.mxu0 %v2191
    %v3797 = vpop.f32.mrf.mxu0
    %v3798 = vadd.f32 %v3778, %v3797
    %3799 = vdwg.mxu0
    %3800 = vmatpush.msra.mxu0 %v345
    %3801 = vmatpush.msra.mxu0 %v329
    %3802 = vmatpush.msra.mxu0 %v313
    %3803 = vmatpush.msra.mxu0 %v297
    %3804 = vmatpush.msra.mxu0 %v281
    %3805 = vmatpush.msra.mxu0 %v265
    %3806 = vmatpush.msra.mxu0 %v249
    %3807 = vmatpush.msra.mxu0 %v233
    %3808 = vmatpush.msra.mxu0 %v217
    %3809 = vmatpush.msra.mxu0 %v201
    %3810 = vmatpush.msra.mxu0 %v185
    %3811 = vmatpush.msra.mxu0 %v169
    %3812 = vmatpush.msra.mxu0 %v153
    %3813 = vmatpush.msra.mxu0 %v137
    %3814 = vmatpush.msra.mxu0 %v121
    %3815 = vmatpush.msra.mxu0 %v105
    %3816 = vmatmul.f32.gmra.mxu0 %v2184
    %v3817 = vpop.f32.mrf.mxu0
    %v3818 = vadd.f32 %v2157, %v3817
    %3819 = vdwg.mxu0
    %3820 = vmatpush.msra.mxu0 %v601
    %3821 = vmatpush.msra.mxu0 %v585
    %3822 = vmatpush.msra.mxu0 %v569
    %3823 = vmatpush.msra.mxu0 %v553
    %3824 = vmatpush.msra.mxu0 %v537
    %3825 = vmatpush.msra.mxu0 %v521
    %3826 = vmatpush.msra.mxu0 %v505
    %3827 = vmatpush.msra.mxu0 %v489
    %3828 = vmatpush.msra.mxu0 %v473
    %3829 = vmatpush.msra.mxu0 %v457
    %3830 = vmatpush.msra.mxu0 %v441
    %3831 = vmatpush.msra.mxu0 %v425
    %3832 = vmatpush.msra.mxu0 %v409
    %3833 = vmatpush.msra.mxu0 %v393
    %3834 = vmatpush.msra.mxu0 %v377
    %3835 = vmatpush.msra.mxu0 %v361
    %3836 = vmatmul.f32.gmra.mxu0 %v2185
    %v3837 = vpop.f32.mrf.mxu0
    %v3838 = vadd.f32 %v3818, %v3837
    %3839 = vdwg.mxu0
    %3840 = vmatpush.msra.mxu0 %v857
    %3841 = vmatpush.msra.mxu0 %v841
    %3842 = vmatpush.msra.mxu0 %v825
    %3843 = vmatpush.msra.mxu0 %v809
    %3844 = vmatpush.msra.mxu0 %v793
    %3845 = vmatpush.msra.mxu0 %v777
    %3846 = vmatpush.msra.mxu0 %v761
    %3847 = vmatpush.msra.mxu0 %v745
    %3848 = vmatpush.msra.mxu0 %v729
    %3849 = vmatpush.msra.mxu0 %v713
    %3850 = vmatpush.msra.mxu0 %v697
    %3851 = vmatpush.msra.mxu0 %v681
    %3852 = vmatpush.msra.mxu0 %v665
    %3853 = vmatpush.msra.mxu0 %v649
    %3854 = vmatpush.msra.mxu0 %v633
    %3855 = vmatpush.msra.mxu0 %v617
    %3856 = vmatmul.f32.gmra.mxu0 %v2186
    %v3857 = vpop.f32.mrf.mxu0
    %v3858 = vadd.f32 %v3838, %v3857
    %3859 = vdwg.mxu0
    %3860 = vmatpush.msra.mxu0 %v1113
    %3861 = vmatpush.msra.mxu0 %v1097
    %3862 = vmatpush.msra.mxu0 %v1081
    %3863 = vmatpush.msra.mxu0 %v1065
    %3864 = vmatpush.msra.mxu0 %v1049
    %3865 = vmatpush.msra.mxu0 %v1033
    %3866 = vmatpush.msra.mxu0 %v1017
    %3867 = vmatpush.msra.mxu0 %v1001
    %3868 = vmatpush.msra.mxu0 %v985
    %3869 = vmatpush.msra.mxu0 %v969
    %3870 = vmatpush.msra.mxu0 %v953
    %3871 = vmatpush.msra.mxu0 %v937
    %3872 = vmatpush.msra.mxu0 %v921
    %3873 = vmatpush.msra.mxu0 %v905
    %3874 = vmatpush.msra.mxu0 %v889
    %3875 = vmatpush.msra.mxu0 %v873
    %3876 = vmatmul.f32.gmra.mxu0 %v2187
    %v3877 = vpop.f32.mrf.mxu0
    %v3878 = vadd.f32 %v3858, %v3877
    %3879 = vdwg.mxu0
    %3880 = vmatpush.msra.mxu0 %v1369
    %3881 = vmatpush.msra.mxu0 %v1353
    %3882 = vmatpush.msra.mxu0 %v1337
    %3883 = vmatpush.msra.mxu0 %v1321
    %3884 = vmatpush.msra.mxu0 %v1305
    %3885 = vmatpush.msra.mxu0 %v1289
    %3886 = vmatpush.msra.mxu0 %v1273
    %3887 = vmatpush.msra.mxu0 %v1257
    %3888 = vmatpush.msra.mxu0 %v1241
    %3889 = vmatpush.msra.mxu0 %v1225
    %3890 = vmatpush.msra.mxu0 %v1209
    %3891 = vmatpush.msra.mxu0 %v1193
    %3892 = vmatpush.msra.mxu0 %v1177
    %3893 = vmatpush.msra.mxu0 %v1161
    %3894 = vmatpush.msra.mxu0 %v1145
    %3895 = vmatpush.msra.mxu0 %v1129
    %3896 = vmatmul.f32.gmra.mxu0 %v2188
    %v3897 = vpop.f32.mrf.mxu0
    %v3898 = vadd.f32 %v3878, %v3897
    %3899 = vdwg.mxu0
    %3900 = vmatpush.msra.mxu0 %v1625
    %3901 = vmatpush.msra.mxu0 %v1609
    %3902 = vmatpush.msra.mxu0 %v1593
    %3903 = vmatpush.msra.mxu0 %v1577
    %3904 = vmatpush.msra.mxu0 %v1561
    %3905 = vmatpush.msra.mxu0 %v1545
    %3906 = vmatpush.msra.mxu0 %v1529
    %3907 = vmatpush.msra.mxu0 %v1513
    %3908 = vmatpush.msra.mxu0 %v1497
    %3909 = vmatpush.msra.mxu0 %v1481
    %3910 = vmatpush.msra.mxu0 %v1465
    %3911 = vmatpush.msra.mxu0 %v1449
    %3912 = vmatpush.msra.mxu0 %v1433
    %3913 = vmatpush.msra.mxu0 %v1417
    %3914 = vmatpush.msra.mxu0 %v1401
    %3915 = vmatpush.msra.mxu0 %v1385
    %3916 = vmatmul.f32.gmra.mxu0 %v2189
    %v3917 = vpop.f32.mrf.mxu0
    %v3918 = vadd.f32 %v3898, %v3917
    %3919 = vdwg.mxu0
    %3920 = vmatpush.msra.mxu0 %v1881
    %3921 = vmatpush.msra.mxu0 %v1865
    %3922 = vmatpush.msra.mxu0 %v1849
    %3923 = vmatpush.msra.mxu0 %v1833
    %3924 = vmatpush.msra.mxu0 %v1817
    %3925 = vmatpush.msra.mxu0 %v1801
    %3926 = vmatpush.msra.mxu0 %v1785
    %3927 = vmatpush.msra.mxu0 %v1769
    %3928 = vmatpush.msra.mxu0 %v1753
    %3929 = vmatpush.msra.mxu0 %v1737
    %3930 = vmatpush.msra.mxu0 %v1721
    %3931 = vmatpush.msra.mxu0 %v1705
    %3932 = vmatpush.msra.mxu0 %v1689
    %3933 = vmatpush.msra.mxu0 %v1673
    %3934 = vmatpush.msra.mxu0 %v1657
    %3935 = vmatpush.msra.mxu0 %v1641
    %3936 = vmatmul.f32.gmra.mxu0 %v2190
    %v3937 = vpop.f32.mrf.mxu0
    %v3938 = vadd.f32 %v3918, %v3937
    %3939 = vdwg.mxu0
    %3940 = vmatpush.msra.mxu0 %v2137
    %3941 = vmatpush.msra.mxu0 %v2121
    %3942 = vmatpush.msra.mxu0 %v2105
    %3943 = vmatpush.msra.mxu0 %v2089
    %3944 = vmatpush.msra.mxu0 %v2073
    %3945 = vmatpush.msra.mxu0 %v2057
    %3946 = vmatpush.msra.mxu0 %v2041
    %3947 = vmatpush.msra.mxu0 %v2025
    %3948 = vmatpush.msra.mxu0 %v2009
    %3949 = vmatpush.msra.mxu0 %v1993
    %3950 = vmatpush.msra.mxu0 %v1977
    %3951 = vmatpush.msra.mxu0 %v1961
    %3952 = vmatpush.msra.mxu0 %v1945
    %3953 = vmatpush.msra.mxu0 %v1929
    %3954 = vmatpush.msra.mxu0 %v1913
    %3955 = vmatpush.msra.mxu0 %v1897
    %3956 = vmatmul.f32.gmra.mxu0 %v2191
    %v3957 = vpop.f32.mrf.mxu0
    %v3958 = vadd.f32 %v3938, %v3957
    %3959 = vdwg.mxu0
    %3960 = vmatpush.msra.mxu0 %v346
    %3961 = vmatpush.msra.mxu0 %v330
    %3962 = vmatpush.msra.mxu0 %v314
    %3963 = vmatpush.msra.mxu0 %v298
    %3964 = vmatpush.msra.mxu0 %v282
    %3965 = vmatpush.msra.mxu0 %v266
    %3966 = vmatpush.msra.mxu0 %v250
    %3967 = vmatpush.msra.mxu0 %v234
    %3968 = vmatpush.msra.mxu0 %v218
    %3969 = vmatpush.msra.mxu0 %v202
    %3970 = vmatpush.msra.mxu0 %v186
    %3971 = vmatpush.msra.mxu0 %v170
    %3972 = vmatpush.msra.mxu0 %v154
    %3973 = vmatpush.msra.mxu0 %v138
    %3974 = vmatpush.msra.mxu0 %v122
    %3975 = vmatpush.msra.mxu0 %v106
    %3976 = vmatmul.f32.gmra.mxu0 %v2184
    %v3977 = vpop.f32.mrf.mxu0
    %v3978 = vadd.f32 %v2158, %v3977
    %3979 = vdwg.mxu0
    %3980 = vmatpush.msra.mxu0 %v602
    %3981 = vmatpush.msra.mxu0 %v586
    %3982 = vmatpush.msra.mxu0 %v570
    %3983 = vmatpush.msra.mxu0 %v554
    %3984 = vmatpush.msra.mxu0 %v538
    %3985 = vmatpush.msra.mxu0 %v522
    %3986 = vmatpush.msra.mxu0 %v506
    %3987 = vmatpush.msra.mxu0 %v490
    %3988 = vmatpush.msra.mxu0 %v474
    %3989 = vmatpush.msra.mxu0 %v458
    %3990 = vmatpush.msra.mxu0 %v442
    %3991 = vmatpush.msra.mxu0 %v426
    %3992 = vmatpush.msra.mxu0 %v410
    %3993 = vmatpush.msra.mxu0 %v394
    %3994 = vmatpush.msra.mxu0 %v378
    %3995 = vmatpush.msra.mxu0 %v362
    %3996 = vmatmul.f32.gmra.mxu0 %v2185
    %v3997 = vpop.f32.mrf.mxu0
    %v3998 = vadd.f32 %v3978, %v3997
    %3999 = vdwg.mxu0
    %4000 = vmatpush.msra.mxu0 %v858
    %4001 = vmatpush.msra.mxu0 %v842
    %4002 = vmatpush.msra.mxu0 %v826
    %4003 = vmatpush.msra.mxu0 %v810
    %4004 = vmatpush.msra.mxu0 %v794
    %4005 = vmatpush.msra.mxu0 %v778
    %4006 = vmatpush.msra.mxu0 %v762
    %4007 = vmatpush.msra.mxu0 %v746
    %4008 = vmatpush.msra.mxu0 %v730
    %4009 = vmatpush.msra.mxu0 %v714
    %4010 = vmatpush.msra.mxu0 %v698
    %4011 = vmatpush.msra.mxu0 %v682
    %4012 = vmatpush.msra.mxu0 %v666
    %4013 = vmatpush.msra.mxu0 %v650
    %4014 = vmatpush.msra.mxu0 %v634
    %4015 = vmatpush.msra.mxu0 %v618
    %4016 = vmatmul.f32.gmra.mxu0 %v2186
    %v4017 = vpop.f32.mrf.mxu0
    %v4018 = vadd.f32 %v3998, %v4017
    %4019 = vdwg.mxu0
    %4020 = vmatpush.msra.mxu0 %v1114
    %4021 = vmatpush.msra.mxu0 %v1098
    %4022 = vmatpush.msra.mxu0 %v1082
    %4023 = vmatpush.msra.mxu0 %v1066
    %4024 = vmatpush.msra.mxu0 %v1050
    %4025 = vmatpush.msra.mxu0 %v1034
    %4026 = vmatpush.msra.mxu0 %v1018
    %4027 = vmatpush.msra.mxu0 %v1002
    %4028 = vmatpush.msra.mxu0 %v986
    %4029 = vmatpush.msra.mxu0 %v970
    %4030 = vmatpush.msra.mxu0 %v954
    %4031 = vmatpush.msra.mxu0 %v938
    %4032 = vmatpush.msra.mxu0 %v922
    %4033 = vmatpush.msra.mxu0 %v906
    %4034 = vmatpush.msra.mxu0 %v890
    %4035 = vmatpush.msra.mxu0 %v874
    %4036 = vmatmul.f32.gmra.mxu0 %v2187
    %v4037 = vpop.f32.mrf.mxu0
    %v4038 = vadd.f32 %v4018, %v4037
    %4039 = vdwg.mxu0
    %4040 = vmatpush.msra.mxu0 %v1370
    %4041 = vmatpush.msra.mxu0 %v1354
    %4042 = vmatpush.msra.mxu0 %v1338
    %4043 = vmatpush.msra.mxu0 %v1322
    %4044 = vmatpush.msra.mxu0 %v1306
    %4045 = vmatpush.msra.mxu0 %v1290
    %4046 = vmatpush.msra.mxu0 %v1274
    %4047 = vmatpush.msra.mxu0 %v1258
    %4048 = vmatpush.msra.mxu0 %v1242
    %4049 = vmatpush.msra.mxu0 %v1226
    %4050 = vmatpush.msra.mxu0 %v1210
    %4051 = vmatpush.msra.mxu0 %v1194
    %4052 = vmatpush.msra.mxu0 %v1178
    %4053 = vmatpush.msra.mxu0 %v1162
    %4054 = vmatpush.msra.mxu0 %v1146
    %4055 = vmatpush.msra.mxu0 %v1130
    %4056 = vmatmul.f32.gmra.mxu0 %v2188
    %v4057 = vpop.f32.mrf.mxu0
    %v4058 = vadd.f32 %v4038, %v4057
    %4059 = vdwg.mxu0
    %4060 = vmatpush.msra.mxu0 %v1626
    %4061 = vmatpush.msra.mxu0 %v1610
    %4062 = vmatpush.msra.mxu0 %v1594
    %4063 = vmatpush.msra.mxu0 %v1578
    %4064 = vmatpush.msra.mxu0 %v1562
    %4065 = vmatpush.msra.mxu0 %v1546
    %4066 = vmatpush.msra.mxu0 %v1530
    %4067 = vmatpush.msra.mxu0 %v1514
    %4068 = vmatpush.msra.mxu0 %v1498
    %4069 = vmatpush.msra.mxu0 %v1482
    %4070 = vmatpush.msra.mxu0 %v1466
    %4071 = vmatpush.msra.mxu0 %v1450
    %4072 = vmatpush.msra.mxu0 %v1434
    %4073 = vmatpush.msra.mxu0 %v1418
    %4074 = vmatpush.msra.mxu0 %v1402
    %4075 = vmatpush.msra.mxu0 %v1386
    %4076 = vmatmul.f32.gmra.mxu0 %v2189
    %v4077 = vpop.f32.mrf.mxu0
    %v4078 = vadd.f32 %v4058, %v4077
    %4079 = vdwg.mxu0
    %4080 = vmatpush.msra.mxu0 %v1882
    %4081 = vmatpush.msra.mxu0 %v1866
    %4082 = vmatpush.msra.mxu0 %v1850
    %4083 = vmatpush.msra.mxu0 %v1834
    %4084 = vmatpush.msra.mxu0 %v1818
    %4085 = vmatpush.msra.mxu0 %v1802
    %4086 = vmatpush.msra.mxu0 %v1786
    %4087 = vmatpush.msra.mxu0 %v1770
    %4088 = vmatpush.msra.mxu0 %v1754
    %4089 = vmatpush.msra.mxu0 %v1738
    %4090 = vmatpush.msra.mxu0 %v1722
    %4091 = vmatpush.msra.mxu0 %v1706
    %4092 = vmatpush.msra.mxu0 %v1690
    %4093 = vmatpush.msra.mxu0 %v1674
    %4094 = vmatpush.msra.mxu0 %v1658
    %4095 = vmatpush.msra.mxu0 %v1642
    %4096 = vmatmul.f32.gmra.mxu0 %v2190
    %v4097 = vpop.f32.mrf.mxu0
    %v4098 = vadd.f32 %v4078, %v4097
    %4099 = vdwg.mxu0
    %4100 = vmatpush.msra.mxu0 %v2138
    %4101 = vmatpush.msra.mxu0 %v2122
    %4102 = vmatpush.msra.mxu0 %v2106
    %4103 = vmatpush.msra.mxu0 %v2090
    %4104 = vmatpush.msra.mxu0 %v2074
    %4105 = vmatpush.msra.mxu0 %v2058
    %4106 = vmatpush.msra.mxu0 %v2042
    %4107 = vmatpush.msra.mxu0 %v2026
    %4108 = vmatpush.msra.mxu0 %v2010
    %4109 = vmatpush.msra.mxu0 %v1994
    %4110 = vmatpush.msra.mxu0 %v1978
    %4111 = vmatpush.msra.mxu0 %v1962
    %4112 = vmatpush.msra.mxu0 %v1946
    %4113 = vmatpush.msra.mxu0 %v1930
    %4114 = vmatpush.msra.mxu0 %v1914
    %4115 = vmatpush.msra.mxu0 %v1898
    %4116 = vmatmul.f32.gmra.mxu0 %v2191
    %v4117 = vpop.f32.mrf.mxu0
    %v4118 = vadd.f32 %v4098, %v4117
    %4119 = vdwg.mxu0
    %4120 = vmatpush.msra.mxu0 %v347
    %4121 = vmatpush.msra.mxu0 %v331
    %4122 = vmatpush.msra.mxu0 %v315
    %4123 = vmatpush.msra.mxu0 %v299
    %4124 = vmatpush.msra.mxu0 %v283
    %4125 = vmatpush.msra.mxu0 %v267
    %4126 = vmatpush.msra.mxu0 %v251
    %4127 = vmatpush.msra.mxu0 %v235
    %4128 = vmatpush.msra.mxu0 %v219
    %4129 = vmatpush.msra.mxu0 %v203
    %4130 = vmatpush.msra.mxu0 %v187
    %4131 = vmatpush.msra.mxu0 %v171
    %4132 = vmatpush.msra.mxu0 %v155
    %4133 = vmatpush.msra.mxu0 %v139
    %4134 = vmatpush.msra.mxu0 %v123
    %4135 = vmatpush.msra.mxu0 %v107
    %4136 = vmatmul.f32.gmra.mxu0 %v2184
    %v4137 = vpop.f32.mrf.mxu0
    %v4138 = vadd.f32 %v2159, %v4137
    %4139 = vdwg.mxu0
    %4140 = vmatpush.msra.mxu0 %v603
    %4141 = vmatpush.msra.mxu0 %v587
    %4142 = vmatpush.msra.mxu0 %v571
    %4143 = vmatpush.msra.mxu0 %v555
    %4144 = vmatpush.msra.mxu0 %v539
    %4145 = vmatpush.msra.mxu0 %v523
    %4146 = vmatpush.msra.mxu0 %v507
    %4147 = vmatpush.msra.mxu0 %v491
    %4148 = vmatpush.msra.mxu0 %v475
    %4149 = vmatpush.msra.mxu0 %v459
    %4150 = vmatpush.msra.mxu0 %v443
    %4151 = vmatpush.msra.mxu0 %v427
    %4152 = vmatpush.msra.mxu0 %v411
    %4153 = vmatpush.msra.mxu0 %v395
    %4154 = vmatpush.msra.mxu0 %v379
    %4155 = vmatpush.msra.mxu0 %v363
    %4156 = vmatmul.f32.gmra.mxu0 %v2185
    %v4157 = vpop.f32.mrf.mxu0
    %v4158 = vadd.f32 %v4138, %v4157
    %4159 = vdwg.mxu0
    %4160 = vmatpush.msra.mxu0 %v859
    %4161 = vmatpush.msra.mxu0 %v843
    %4162 = vmatpush.msra.mxu0 %v827
    %4163 = vmatpush.msra.mxu0 %v811
    %4164 = vmatpush.msra.mxu0 %v795
    %4165 = vmatpush.msra.mxu0 %v779
    %4166 = vmatpush.msra.mxu0 %v763
    %4167 = vmatpush.msra.mxu0 %v747
    %4168 = vmatpush.msra.mxu0 %v731
    %4169 = vmatpush.msra.mxu0 %v715
    %4170 = vmatpush.msra.mxu0 %v699
    %4171 = vmatpush.msra.mxu0 %v683
    %4172 = vmatpush.msra.mxu0 %v667
    %4173 = vmatpush.msra.mxu0 %v651
    %4174 = vmatpush.msra.mxu0 %v635
    %4175 = vmatpush.msra.mxu0 %v619
    %4176 = vmatmul.f32.gmra.mxu0 %v2186
    %v4177 = vpop.f32.mrf.mxu0
    %v4178 = vadd.f32 %v4158, %v4177
    %4179 = vdwg.mxu0
    %4180 = vmatpush.msra.mxu0 %v1115
    %4181 = vmatpush.msra.mxu0 %v1099
    %4182 = vmatpush.msra.mxu0 %v1083
    %4183 = vmatpush.msra.mxu0 %v1067
    %4184 = vmatpush.msra.mxu0 %v1051
    %4185 = vmatpush.msra.mxu0 %v1035
    %4186 = vmatpush.msra.mxu0 %v1019
    %4187 = vmatpush.msra.mxu0 %v1003
    %4188 = vmatpush.msra.mxu0 %v987
    %4189 = vmatpush.msra.mxu0 %v971
    %4190 = vmatpush.msra.mxu0 %v955
    %4191 = vmatpush.msra.mxu0 %v939
    %4192 = vmatpush.msra.mxu0 %v923
    %4193 = vmatpush.msra.mxu0 %v907
    %4194 = vmatpush.msra.mxu0 %v891
    %4195 = vmatpush.msra.mxu0 %v875
    %4196 = vmatmul.f32.gmra.mxu0 %v2187
    %v4197 = vpop.f32.mrf.mxu0
    %v4198 = vadd.f32 %v4178, %v4197
    %4199 = vdwg.mxu0
    %4200 = vmatpush.msra.mxu0 %v1371
    %4201 = vmatpush.msra.mxu0 %v1355
    %4202 = vmatpush.msra.mxu0 %v1339
    %4203 = vmatpush.msra.mxu0 %v1323
    %4204 = vmatpush.msra.mxu0 %v1307
    %4205 = vmatpush.msra.mxu0 %v1291
    %4206 = vmatpush.msra.mxu0 %v1275
    %4207 = vmatpush.msra.mxu0 %v1259
    %4208 = vmatpush.msra.mxu0 %v1243
    %4209 = vmatpush.msra.mxu0 %v1227
    %4210 = vmatpush.msra.mxu0 %v1211
    %4211 = vmatpush.msra.mxu0 %v1195
    %4212 = vmatpush.msra.mxu0 %v1179
    %4213 = vmatpush.msra.mxu0 %v1163
    %4214 = vmatpush.msra.mxu0 %v1147
    %4215 = vmatpush.msra.mxu0 %v1131
    %4216 = vmatmul.f32.gmra.mxu0 %v2188
    %v4217 = vpop.f32.mrf.mxu0
    %v4218 = vadd.f32 %v4198, %v4217
    %4219 = vdwg.mxu0
    %4220 = vmatpush.msra.mxu0 %v1627
    %4221 = vmatpush.msra.mxu0 %v1611
    %4222 = vmatpush.msra.mxu0 %v1595
    %4223 = vmatpush.msra.mxu0 %v1579
    %4224 = vmatpush.msra.mxu0 %v1563
    %4225 = vmatpush.msra.mxu0 %v1547
    %4226 = vmatpush.msra.mxu0 %v1531
    %4227 = vmatpush.msra.mxu0 %v1515
    %4228 = vmatpush.msra.mxu0 %v1499
    %4229 = vmatpush.msra.mxu0 %v1483
    %4230 = vmatpush.msra.mxu0 %v1467
    %4231 = vmatpush.msra.mxu0 %v1451
    %4232 = vmatpush.msra.mxu0 %v1435
    %4233 = vmatpush.msra.mxu0 %v1419
    %4234 = vmatpush.msra.mxu0 %v1403
    %4235 = vmatpush.msra.mxu0 %v1387
    %4236 = vmatmul.f32.gmra.mxu0 %v2189
    %v4237 = vpop.f32.mrf.mxu0
    %v4238 = vadd.f32 %v4218, %v4237
    %4239 = vdwg.mxu0
    %4240 = vmatpush.msra.mxu0 %v1883
    %4241 = vmatpush.msra.mxu0 %v1867
    %4242 = vmatpush.msra.mxu0 %v1851
    %4243 = vmatpush.msra.mxu0 %v1835
    %4244 = vmatpush.msra.mxu0 %v1819
    %4245 = vmatpush.msra.mxu0 %v1803
    %4246 = vmatpush.msra.mxu0 %v1787
    %4247 = vmatpush.msra.mxu0 %v1771
    %4248 = vmatpush.msra.mxu0 %v1755
    %4249 = vmatpush.msra.mxu0 %v1739
    %4250 = vmatpush.msra.mxu0 %v1723
    %4251 = vmatpush.msra.mxu0 %v1707
    %4252 = vmatpush.msra.mxu0 %v1691
    %4253 = vmatpush.msra.mxu0 %v1675
    %4254 = vmatpush.msra.mxu0 %v1659
    %4255 = vmatpush.msra.mxu0 %v1643
    %4256 = vmatmul.f32.gmra.mxu0 %v2190
    %v4257 = vpop.f32.mrf.mxu0
    %v4258 = vadd.f32 %v4238, %v4257
    %4259 = vdwg.mxu0
    %4260 = vmatpush.msra.mxu0 %v2139
    %4261 = vmatpush.msra.mxu0 %v2123
    %4262 = vmatpush.msra.mxu0 %v2107
    %4263 = vmatpush.msra.mxu0 %v2091
    %4264 = vmatpush.msra.mxu0 %v2075
    %4265 = vmatpush.msra.mxu0 %v2059
    %4266 = vmatpush.msra.mxu0 %v2043
    %4267 = vmatpush.msra.mxu0 %v2027
    %4268 = vmatpush.msra.mxu0 %v2011
    %4269 = vmatpush.msra.mxu0 %v1995
    %4270 = vmatpush.msra.mxu0 %v1979
    %4271 = vmatpush.msra.mxu0 %v1963
    %4272 = vmatpush.msra.mxu0 %v1947
    %4273 = vmatpush.msra.mxu0 %v1931
    %4274 = vmatpush.msra.mxu0 %v1915
    %4275 = vmatpush.msra.mxu0 %v1899
    %4276 = vmatmul.f32.gmra.mxu0 %v2191
    %v4277 = vpop.f32.mrf.mxu0
    %v4278 = vadd.f32 %v4258, %v4277
    %4279 = vdwg.mxu0
    %4280 = vmatpush.msra.mxu0 %v348
    %4281 = vmatpush.msra.mxu0 %v332
    %4282 = vmatpush.msra.mxu0 %v316
    %4283 = vmatpush.msra.mxu0 %v300
    %4284 = vmatpush.msra.mxu0 %v284
    %4285 = vmatpush.msra.mxu0 %v268
    %4286 = vmatpush.msra.mxu0 %v252
    %4287 = vmatpush.msra.mxu0 %v236
    %4288 = vmatpush.msra.mxu0 %v220
    %4289 = vmatpush.msra.mxu0 %v204
    %4290 = vmatpush.msra.mxu0 %v188
    %4291 = vmatpush.msra.mxu0 %v172
    %4292 = vmatpush.msra.mxu0 %v156
    %4293 = vmatpush.msra.mxu0 %v140
    %4294 = vmatpush.msra.mxu0 %v124
    %4295 = vmatpush.msra.mxu0 %v108
    %4296 = vmatmul.f32.gmra.mxu0 %v2184
    %v4297 = vpop.f32.mrf.mxu0
    %v4298 = vadd.f32 %v2160, %v4297
    %4299 = vdwg.mxu0
    %4300 = vmatpush.msra.mxu0 %v604
    %4301 = vmatpush.msra.mxu0 %v588
    %4302 = vmatpush.msra.mxu0 %v572
    %4303 = vmatpush.msra.mxu0 %v556
    %4304 = vmatpush.msra.mxu0 %v540
    %4305 = vmatpush.msra.mxu0 %v524
    %4306 = vmatpush.msra.mxu0 %v508
    %4307 = vmatpush.msra.mxu0 %v492
    %4308 = vmatpush.msra.mxu0 %v476
    %4309 = vmatpush.msra.mxu0 %v460
    %4310 = vmatpush.msra.mxu0 %v444
    %4311 = vmatpush.msra.mxu0 %v428
    %4312 = vmatpush.msra.mxu0 %v412
    %4313 = vmatpush.msra.mxu0 %v396
    %4314 = vmatpush.msra.mxu0 %v380
    %4315 = vmatpush.msra.mxu0 %v364
    %4316 = vmatmul.f32.gmra.mxu0 %v2185
    %v4317 = vpop.f32.mrf.mxu0
    %v4318 = vadd.f32 %v4298, %v4317
    %4319 = vdwg.mxu0
    %4320 = vmatpush.msra.mxu0 %v860
    %4321 = vmatpush.msra.mxu0 %v844
    %4322 = vmatpush.msra.mxu0 %v828
    %4323 = vmatpush.msra.mxu0 %v812
    %4324 = vmatpush.msra.mxu0 %v796
    %4325 = vmatpush.msra.mxu0 %v780
    %4326 = vmatpush.msra.mxu0 %v764
    %4327 = vmatpush.msra.mxu0 %v748
    %4328 = vmatpush.msra.mxu0 %v732
    %4329 = vmatpush.msra.mxu0 %v716
    %4330 = vmatpush.msra.mxu0 %v700
    %4331 = vmatpush.msra.mxu0 %v684
    %4332 = vmatpush.msra.mxu0 %v668
    %4333 = vmatpush.msra.mxu0 %v652
    %4334 = vmatpush.msra.mxu0 %v636
    %4335 = vmatpush.msra.mxu0 %v620
    %4336 = vmatmul.f32.gmra.mxu0 %v2186
    %v4337 = vpop.f32.mrf.mxu0
    %v4338 = vadd.f32 %v4318, %v4337
    %4339 = vdwg.mxu0
    %4340 = vmatpush.msra.mxu0 %v1116
    %4341 = vmatpush.msra.mxu0 %v1100
    %4342 = vmatpush.msra.mxu0 %v1084
    %4343 = vmatpush.msra.mxu0 %v1068
    %4344 = vmatpush.msra.mxu0 %v1052
    %4345 = vmatpush.msra.mxu0 %v1036
    %4346 = vmatpush.msra.mxu0 %v1020
    %4347 = vmatpush.msra.mxu0 %v1004
    %4348 = vmatpush.msra.mxu0 %v988
    %4349 = vmatpush.msra.mxu0 %v972
    %4350 = vmatpush.msra.mxu0 %v956
    %4351 = vmatpush.msra.mxu0 %v940
    %4352 = vmatpush.msra.mxu0 %v924
    %4353 = vmatpush.msra.mxu0 %v908
    %4354 = vmatpush.msra.mxu0 %v892
    %4355 = vmatpush.msra.mxu0 %v876
    %4356 = vmatmul.f32.gmra.mxu0 %v2187
    %v4357 = vpop.f32.mrf.mxu0
    %v4358 = vadd.f32 %v4338, %v4357
    %4359 = vdwg.mxu0
    %4360 = vmatpush.msra.mxu0 %v1372
    %4361 = vmatpush.msra.mxu0 %v1356
    %4362 = vmatpush.msra.mxu0 %v1340
    %4363 = vmatpush.msra.mxu0 %v1324
    %4364 = vmatpush.msra.mxu0 %v1308
    %4365 = vmatpush.msra.mxu0 %v1292
    %4366 = vmatpush.msra.mxu0 %v1276
    %4367 = vmatpush.msra.mxu0 %v1260
    %4368 = vmatpush.msra.mxu0 %v1244
    %4369 = vmatpush.msra.mxu0 %v1228
    %4370 = vmatpush.msra.mxu0 %v1212
    %4371 = vmatpush.msra.mxu0 %v1196
    %4372 = vmatpush.msra.mxu0 %v1180
    %4373 = vmatpush.msra.mxu0 %v1164
    %4374 = vmatpush.msra.mxu0 %v1148
    %4375 = vmatpush.msra.mxu0 %v1132
    %4376 = vmatmul.f32.gmra.mxu0 %v2188
    %v4377 = vpop.f32.mrf.mxu0
    %v4378 = vadd.f32 %v4358, %v4377
    %4379 = vdwg.mxu0
    %4380 = vmatpush.msra.mxu0 %v1628
    %4381 = vmatpush.msra.mxu0 %v1612
    %4382 = vmatpush.msra.mxu0 %v1596
    %4383 = vmatpush.msra.mxu0 %v1580
    %4384 = vmatpush.msra.mxu0 %v1564
    %4385 = vmatpush.msra.mxu0 %v1548
    %4386 = vmatpush.msra.mxu0 %v1532
    %4387 = vmatpush.msra.mxu0 %v1516
    %4388 = vmatpush.msra.mxu0 %v1500
    %4389 = vmatpush.msra.mxu0 %v1484
    %4390 = vmatpush.msra.mxu0 %v1468
    %4391 = vmatpush.msra.mxu0 %v1452
    %4392 = vmatpush.msra.mxu0 %v1436
    %4393 = vmatpush.msra.mxu0 %v1420
    %4394 = vmatpush.msra.mxu0 %v1404
    %4395 = vmatpush.msra.mxu0 %v1388
    %4396 = vmatmul.f32.gmra.mxu0 %v2189
    %v4397 = vpop.f32.mrf.mxu0
    %v4398 = vadd.f32 %v4378, %v4397
    %4399 = vdwg.mxu0
    %4400 = vmatpush.msra.mxu0 %v1884
    %4401 = vmatpush.msra.mxu0 %v1868
    %4402 = vmatpush.msra.mxu0 %v1852
    %4403 = vmatpush.msra.mxu0 %v1836
    %4404 = vmatpush.msra.mxu0 %v1820
    %4405 = vmatpush.msra.mxu0 %v1804
    %4406 = vmatpush.msra.mxu0 %v1788
    %4407 = vmatpush.msra.mxu0 %v1772
    %4408 = vmatpush.msra.mxu0 %v1756
    %4409 = vmatpush.msra.mxu0 %v1740
    %4410 = vmatpush.msra.mxu0 %v1724
    %4411 = vmatpush.msra.mxu0 %v1708
    %4412 = vmatpush.msra.mxu0 %v1692
    %4413 = vmatpush.msra.mxu0 %v1676
    %4414 = vmatpush.msra.mxu0 %v1660
    %4415 = vmatpush.msra.mxu0 %v1644
    %4416 = vmatmul.f32.gmra.mxu0 %v2190
    %v4417 = vpop.f32.mrf.mxu0
    %v4418 = vadd.f32 %v4398, %v4417
    %4419 = vdwg.mxu0
    %4420 = vmatpush.msra.mxu0 %v2140
    %4421 = vmatpush.msra.mxu0 %v2124
    %4422 = vmatpush.msra.mxu0 %v2108
    %4423 = vmatpush.msra.mxu0 %v2092
    %4424 = vmatpush.msra.mxu0 %v2076
    %4425 = vmatpush.msra.mxu0 %v2060
    %4426 = vmatpush.msra.mxu0 %v2044
    %4427 = vmatpush.msra.mxu0 %v2028
    %4428 = vmatpush.msra.mxu0 %v2012
    %4429 = vmatpush.msra.mxu0 %v1996
    %4430 = vmatpush.msra.mxu0 %v1980
    %4431 = vmatpush.msra.mxu0 %v1964
    %4432 = vmatpush.msra.mxu0 %v1948
    %4433 = vmatpush.msra.mxu0 %v1932
    %4434 = vmatpush.msra.mxu0 %v1916
    %4435 = vmatpush.msra.mxu0 %v1900
    %4436 = vmatmul.f32.gmra.mxu0 %v2191
    %v4437 = vpop.f32.mrf.mxu0
    %v4438 = vadd.f32 %v4418, %v4437
    %4439 = vdwg.mxu0
    %4440 = vmatpush.msra.mxu0 %v349
    %4441 = vmatpush.msra.mxu0 %v333
    %4442 = vmatpush.msra.mxu0 %v317
    %4443 = vmatpush.msra.mxu0 %v301
    %4444 = vmatpush.msra.mxu0 %v285
    %4445 = vmatpush.msra.mxu0 %v269
    %4446 = vmatpush.msra.mxu0 %v253
    %4447 = vmatpush.msra.mxu0 %v237
    %4448 = vmatpush.msra.mxu0 %v221
    %4449 = vmatpush.msra.mxu0 %v205
    %4450 = vmatpush.msra.mxu0 %v189
    %4451 = vmatpush.msra.mxu0 %v173
    %4452 = vmatpush.msra.mxu0 %v157
    %4453 = vmatpush.msra.mxu0 %v141
    %4454 = vmatpush.msra.mxu0 %v125
    %4455 = vmatpush.msra.mxu0 %v109
    %4456 = vmatmul.f32.gmra.mxu0 %v2184
    %v4457 = vpop.f32.mrf.mxu0
    %v4458 = vadd.f32 %v2161, %v4457
    %4459 = vdwg.mxu0
    %4460 = vmatpush.msra.mxu0 %v605
    %4461 = vmatpush.msra.mxu0 %v589
    %4462 = vmatpush.msra.mxu0 %v573
    %4463 = vmatpush.msra.mxu0 %v557
    %4464 = vmatpush.msra.mxu0 %v541
    %4465 = vmatpush.msra.mxu0 %v525
    %4466 = vmatpush.msra.mxu0 %v509
    %4467 = vmatpush.msra.mxu0 %v493
    %4468 = vmatpush.msra.mxu0 %v477
    %4469 = vmatpush.msra.mxu0 %v461
    %4470 = vmatpush.msra.mxu0 %v445
    %4471 = vmatpush.msra.mxu0 %v429
    %4472 = vmatpush.msra.mxu0 %v413
    %4473 = vmatpush.msra.mxu0 %v397
    %4474 = vmatpush.msra.mxu0 %v381
    %4475 = vmatpush.msra.mxu0 %v365
    %4476 = vmatmul.f32.gmra.mxu0 %v2185
    %v4477 = vpop.f32.mrf.mxu0
    %v4478 = vadd.f32 %v4458, %v4477
    %4479 = vdwg.mxu0
    %4480 = vmatpush.msra.mxu0 %v861
    %4481 = vmatpush.msra.mxu0 %v845
    %4482 = vmatpush.msra.mxu0 %v829
    %4483 = vmatpush.msra.mxu0 %v813
    %4484 = vmatpush.msra.mxu0 %v797
    %4485 = vmatpush.msra.mxu0 %v781
    %4486 = vmatpush.msra.mxu0 %v765
    %4487 = vmatpush.msra.mxu0 %v749
    %4488 = vmatpush.msra.mxu0 %v733
    %4489 = vmatpush.msra.mxu0 %v717
    %4490 = vmatpush.msra.mxu0 %v701
    %4491 = vmatpush.msra.mxu0 %v685
    %4492 = vmatpush.msra.mxu0 %v669
    %4493 = vmatpush.msra.mxu0 %v653
    %4494 = vmatpush.msra.mxu0 %v637
    %4495 = vmatpush.msra.mxu0 %v621
    %4496 = vmatmul.f32.gmra.mxu0 %v2186
    %v4497 = vpop.f32.mrf.mxu0
    %v4498 = vadd.f32 %v4478, %v4497
    %4499 = vdwg.mxu0
    %4500 = vmatpush.msra.mxu0 %v1117
    %4501 = vmatpush.msra.mxu0 %v1101
    %4502 = vmatpush.msra.mxu0 %v1085
    %4503 = vmatpush.msra.mxu0 %v1069
    %4504 = vmatpush.msra.mxu0 %v1053
    %4505 = vmatpush.msra.mxu0 %v1037
    %4506 = vmatpush.msra.mxu0 %v1021
    %4507 = vmatpush.msra.mxu0 %v1005
    %4508 = vmatpush.msra.mxu0 %v989
    %4509 = vmatpush.msra.mxu0 %v973
    %4510 = vmatpush.msra.mxu0 %v957
    %4511 = vmatpush.msra.mxu0 %v941
    %4512 = vmatpush.msra.mxu0 %v925
    %4513 = vmatpush.msra.mxu0 %v909
    %4514 = vmatpush.msra.mxu0 %v893
    %4515 = vmatpush.msra.mxu0 %v877
    %4516 = vmatmul.f32.gmra.mxu0 %v2187
    %v4517 = vpop.f32.mrf.mxu0
    %v4518 = vadd.f32 %v4498, %v4517
    %4519 = vdwg.mxu0
    %4520 = vmatpush.msra.mxu0 %v1373
    %4521 = vmatpush.msra.mxu0 %v1357
    %4522 = vmatpush.msra.mxu0 %v1341
    %4523 = vmatpush.msra.mxu0 %v1325
    %4524 = vmatpush.msra.mxu0 %v1309
    %4525 = vmatpush.msra.mxu0 %v1293
    %4526 = vmatpush.msra.mxu0 %v1277
    %4527 = vmatpush.msra.mxu0 %v1261
    %4528 = vmatpush.msra.mxu0 %v1245
    %4529 = vmatpush.msra.mxu0 %v1229
    %4530 = vmatpush.msra.mxu0 %v1213
    %4531 = vmatpush.msra.mxu0 %v1197
    %4532 = vmatpush.msra.mxu0 %v1181
    %4533 = vmatpush.msra.mxu0 %v1165
    %4534 = vmatpush.msra.mxu0 %v1149
    %4535 = vmatpush.msra.mxu0 %v1133
    %4536 = vmatmul.f32.gmra.mxu0 %v2188
    %v4537 = vpop.f32.mrf.mxu0
    %v4538 = vadd.f32 %v4518, %v4537
    %4539 = vdwg.mxu0
    %4540 = vmatpush.msra.mxu0 %v1629
    %4541 = vmatpush.msra.mxu0 %v1613
    %4542 = vmatpush.msra.mxu0 %v1597
    %4543 = vmatpush.msra.mxu0 %v1581
    %4544 = vmatpush.msra.mxu0 %v1565
    %4545 = vmatpush.msra.mxu0 %v1549
    %4546 = vmatpush.msra.mxu0 %v1533
    %4547 = vmatpush.msra.mxu0 %v1517
    %4548 = vmatpush.msra.mxu0 %v1501
    %4549 = vmatpush.msra.mxu0 %v1485
    %4550 = vmatpush.msra.mxu0 %v1469
    %4551 = vmatpush.msra.mxu0 %v1453
    %4552 = vmatpush.msra.mxu0 %v1437
    %4553 = vmatpush.msra.mxu0 %v1421
    %4554 = vmatpush.msra.mxu0 %v1405
    %4555 = vmatpush.msra.mxu0 %v1389
    %4556 = vmatmul.f32.gmra.mxu0 %v2189
    %v4557 = vpop.f32.mrf.mxu0
    %v4558 = vadd.f32 %v4538, %v4557
    %4559 = vdwg.mxu0
    %4560 = vmatpush.msra.mxu0 %v1885
    %4561 = vmatpush.msra.mxu0 %v1869
    %4562 = vmatpush.msra.mxu0 %v1853
    %4563 = vmatpush.msra.mxu0 %v1837
    %4564 = vmatpush.msra.mxu0 %v1821
    %4565 = vmatpush.msra.mxu0 %v1805
    %4566 = vmatpush.msra.mxu0 %v1789
    %4567 = vmatpush.msra.mxu0 %v1773
    %4568 = vmatpush.msra.mxu0 %v1757
    %4569 = vmatpush.msra.mxu0 %v1741
    %4570 = vmatpush.msra.mxu0 %v1725
    %4571 = vmatpush.msra.mxu0 %v1709
    %4572 = vmatpush.msra.mxu0 %v1693
    %4573 = vmatpush.msra.mxu0 %v1677
    %4574 = vmatpush.msra.mxu0 %v1661
    %4575 = vmatpush.msra.mxu0 %v1645
    %4576 = vmatmul.f32.gmra.mxu0 %v2190
    %v4577 = vpop.f32.mrf.mxu0
    %v4578 = vadd.f32 %v4558, %v4577
    %4579 = vdwg.mxu0
    %4580 = vmatpush.msra.mxu0 %v2141
    %4581 = vmatpush.msra.mxu0 %v2125
    %4582 = vmatpush.msra.mxu0 %v2109
    %4583 = vmatpush.msra.mxu0 %v2093
    %4584 = vmatpush.msra.mxu0 %v2077
    %4585 = vmatpush.msra.mxu0 %v2061
    %4586 = vmatpush.msra.mxu0 %v2045
    %4587 = vmatpush.msra.mxu0 %v2029
    %4588 = vmatpush.msra.mxu0 %v2013
    %4589 = vmatpush.msra.mxu0 %v1997
    %4590 = vmatpush.msra.mxu0 %v1981
    %4591 = vmatpush.msra.mxu0 %v1965
    %4592 = vmatpush.msra.mxu0 %v1949
    %4593 = vmatpush.msra.mxu0 %v1933
    %4594 = vmatpush.msra.mxu0 %v1917
    %4595 = vmatpush.msra.mxu0 %v1901
    %4596 = vmatmul.f32.gmra.mxu0 %v2191
    %v4597 = vpop.f32.mrf.mxu0
    %v4598 = vadd.f32 %v4578, %v4597
    %4599 = vdwg.mxu0
    %4600 = vmatpush.msra.mxu0 %v350
    %4601 = vmatpush.msra.mxu0 %v334
    %4602 = vmatpush.msra.mxu0 %v318
    %4603 = vmatpush.msra.mxu0 %v302
    %4604 = vmatpush.msra.mxu0 %v286
    %4605 = vmatpush.msra.mxu0 %v270
    %4606 = vmatpush.msra.mxu0 %v254
    %4607 = vmatpush.msra.mxu0 %v238
    %4608 = vmatpush.msra.mxu0 %v222
    %4609 = vmatpush.msra.mxu0 %v206
    %4610 = vmatpush.msra.mxu0 %v190
    %4611 = vmatpush.msra.mxu0 %v174
    %4612 = vmatpush.msra.mxu0 %v158
    %4613 = vmatpush.msra.mxu0 %v142
    %4614 = vmatpush.msra.mxu0 %v126
    %4615 = vmatpush.msra.mxu0 %v110
    %4616 = vmatmul.f32.gmra.mxu0 %v2184
    %v4617 = vpop.f32.mrf.mxu0
    %v4618 = vadd.f32 %v2162, %v4617
    %4619 = vdwg.mxu0
    %4620 = vmatpush.msra.mxu0 %v606
    %4621 = vmatpush.msra.mxu0 %v590
    %4622 = vmatpush.msra.mxu0 %v574
    %4623 = vmatpush.msra.mxu0 %v558
    %4624 = vmatpush.msra.mxu0 %v542
    %4625 = vmatpush.msra.mxu0 %v526
    %4626 = vmatpush.msra.mxu0 %v510
    %4627 = vmatpush.msra.mxu0 %v494
    %4628 = vmatpush.msra.mxu0 %v478
    %4629 = vmatpush.msra.mxu0 %v462
    %4630 = vmatpush.msra.mxu0 %v446
    %4631 = vmatpush.msra.mxu0 %v430
    %4632 = vmatpush.msra.mxu0 %v414
    %4633 = vmatpush.msra.mxu0 %v398
    %4634 = vmatpush.msra.mxu0 %v382
    %4635 = vmatpush.msra.mxu0 %v366
    %4636 = vmatmul.f32.gmra.mxu0 %v2185
    %v4637 = vpop.f32.mrf.mxu0
    %v4638 = vadd.f32 %v4618, %v4637
    %4639 = vdwg.mxu0
    %4640 = vmatpush.msra.mxu0 %v862
    %4641 = vmatpush.msra.mxu0 %v846
    %4642 = vmatpush.msra.mxu0 %v830
    %4643 = vmatpush.msra.mxu0 %v814
    %4644 = vmatpush.msra.mxu0 %v798
    %4645 = vmatpush.msra.mxu0 %v782
    %4646 = vmatpush.msra.mxu0 %v766
    %4647 = vmatpush.msra.mxu0 %v750
    %4648 = vmatpush.msra.mxu0 %v734
    %4649 = vmatpush.msra.mxu0 %v718
    %4650 = vmatpush.msra.mxu0 %v702
    %4651 = vmatpush.msra.mxu0 %v686
    %4652 = vmatpush.msra.mxu0 %v670
    %4653 = vmatpush.msra.mxu0 %v654
    %4654 = vmatpush.msra.mxu0 %v638
    %4655 = vmatpush.msra.mxu0 %v622
    %4656 = vmatmul.f32.gmra.mxu0 %v2186
    %v4657 = vpop.f32.mrf.mxu0
    %v4658 = vadd.f32 %v4638, %v4657
    %4659 = vdwg.mxu0
    %4660 = vmatpush.msra.mxu0 %v1118
    %4661 = vmatpush.msra.mxu0 %v1102
    %4662 = vmatpush.msra.mxu0 %v1086
    %4663 = vmatpush.msra.mxu0 %v1070
    %4664 = vmatpush.msra.mxu0 %v1054
    %4665 = vmatpush.msra.mxu0 %v1038
    %4666 = vmatpush.msra.mxu0 %v1022
    %4667 = vmatpush.msra.mxu0 %v1006
    %4668 = vmatpush.msra.mxu0 %v990
    %4669 = vmatpush.msra.mxu0 %v974
    %4670 = vmatpush.msra.mxu0 %v958
    %4671 = vmatpush.msra.mxu0 %v942
    %4672 = vmatpush.msra.mxu0 %v926
    %4673 = vmatpush.msra.mxu0 %v910
    %4674 = vmatpush.msra.mxu0 %v894
    %4675 = vmatpush.msra.mxu0 %v878
    %4676 = vmatmul.f32.gmra.mxu0 %v2187
    %v4677 = vpop.f32.mrf.mxu0
    %v4678 = vadd.f32 %v4658, %v4677
    %4679 = vdwg.mxu0
    %4680 = vmatpush.msra.mxu0 %v1374
    %4681 = vmatpush.msra.mxu0 %v1358
    %4682 = vmatpush.msra.mxu0 %v1342
    %4683 = vmatpush.msra.mxu0 %v1326
    %4684 = vmatpush.msra.mxu0 %v1310
    %4685 = vmatpush.msra.mxu0 %v1294
    %4686 = vmatpush.msra.mxu0 %v1278
    %4687 = vmatpush.msra.mxu0 %v1262
    %4688 = vmatpush.msra.mxu0 %v1246
    %4689 = vmatpush.msra.mxu0 %v1230
    %4690 = vmatpush.msra.mxu0 %v1214
    %4691 = vmatpush.msra.mxu0 %v1198
    %4692 = vmatpush.msra.mxu0 %v1182
    %4693 = vmatpush.msra.mxu0 %v1166
    %4694 = vmatpush.msra.mxu0 %v1150
    %4695 = vmatpush.msra.mxu0 %v1134
    %4696 = vmatmul.f32.gmra.mxu0 %v2188
    %v4697 = vpop.f32.mrf.mxu0
    %v4698 = vadd.f32 %v4678, %v4697
    %4699 = vdwg.mxu0
    %4700 = vmatpush.msra.mxu0 %v1630
    %4701 = vmatpush.msra.mxu0 %v1614
    %4702 = vmatpush.msra.mxu0 %v1598
    %4703 = vmatpush.msra.mxu0 %v1582
    %4704 = vmatpush.msra.mxu0 %v1566
    %4705 = vmatpush.msra.mxu0 %v1550
    %4706 = vmatpush.msra.mxu0 %v1534
    %4707 = vmatpush.msra.mxu0 %v1518
    %4708 = vmatpush.msra.mxu0 %v1502
    %4709 = vmatpush.msra.mxu0 %v1486
    %4710 = vmatpush.msra.mxu0 %v1470
    %4711 = vmatpush.msra.mxu0 %v1454
    %4712 = vmatpush.msra.mxu0 %v1438
    %4713 = vmatpush.msra.mxu0 %v1422
    %4714 = vmatpush.msra.mxu0 %v1406
    %4715 = vmatpush.msra.mxu0 %v1390
    %4716 = vmatmul.f32.gmra.mxu0 %v2189
    %v4717 = vpop.f32.mrf.mxu0
    %v4718 = vadd.f32 %v4698, %v4717
    %4719 = vdwg.mxu0
    %4720 = vmatpush.msra.mxu0 %v1886
    %4721 = vmatpush.msra.mxu0 %v1870
    %4722 = vmatpush.msra.mxu0 %v1854
    %4723 = vmatpush.msra.mxu0 %v1838
    %4724 = vmatpush.msra.mxu0 %v1822
    %4725 = vmatpush.msra.mxu0 %v1806
    %4726 = vmatpush.msra.mxu0 %v1790
    %4727 = vmatpush.msra.mxu0 %v1774
    %4728 = vmatpush.msra.mxu0 %v1758
    %4729 = vmatpush.msra.mxu0 %v1742
    %4730 = vmatpush.msra.mxu0 %v1726
    %4731 = vmatpush.msra.mxu0 %v1710
    %4732 = vmatpush.msra.mxu0 %v1694
    %4733 = vmatpush.msra.mxu0 %v1678
    %4734 = vmatpush.msra.mxu0 %v1662
    %4735 = vmatpush.msra.mxu0 %v1646
    %4736 = vmatmul.f32.gmra.mxu0 %v2190
    %v4737 = vpop.f32.mrf.mxu0
    %v4738 = vadd.f32 %v4718, %v4737
    %4739 = vdwg.mxu0
    %4740 = vmatpush.msra.mxu0 %v2142
    %4741 = vmatpush.msra.mxu0 %v2126
    %4742 = vmatpush.msra.mxu0 %v2110
    %4743 = vmatpush.msra.mxu0 %v2094
    %4744 = vmatpush.msra.mxu0 %v2078
    %4745 = vmatpush.msra.mxu0 %v2062
    %4746 = vmatpush.msra.mxu0 %v2046
    %4747 = vmatpush.msra.mxu0 %v2030
    %4748 = vmatpush.msra.mxu0 %v2014
    %4749 = vmatpush.msra.mxu0 %v1998
    %4750 = vmatpush.msra.mxu0 %v1982
    %4751 = vmatpush.msra.mxu0 %v1966
    %4752 = vmatpush.msra.mxu0 %v1950
    %4753 = vmatpush.msra.mxu0 %v1934
    %4754 = vmatpush.msra.mxu0 %v1918
    %4755 = vmatpush.msra.mxu0 %v1902
    %4756 = vmatmul.f32.gmra.mxu0 %v2191
    %v4757 = vpop.f32.mrf.mxu0
    %v4758 = vadd.f32 %v4738, %v4757
    %4759 = vdwg.mxu0
    %v4760 = vmax.f32 %v2358, 0.0
    %v4761 = vmax.f32 %v2518, 0.0
    %v4762 = vmax.f32 %v2678, 0.0
    %v4763 = vmax.f32 %v2838, 0.0
    %v4764 = vmax.f32 %v2998, 0.0
    %v4765 = vmax.f32 %v3158, 0.0
    %v4766 = vmax.f32 %v3318, 0.0
    %v4767 = vmax.f32 %v3478, 0.0
    %v4768 = vmax.f32 %v3638, 0.0
    %v4769 = vmax.f32 %v3798, 0.0
    %v4770 = vmax.f32 %v3958, 0.0
    %v4771 = vmax.f32 %v4118, 0.0
    %v4772 = vmax.f32 %v4278, 0.0
    %v4773 = vmax.f32 %v4438, 0.0
    %v4774 = vmax.f32 %v4598, 0.0
    %v4775 = vmax.f32 %v4758, 0.0
    %v4776 = vld [vmem:[#allocation8] sm:$0xff]
    %v4777 = vld [vmem:[#allocation8 + $0x8] sm:$0xff]
    %v4778 = vld [vmem:[#allocation8 + $0x10] sm:$0xff]
    %v4779 = vld [vmem:[#allocation8 + $0x18] sm:$0xff]
    %v4780 = vld [vmem:[#allocation8 + $0x20] sm:$0xff]
    %v4781 = vld [vmem:[#allocation8 + $0x28] sm:$0xff]
    %v4782 = vld [vmem:[#allocation8 + $0x30] sm:$0xff]
    %v4783 = vld [vmem:[#allocation8 + $0x38] sm:$0xff]
    %v4784 = vld [vmem:[#allocation8 + $0x40] sm:$0xff]
    %v4785 = vld [vmem:[#allocation8 + $0x48] sm:$0xff]
    %v4786 = vld [vmem:[#allocation8 + $0x50] sm:$0xff]
    %v4787 = vld [vmem:[#allocation8 + $0x58] sm:$0xff]
    %v4788 = vld [vmem:[#allocation8 + $0x60] sm:$0xff]
    %v4789 = vld [vmem:[#allocation8 + $0x68] sm:$0xff]
    %v4790 = vld [vmem:[#allocation8 + $0x70] sm:$0xff]
    %v4791 = vld [vmem:[#allocation8 + $0x78] sm:$0xff]
    %v4792 = vld [vmem:[#allocation8 + $0x80] sm:$0xff]
    %v4793 = vld [vmem:[#allocation8 + $0x88] sm:$0xff]
    %v4794 = vld [vmem:[#allocation8 + $0x90] sm:$0xff]
    %v4795 = vld [vmem:[#allocation8 + $0x98] sm:$0xff]
    %v4796 = vld [vmem:[#allocation8 + $0xa0] sm:$0xff]
    %v4797 = vld [vmem:[#allocation8 + $0xa8] sm:$0xff]
    %v4798 = vld [vmem:[#allocation8 + $0xb0] sm:$0xff]
    %v4799 = vld [vmem:[#allocation8 + $0xb8] sm:$0xff]
    %v4800 = vld [vmem:[#allocation8 + $0xc0] sm:$0xff]
    %v4801 = vld [vmem:[#allocation8 + $0xc8] sm:$0xff]
    %v4802 = vld [vmem:[#allocation8 + $0xd0] sm:$0xff]
    %v4803 = vld [vmem:[#allocation8 + $0xd8] sm:$0xff]
    %v4804 = vld [vmem:[#allocation8 + $0xe0] sm:$0xff]
    %v4805 = vld [vmem:[#allocation8 + $0xe8] sm:$0xff]
    %v4806 = vld [vmem:[#allocation8 + $0xf0] sm:$0xff]
    %v4807 = vld [vmem:[#allocation8 + $0xf8] sm:$0xff]
    %v4808 = vld [vmem:[#allocation8 + $0x100] sm:$0xff]
    %v4809 = vld [vmem:[#allocation8 + $0x108] sm:$0xff]
    %v4810 = vld [vmem:[#allocation8 + $0x110] sm:$0xff]
    %v4811 = vld [vmem:[#allocation8 + $0x118] sm:$0xff]
    %v4812 = vld [vmem:[#allocation8 + $0x120] sm:$0xff]
    %v4813 = vld [vmem:[#allocation8 + $0x128] sm:$0xff]
    %v4814 = vld [vmem:[#allocation8 + $0x130] sm:$0xff]
    %v4815 = vld [vmem:[#allocation8 + $0x138] sm:$0xff]
    %v4816 = vld [vmem:[#allocation8 + $0x140] sm:$0xff]
    %v4817 = vld [vmem:[#allocation8 + $0x148] sm:$0xff]
    %v4818 = vld [vmem:[#allocation8 + $0x150] sm:$0xff]
    %v4819 = vld [vmem:[#allocation8 + $0x158] sm:$0xff]
    %v4820 = vld [vmem:[#allocation8 + $0x160] sm:$0xff]
    %v4821 = vld [vmem:[#allocation8 + $0x168] sm:$0xff]
    %v4822 = vld [vmem:[#allocation8 + $0x170] sm:$0xff]
    %v4823 = vld [vmem:[#allocation8 + $0x178] sm:$0xff]
    %v4824 = vld [vmem:[#allocation8 + $0x180] sm:$0xff]
    %v4825 = vld [vmem:[#allocation8 + $0x188] sm:$0xff]
    %v4826 = vld [vmem:[#allocation8 + $0x190] sm:$0xff]
    %v4827 = vld [vmem:[#allocation8 + $0x198] sm:$0xff]
    %v4828 = vld [vmem:[#allocation8 + $0x1a0] sm:$0xff]
    %v4829 = vld [vmem:[#allocation8 + $0x1a8] sm:$0xff]
    %v4830 = vld [vmem:[#allocation8 + $0x1b0] sm:$0xff]
    %v4831 = vld [vmem:[#allocation8 + $0x1b8] sm:$0xff]
    %v4832 = vld [vmem:[#allocation8 + $0x1c0] sm:$0xff]
    %v4833 = vld [vmem:[#allocation8 + $0x1c8] sm:$0xff]
    %v4834 = vld [vmem:[#allocation8 + $0x1d0] sm:$0xff]
    %v4835 = vld [vmem:[#allocation8 + $0x1d8] sm:$0xff]
    %v4836 = vld [vmem:[#allocation8 + $0x1e0] sm:$0xff]
    %v4837 = vld [vmem:[#allocation8 + $0x1e8] sm:$0xff]
    %v4838 = vld [vmem:[#allocation8 + $0x1f0] sm:$0xff]
    %v4839 = vld [vmem:[#allocation8 + $0x1f8] sm:$0xff]
    %v4840 = vld [vmem:[#allocation8 + $0x200] sm:$0xff]
    %v4841 = vld [vmem:[#allocation8 + $0x208] sm:$0xff]
    %v4842 = vld [vmem:[#allocation8 + $0x210] sm:$0xff]
    %v4843 = vld [vmem:[#allocation8 + $0x218] sm:$0xff]
    %v4844 = vld [vmem:[#allocation8 + $0x220] sm:$0xff]
    %v4845 = vld [vmem:[#allocation8 + $0x228] sm:$0xff]
    %v4846 = vld [vmem:[#allocation8 + $0x230] sm:$0xff]
    %v4847 = vld [vmem:[#allocation8 + $0x238] sm:$0xff]
    %v4848 = vld [vmem:[#allocation8 + $0x240] sm:$0xff]
    %v4849 = vld [vmem:[#allocation8 + $0x248] sm:$0xff]
    %v4850 = vld [vmem:[#allocation8 + $0x250] sm:$0xff]
    %v4851 = vld [vmem:[#allocation8 + $0x258] sm:$0xff]
    %v4852 = vld [vmem:[#allocation8 + $0x260] sm:$0xff]
    %v4853 = vld [vmem:[#allocation8 + $0x268] sm:$0xff]
    %v4854 = vld [vmem:[#allocation8 + $0x270] sm:$0xff]
    %v4855 = vld [vmem:[#allocation8 + $0x278] sm:$0xff]
    %v4856 = vld [vmem:[#allocation8 + $0x280] sm:$0xff]
    %v4857 = vld [vmem:[#allocation8 + $0x288] sm:$0xff]
    %v4858 = vld [vmem:[#allocation8 + $0x290] sm:$0xff]
    %v4859 = vld [vmem:[#allocation8 + $0x298] sm:$0xff]
    %v4860 = vld [vmem:[#allocation8 + $0x2a0] sm:$0xff]
    %v4861 = vld [vmem:[#allocation8 + $0x2a8] sm:$0xff]
    %v4862 = vld [vmem:[#allocation8 + $0x2b0] sm:$0xff]
    %v4863 = vld [vmem:[#allocation8 + $0x2b8] sm:$0xff]
    %v4864 = vld [vmem:[#allocation8 + $0x2c0] sm:$0xff]
    %v4865 = vld [vmem:[#allocation8 + $0x2c8] sm:$0xff]
    %v4866 = vld [vmem:[#allocation8 + $0x2d0] sm:$0xff]
    %v4867 = vld [vmem:[#allocation8 + $0x2d8] sm:$0xff]
    %v4868 = vld [vmem:[#allocation8 + $0x2e0] sm:$0xff]
    %v4869 = vld [vmem:[#allocation8 + $0x2e8] sm:$0xff]
    %v4870 = vld [vmem:[#allocation8 + $0x2f0] sm:$0xff]
    %v4871 = vld [vmem:[#allocation8 + $0x2f8] sm:$0xff]
    %v4872 = vld [vmem:[#allocation8 + $0x300] sm:$0xff]
    %v4873 = vld [vmem:[#allocation8 + $0x308] sm:$0xff]
    %v4874 = vld [vmem:[#allocation8 + $0x310] sm:$0xff]
    %v4875 = vld [vmem:[#allocation8 + $0x318] sm:$0xff]
    %v4876 = vld [vmem:[#allocation8 + $0x320] sm:$0xff]
    %v4877 = vld [vmem:[#allocation8 + $0x328] sm:$0xff]
    %v4878 = vld [vmem:[#allocation8 + $0x330] sm:$0xff]
    %v4879 = vld [vmem:[#allocation8 + $0x338] sm:$0xff]
    %v4880 = vld [vmem:[#allocation8 + $0x340] sm:$0xff]
    %v4881 = vld [vmem:[#allocation8 + $0x348] sm:$0xff]
    %v4882 = vld [vmem:[#allocation8 + $0x350] sm:$0xff]
    %v4883 = vld [vmem:[#allocation8 + $0x358] sm:$0xff]
    %v4884 = vld [vmem:[#allocation8 + $0x360] sm:$0xff]
    %v4885 = vld [vmem:[#allocation8 + $0x368] sm:$0xff]
    %v4886 = vld [vmem:[#allocation8 + $0x370] sm:$0xff]
    %v4887 = vld [vmem:[#allocation8 + $0x378] sm:$0xff]
    %v4888 = vld [vmem:[#allocation8 + $0x380] sm:$0xff]
    %v4889 = vld [vmem:[#allocation8 + $0x388] sm:$0xff]
    %v4890 = vld [vmem:[#allocation8 + $0x390] sm:$0xff]
    %v4891 = vld [vmem:[#allocation8 + $0x398] sm:$0xff]
    %v4892 = vld [vmem:[#allocation8 + $0x3a0] sm:$0xff]
    %v4893 = vld [vmem:[#allocation8 + $0x3a8] sm:$0xff]
    %v4894 = vld [vmem:[#allocation8 + $0x3b0] sm:$0xff]
    %v4895 = vld [vmem:[#allocation8 + $0x3b8] sm:$0xff]
    %v4896 = vld [vmem:[#allocation8 + $0x3c0] sm:$0xff]
    %v4897 = vld [vmem:[#allocation8 + $0x3c8] sm:$0xff]
    %v4898 = vld [vmem:[#allocation8 + $0x3d0] sm:$0xff]
    %v4899 = vld [vmem:[#allocation8 + $0x3d8] sm:$0xff]
    %v4900 = vld [vmem:[#allocation8 + $0x3e0] sm:$0xff]
    %v4901 = vld [vmem:[#allocation8 + $0x3e8] sm:$0xff]
    %v4902 = vld [vmem:[#allocation8 + $0x3f0] sm:$0xff]
    %v4903 = vld [vmem:[#allocation8 + $0x3f8] sm:$0xff]
    %v4904 = vld [vmem:[#allocation8 + $0x400] sm:$0xff]
    %v4905 = vld [vmem:[#allocation8 + $0x408] sm:$0xff]
    %v4906 = vld [vmem:[#allocation8 + $0x410] sm:$0xff]
    %v4907 = vld [vmem:[#allocation8 + $0x418] sm:$0xff]
    %v4908 = vld [vmem:[#allocation8 + $0x420] sm:$0xff]
    %v4909 = vld [vmem:[#allocation8 + $0x428] sm:$0xff]
    %v4910 = vld [vmem:[#allocation8 + $0x430] sm:$0xff]
    %v4911 = vld [vmem:[#allocation8 + $0x438] sm:$0xff]
    %v4912 = vld [vmem:[#allocation8 + $0x440] sm:$0xff]
    %v4913 = vld [vmem:[#allocation8 + $0x448] sm:$0xff]
    %v4914 = vld [vmem:[#allocation8 + $0x450] sm:$0xff]
    %v4915 = vld [vmem:[#allocation8 + $0x458] sm:$0xff]
    %v4916 = vld [vmem:[#allocation8 + $0x460] sm:$0xff]
    %v4917 = vld [vmem:[#allocation8 + $0x468] sm:$0xff]
    %v4918 = vld [vmem:[#allocation8 + $0x470] sm:$0xff]
    %v4919 = vld [vmem:[#allocation8 + $0x478] sm:$0xff]
    %v4920 = vld [vmem:[#allocation8 + $0x480] sm:$0xff]
    %v4921 = vld [vmem:[#allocation8 + $0x488] sm:$0xff]
    %v4922 = vld [vmem:[#allocation8 + $0x490] sm:$0xff]
    %v4923 = vld [vmem:[#allocation8 + $0x498] sm:$0xff]
    %v4924 = vld [vmem:[#allocation8 + $0x4a0] sm:$0xff]
    %v4925 = vld [vmem:[#allocation8 + $0x4a8] sm:$0xff]
    %v4926 = vld [vmem:[#allocation8 + $0x4b0] sm:$0xff]
    %v4927 = vld [vmem:[#allocation8 + $0x4b8] sm:$0xff]
    %v4928 = vld [vmem:[#allocation8 + $0x4c0] sm:$0xff]
    %v4929 = vld [vmem:[#allocation8 + $0x4c8] sm:$0xff]
    %v4930 = vld [vmem:[#allocation8 + $0x4d0] sm:$0xff]
    %v4931 = vld [vmem:[#allocation8 + $0x4d8] sm:$0xff]
    %v4932 = vld [vmem:[#allocation8 + $0x4e0] sm:$0xff]
    %v4933 = vld [vmem:[#allocation8 + $0x4e8] sm:$0xff]
    %v4934 = vld [vmem:[#allocation8 + $0x4f0] sm:$0xff]
    %v4935 = vld [vmem:[#allocation8 + $0x4f8] sm:$0xff]
    %v4936 = vld [vmem:[#allocation8 + $0x500] sm:$0xff]
    %v4937 = vld [vmem:[#allocation8 + $0x508] sm:$0xff]
    %v4938 = vld [vmem:[#allocation8 + $0x510] sm:$0xff]
    %v4939 = vld [vmem:[#allocation8 + $0x518] sm:$0xff]
    %v4940 = vld [vmem:[#allocation8 + $0x520] sm:$0xff]
    %v4941 = vld [vmem:[#allocation8 + $0x528] sm:$0xff]
    %v4942 = vld [vmem:[#allocation8 + $0x530] sm:$0xff]
    %v4943 = vld [vmem:[#allocation8 + $0x538] sm:$0xff]
    %v4944 = vld [vmem:[#allocation8 + $0x540] sm:$0xff]
    %v4945 = vld [vmem:[#allocation8 + $0x548] sm:$0xff]
    %v4946 = vld [vmem:[#allocation8 + $0x550] sm:$0xff]
    %v4947 = vld [vmem:[#allocation8 + $0x558] sm:$0xff]
    %v4948 = vld [vmem:[#allocation8 + $0x560] sm:$0xff]
    %v4949 = vld [vmem:[#allocation8 + $0x568] sm:$0xff]
    %v4950 = vld [vmem:[#allocation8 + $0x570] sm:$0xff]
    %v4951 = vld [vmem:[#allocation8 + $0x578] sm:$0xff]
    %v4952 = vld [vmem:[#allocation8 + $0x580] sm:$0xff]
    %v4953 = vld [vmem:[#allocation8 + $0x588] sm:$0xff]
    %v4954 = vld [vmem:[#allocation8 + $0x590] sm:$0xff]
    %v4955 = vld [vmem:[#allocation8 + $0x598] sm:$0xff]
    %v4956 = vld [vmem:[#allocation8 + $0x5a0] sm:$0xff]
    %v4957 = vld [vmem:[#allocation8 + $0x5a8] sm:$0xff]
    %v4958 = vld [vmem:[#allocation8 + $0x5b0] sm:$0xff]
    %v4959 = vld [vmem:[#allocation8 + $0x5b8] sm:$0xff]
    %v4960 = vld [vmem:[#allocation8 + $0x5c0] sm:$0xff]
    %v4961 = vld [vmem:[#allocation8 + $0x5c8] sm:$0xff]
    %v4962 = vld [vmem:[#allocation8 + $0x5d0] sm:$0xff]
    %v4963 = vld [vmem:[#allocation8 + $0x5d8] sm:$0xff]
    %v4964 = vld [vmem:[#allocation8 + $0x5e0] sm:$0xff]
    %v4965 = vld [vmem:[#allocation8 + $0x5e8] sm:$0xff]
    %v4966 = vld [vmem:[#allocation8 + $0x5f0] sm:$0xff]
    %v4967 = vld [vmem:[#allocation8 + $0x5f8] sm:$0xff]
    %v4968 = vld [vmem:[#allocation8 + $0x600] sm:$0xff]
    %v4969 = vld [vmem:[#allocation8 + $0x608] sm:$0xff]
    %v4970 = vld [vmem:[#allocation8 + $0x610] sm:$0xff]
    %v4971 = vld [vmem:[#allocation8 + $0x618] sm:$0xff]
    %v4972 = vld [vmem:[#allocation8 + $0x620] sm:$0xff]
    %v4973 = vld [vmem:[#allocation8 + $0x628] sm:$0xff]
    %v4974 = vld [vmem:[#allocation8 + $0x630] sm:$0xff]
    %v4975 = vld [vmem:[#allocation8 + $0x638] sm:$0xff]
    %v4976 = vld [vmem:[#allocation8 + $0x640] sm:$0xff]
    %v4977 = vld [vmem:[#allocation8 + $0x648] sm:$0xff]
    %v4978 = vld [vmem:[#allocation8 + $0x650] sm:$0xff]
    %v4979 = vld [vmem:[#allocation8 + $0x658] sm:$0xff]
    %v4980 = vld [vmem:[#allocation8 + $0x660] sm:$0xff]
    %v4981 = vld [vmem:[#allocation8 + $0x668] sm:$0xff]
    %v4982 = vld [vmem:[#allocation8 + $0x670] sm:$0xff]
    %v4983 = vld [vmem:[#allocation8 + $0x678] sm:$0xff]
    %v4984 = vld [vmem:[#allocation8 + $0x680] sm:$0xff]
    %v4985 = vld [vmem:[#allocation8 + $0x688] sm:$0xff]
    %v4986 = vld [vmem:[#allocation8 + $0x690] sm:$0xff]
    %v4987 = vld [vmem:[#allocation8 + $0x698] sm:$0xff]
    %v4988 = vld [vmem:[#allocation8 + $0x6a0] sm:$0xff]
    %v4989 = vld [vmem:[#allocation8 + $0x6a8] sm:$0xff]
    %v4990 = vld [vmem:[#allocation8 + $0x6b0] sm:$0xff]
    %v4991 = vld [vmem:[#allocation8 + $0x6b8] sm:$0xff]
    %v4992 = vld [vmem:[#allocation8 + $0x6c0] sm:$0xff]
    %v4993 = vld [vmem:[#allocation8 + $0x6c8] sm:$0xff]
    %v4994 = vld [vmem:[#allocation8 + $0x6d0] sm:$0xff]
    %v4995 = vld [vmem:[#allocation8 + $0x6d8] sm:$0xff]
    %v4996 = vld [vmem:[#allocation8 + $0x6e0] sm:$0xff]
    %v4997 = vld [vmem:[#allocation8 + $0x6e8] sm:$0xff]
    %v4998 = vld [vmem:[#allocation8 + $0x6f0] sm:$0xff]
    %v4999 = vld [vmem:[#allocation8 + $0x6f8] sm:$0xff]
    %v5000 = vld [vmem:[#allocation8 + $0x700] sm:$0xff]
    %v5001 = vld [vmem:[#allocation8 + $0x708] sm:$0xff]
    %v5002 = vld [vmem:[#allocation8 + $0x710] sm:$0xff]
    %v5003 = vld [vmem:[#allocation8 + $0x718] sm:$0xff]
    %v5004 = vld [vmem:[#allocation8 + $0x720] sm:$0xff]
    %v5005 = vld [vmem:[#allocation8 + $0x728] sm:$0xff]
    %v5006 = vld [vmem:[#allocation8 + $0x730] sm:$0xff]
    %v5007 = vld [vmem:[#allocation8 + $0x738] sm:$0xff]
    %v5008 = vld [vmem:[#allocation8 + $0x740] sm:$0xff]
    %v5009 = vld [vmem:[#allocation8 + $0x748] sm:$0xff]
    %v5010 = vld [vmem:[#allocation8 + $0x750] sm:$0xff]
    %v5011 = vld [vmem:[#allocation8 + $0x758] sm:$0xff]
    %v5012 = vld [vmem:[#allocation8 + $0x760] sm:$0xff]
    %v5013 = vld [vmem:[#allocation8 + $0x768] sm:$0xff]
    %v5014 = vld [vmem:[#allocation8 + $0x770] sm:$0xff]
    %v5015 = vld [vmem:[#allocation8 + $0x778] sm:$0xff]
    %v5016 = vld [vmem:[#allocation8 + $0x780] sm:$0xff]
    %v5017 = vld [vmem:[#allocation8 + $0x788] sm:$0xff]
    %v5018 = vld [vmem:[#allocation8 + $0x790] sm:$0xff]
    %v5019 = vld [vmem:[#allocation8 + $0x798] sm:$0xff]
    %v5020 = vld [vmem:[#allocation8 + $0x7a0] sm:$0xff]
    %v5021 = vld [vmem:[#allocation8 + $0x7a8] sm:$0xff]
    %v5022 = vld [vmem:[#allocation8 + $0x7b0] sm:$0xff]
    %v5023 = vld [vmem:[#allocation8 + $0x7b8] sm:$0xff]
    %v5024 = vld [vmem:[#allocation8 + $0x7c0] sm:$0xff]
    %v5025 = vld [vmem:[#allocation8 + $0x7c8] sm:$0xff]
    %v5026 = vld [vmem:[#allocation8 + $0x7d0] sm:$0xff]
    %v5027 = vld [vmem:[#allocation8 + $0x7d8] sm:$0xff]
    %v5028 = vld [vmem:[#allocation8 + $0x7e0] sm:$0xff]
    %v5029 = vld [vmem:[#allocation8 + $0x7e8] sm:$0xff]
    %v5030 = vld [vmem:[#allocation8 + $0x7f0] sm:$0xff]
    %v5031 = vld [vmem:[#allocation8 + $0x7f8] sm:$0xff]
    %v5032 = vld [vmem:[#allocation10] sm:$0x1]
    %v5034 = vperm.slane %v5032, 0
    %5036 = vmatpush.msra.mxu0 %v4791
    %5037 = vmatpush.msra.mxu0 %v4790
    %5038 = vmatpush.msra.mxu0 %v4789
    %5039 = vmatpush.msra.mxu0 %v4788
    %5040 = vmatpush.msra.mxu0 %v4787
    %5041 = vmatpush.msra.mxu0 %v4786
    %5042 = vmatpush.msra.mxu0 %v4785
    %5043 = vmatpush.msra.mxu0 %v4784
    %5044 = vmatpush.msra.mxu0 %v4783
    %5045 = vmatpush.msra.mxu0 %v4782
    %5046 = vmatpush.msra.mxu0 %v4781
    %5047 = vmatpush.msra.mxu0 %v4780
    %5048 = vmatpush.msra.mxu0 %v4779
    %5049 = vmatpush.msra.mxu0 %v4778
    %5050 = vmatpush.msra.mxu0 %v4777
    %5051 = vmatpush.msra.mxu0 %v4776
    %5052 = vmatmul.f32.gmra.mxu0 %v4760
    %v5053 = vpop.f32.mrf.mxu0
    %v5054 = vadd.f32 %v5034, %v5053
    %5055 = vdwg.mxu0
    %5056 = vmatpush.msra.mxu0 %v4807
    %5057 = vmatpush.msra.mxu0 %v4806
    %5058 = vmatpush.msra.mxu0 %v4805
    %5059 = vmatpush.msra.mxu0 %v4804
    %5060 = vmatpush.msra.mxu0 %v4803
    %5061 = vmatpush.msra.mxu0 %v4802
    %5062 = vmatpush.msra.mxu0 %v4801
    %5063 = vmatpush.msra.mxu0 %v4800
    %5064 = vmatpush.msra.mxu0 %v4799
    %5065 = vmatpush.msra.mxu0 %v4798
    %5066 = vmatpush.msra.mxu0 %v4797
    %5067 = vmatpush.msra.mxu0 %v4796
    %5068 = vmatpush.msra.mxu0 %v4795
    %5069 = vmatpush.msra.mxu0 %v4794
    %5070 = vmatpush.msra.mxu0 %v4793
    %5071 = vmatpush.msra.mxu0 %v4792
    %5072 = vmatmul.f32.gmra.mxu0 %v4761
    %v5073 = vpop.f32.mrf.mxu0
    %v5074 = vadd.f32 %v5054, %v5073
    %5075 = vdwg.mxu0
    %5076 = vmatpush.msra.mxu0 %v4823
    %5077 = vmatpush.msra.mxu0 %v4822
    %5078 = vmatpush.msra.mxu0 %v4821
    %5079 = vmatpush.msra.mxu0 %v4820
    %5080 = vmatpush.msra.mxu0 %v4819
    %5081 = vmatpush.msra.mxu0 %v4818
    %5082 = vmatpush.msra.mxu0 %v4817
    %5083 = vmatpush.msra.mxu0 %v4816
    %5084 = vmatpush.msra.mxu0 %v4815
    %5085 = vmatpush.msra.mxu0 %v4814
    %5086 = vmatpush.msra.mxu0 %v4813
    %5087 = vmatpush.msra.mxu0 %v4812
    %5088 = vmatpush.msra.mxu0 %v4811
    %5089 = vmatpush.msra.mxu0 %v4810
    %5090 = vmatpush.msra.mxu0 %v4809
    %5091 = vmatpush.msra.mxu0 %v4808
    %5092 = vmatmul.f32.gmra.mxu0 %v4762
    %v5093 = vpop.f32.mrf.mxu0
    %v5094 = vadd.f32 %v5074, %v5093
    %5095 = vdwg.mxu0
    %5096 = vmatpush.msra.mxu0 %v4839
    %5097 = vmatpush.msra.mxu0 %v4838
    %5098 = vmatpush.msra.mxu0 %v4837
    %5099 = vmatpush.msra.mxu0 %v4836
    %5100 = vmatpush.msra.mxu0 %v4835
    %5101 = vmatpush.msra.mxu0 %v4834
    %5102 = vmatpush.msra.mxu0 %v4833
    %5103 = vmatpush.msra.mxu0 %v4832
    %5104 = vmatpush.msra.mxu0 %v4831
    %5105 = vmatpush.msra.mxu0 %v4830
    %5106 = vmatpush.msra.mxu0 %v4829
    %5107 = vmatpush.msra.mxu0 %v4828
    %5108 = vmatpush.msra.mxu0 %v4827
    %5109 = vmatpush.msra.mxu0 %v4826
    %5110 = vmatpush.msra.mxu0 %v4825
    %5111 = vmatpush.msra.mxu0 %v4824
    %5112 = vmatmul.f32.gmra.mxu0 %v4763
    %v5113 = vpop.f32.mrf.mxu0
    %v5114 = vadd.f32 %v5094, %v5113
    %5115 = vdwg.mxu0
    %5116 = vmatpush.msra.mxu0 %v4855
    %5117 = vmatpush.msra.mxu0 %v4854
    %5118 = vmatpush.msra.mxu0 %v4853
    %5119 = vmatpush.msra.mxu0 %v4852
    %5120 = vmatpush.msra.mxu0 %v4851
    %5121 = vmatpush.msra.mxu0 %v4850
    %5122 = vmatpush.msra.mxu0 %v4849
    %5123 = vmatpush.msra.mxu0 %v4848
    %5124 = vmatpush.msra.mxu0 %v4847
    %5125 = vmatpush.msra.mxu0 %v4846
    %5126 = vmatpush.msra.mxu0 %v4845
    %5127 = vmatpush.msra.mxu0 %v4844
    %5128 = vmatpush.msra.mxu0 %v4843
    %5129 = vmatpush.msra.mxu0 %v4842
    %5130 = vmatpush.msra.mxu0 %v4841
    %5131 = vmatpush.msra.mxu0 %v4840
    %5132 = vmatmul.f32.gmra.mxu0 %v4764
    %v5133 = vpop.f32.mrf.mxu0
    %v5134 = vadd.f32 %v5114, %v5133
    %5135 = vdwg.mxu0
    %5136 = vmatpush.msra.mxu0 %v4871
    %5137 = vmatpush.msra.mxu0 %v4870
    %5138 = vmatpush.msra.mxu0 %v4869
    %5139 = vmatpush.msra.mxu0 %v4868
    %5140 = vmatpush.msra.mxu0 %v4867
    %5141 = vmatpush.msra.mxu0 %v4866
    %5142 = vmatpush.msra.mxu0 %v4865
    %5143 = vmatpush.msra.mxu0 %v4864
    %5144 = vmatpush.msra.mxu0 %v4863
    %5145 = vmatpush.msra.mxu0 %v4862
    %5146 = vmatpush.msra.mxu0 %v4861
    %5147 = vmatpush.msra.mxu0 %v4860
    %5148 = vmatpush.msra.mxu0 %v4859
    %5149 = vmatpush.msra.mxu0 %v4858
    %5150 = vmatpush.msra.mxu0 %v4857
    %5151 = vmatpush.msra.mxu0 %v4856
    %5152 = vmatmul.f32.gmra.mxu0 %v4765
    %v5153 = vpop.f32.mrf.mxu0
    %v5154 = vadd.f32 %v5134, %v5153
    %5155 = vdwg.mxu0
    %5156 = vmatpush.msra.mxu0 %v4887
    %5157 = vmatpush.msra.mxu0 %v4886
    %5158 = vmatpush.msra.mxu0 %v4885
    %5159 = vmatpush.msra.mxu0 %v4884
    %5160 = vmatpush.msra.mxu0 %v4883
    %5161 = vmatpush.msra.mxu0 %v4882
    %5162 = vmatpush.msra.mxu0 %v4881
    %5163 = vmatpush.msra.mxu0 %v4880
    %5164 = vmatpush.msra.mxu0 %v4879
    %5165 = vmatpush.msra.mxu0 %v4878
    %5166 = vmatpush.msra.mxu0 %v4877
    %5167 = vmatpush.msra.mxu0 %v4876
    %5168 = vmatpush.msra.mxu0 %v4875
    %5169 = vmatpush.msra.mxu0 %v4874
    %5170 = vmatpush.msra.mxu0 %v4873
    %5171 = vmatpush.msra.mxu0 %v4872
    %5172 = vmatmul.f32.gmra.mxu0 %v4766
    %v5173 = vpop.f32.mrf.mxu0
    %v5174 = vadd.f32 %v5154, %v5173
    %5175 = vdwg.mxu0
    %5176 = vmatpush.msra.mxu0 %v4903
    %5177 = vmatpush.msra.mxu0 %v4902
    %5178 = vmatpush.msra.mxu0 %v4901
    %5179 = vmatpush.msra.mxu0 %v4900
    %5180 = vmatpush.msra.mxu0 %v4899
    %5181 = vmatpush.msra.mxu0 %v4898
    %5182 = vmatpush.msra.mxu0 %v4897
    %5183 = vmatpush.msra.mxu0 %v4896
    %5184 = vmatpush.msra.mxu0 %v4895
    %5185 = vmatpush.msra.mxu0 %v4894
    %5186 = vmatpush.msra.mxu0 %v4893
    %5187 = vmatpush.msra.mxu0 %v4892
    %5188 = vmatpush.msra.mxu0 %v4891
    %5189 = vmatpush.msra.mxu0 %v4890
    %5190 = vmatpush.msra.mxu0 %v4889
    %5191 = vmatpush.msra.mxu0 %v4888
    %5192 = vmatmul.f32.gmra.mxu0 %v4767
    %v5193 = vpop.f32.mrf.mxu0
    %v5194 = vadd.f32 %v5174, %v5193
    %5195 = vdwg.mxu0
    %5196 = vmatpush.msra.mxu0 %v4919
    %5197 = vmatpush.msra.mxu0 %v4918
    %5198 = vmatpush.msra.mxu0 %v4917
    %5199 = vmatpush.msra.mxu0 %v4916
    %5200 = vmatpush.msra.mxu0 %v4915
    %5201 = vmatpush.msra.mxu0 %v4914
    %5202 = vmatpush.msra.mxu0 %v4913
    %5203 = vmatpush.msra.mxu0 %v4912
    %5204 = vmatpush.msra.mxu0 %v4911
    %5205 = vmatpush.msra.mxu0 %v4910
    %5206 = vmatpush.msra.mxu0 %v4909
    %5207 = vmatpush.msra.mxu0 %v4908
    %5208 = vmatpush.msra.mxu0 %v4907
    %5209 = vmatpush.msra.mxu0 %v4906
    %5210 = vmatpush.msra.mxu0 %v4905
    %5211 = vmatpush.msra.mxu0 %v4904
    %5212 = vmatmul.f32.gmra.mxu0 %v4768
    %v5213 = vpop.f32.mrf.mxu0
    %v5214 = vadd.f32 %v5194, %v5213
    %5215 = vdwg.mxu0
    %5216 = vmatpush.msra.mxu0 %v4935
    %5217 = vmatpush.msra.mxu0 %v4934
    %5218 = vmatpush.msra.mxu0 %v4933
    %5219 = vmatpush.msra.mxu0 %v4932
    %5220 = vmatpush.msra.mxu0 %v4931
    %5221 = vmatpush.msra.mxu0 %v4930
    %5222 = vmatpush.msra.mxu0 %v4929
    %5223 = vmatpush.msra.mxu0 %v4928
    %5224 = vmatpush.msra.mxu0 %v4927
    %5225 = vmatpush.msra.mxu0 %v4926
    %5226 = vmatpush.msra.mxu0 %v4925
    %5227 = vmatpush.msra.mxu0 %v4924
    %5228 = vmatpush.msra.mxu0 %v4923
    %5229 = vmatpush.msra.mxu0 %v4922
    %5230 = vmatpush.msra.mxu0 %v4921
    %5231 = vmatpush.msra.mxu0 %v4920
    %5232 = vmatmul.f32.gmra.mxu0 %v4769
    %v5233 = vpop.f32.mrf.mxu0
    %v5234 = vadd.f32 %v5214, %v5233
    %5235 = vdwg.mxu0
    %5236 = vmatpush.msra.mxu0 %v4951
    %5237 = vmatpush.msra.mxu0 %v4950
    %5238 = vmatpush.msra.mxu0 %v4949
    %5239 = vmatpush.msra.mxu0 %v4948
    %5240 = vmatpush.msra.mxu0 %v4947
    %5241 = vmatpush.msra.mxu0 %v4946
    %5242 = vmatpush.msra.mxu0 %v4945
    %5243 = vmatpush.msra.mxu0 %v4944
    %5244 = vmatpush.msra.mxu0 %v4943
    %5245 = vmatpush.msra.mxu0 %v4942
    %5246 = vmatpush.msra.mxu0 %v4941
    %5247 = vmatpush.msra.mxu0 %v4940
    %5248 = vmatpush.msra.mxu0 %v4939
    %5249 = vmatpush.msra.mxu0 %v4938
    %5250 = vmatpush.msra.mxu0 %v4937
    %5251 = vmatpush.msra.mxu0 %v4936
    %5252 = vmatmul.f32.gmra.mxu0 %v4770
    %v5253 = vpop.f32.mrf.mxu0
    %v5254 = vadd.f32 %v5234, %v5253
    %5255 = vdwg.mxu0
    %5256 = vmatpush.msra.mxu0 %v4967
    %5257 = vmatpush.msra.mxu0 %v4966
    %5258 = vmatpush.msra.mxu0 %v4965
    %5259 = vmatpush.msra.mxu0 %v4964
    %5260 = vmatpush.msra.mxu0 %v4963
    %5261 = vmatpush.msra.mxu0 %v4962
    %5262 = vmatpush.msra.mxu0 %v4961
    %5263 = vmatpush.msra.mxu0 %v4960
    %5264 = vmatpush.msra.mxu0 %v4959
    %5265 = vmatpush.msra.mxu0 %v4958
    %5266 = vmatpush.msra.mxu0 %v4957
    %5267 = vmatpush.msra.mxu0 %v4956
    %5268 = vmatpush.msra.mxu0 %v4955
    %5269 = vmatpush.msra.mxu0 %v4954
    %5270 = vmatpush.msra.mxu0 %v4953
    %5271 = vmatpush.msra.mxu0 %v4952
    %5272 = vmatmul.f32.gmra.mxu0 %v4771
    %v5273 = vpop.f32.mrf.mxu0
    %v5274 = vadd.f32 %v5254, %v5273
    %5275 = vdwg.mxu0
    %5276 = vmatpush.msra.mxu0 %v4983
    %5277 = vmatpush.msra.mxu0 %v4982
    %5278 = vmatpush.msra.mxu0 %v4981
    %5279 = vmatpush.msra.mxu0 %v4980
    %5280 = vmatpush.msra.mxu0 %v4979
    %5281 = vmatpush.msra.mxu0 %v4978
    %5282 = vmatpush.msra.mxu0 %v4977
    %5283 = vmatpush.msra.mxu0 %v4976
    %5284 = vmatpush.msra.mxu0 %v4975
    %5285 = vmatpush.msra.mxu0 %v4974
    %5286 = vmatpush.msra.mxu0 %v4973
    %5287 = vmatpush.msra.mxu0 %v4972
    %5288 = vmatpush.msra.mxu0 %v4971
    %5289 = vmatpush.msra.mxu0 %v4970
    %5290 = vmatpush.msra.mxu0 %v4969
    %5291 = vmatpush.msra.mxu0 %v4968
    %5292 = vmatmul.f32.gmra.mxu0 %v4772
    %v5293 = vpop.f32.mrf.mxu0
    %v5294 = vadd.f32 %v5274, %v5293
    %5295 = vdwg.mxu0
    %5296 = vmatpush.msra.mxu0 %v4999
    %5297 = vmatpush.msra.mxu0 %v4998
    %5298 = vmatpush.msra.mxu0 %v4997
    %5299 = vmatpush.msra.mxu0 %v4996
    %5300 = vmatpush.msra.mxu0 %v4995
    %5301 = vmatpush.msra.mxu0 %v4994
    %5302 = vmatpush.msra.mxu0 %v4993
    %5303 = vmatpush.msra.mxu0 %v4992
    %5304 = vmatpush.msra.mxu0 %v4991
    %5305 = vmatpush.msra.mxu0 %v4990
    %5306 = vmatpush.msra.mxu0 %v4989
    %5307 = vmatpush.msra.mxu0 %v4988
    %5308 = vmatpush.msra.mxu0 %v4987
    %5309 = vmatpush.msra.mxu0 %v4986
    %5310 = vmatpush.msra.mxu0 %v4985
    %5311 = vmatpush.msra.mxu0 %v4984
    %5312 = vmatmul.f32.gmra.mxu0 %v4773
    %v5313 = vpop.f32.mrf.mxu0
    %v5314 = vadd.f32 %v5294, %v5313
    %5315 = vdwg.mxu0
    %5316 = vmatpush.msra.mxu0 %v5015
    %5317 = vmatpush.msra.mxu0 %v5014
    %5318 = vmatpush.msra.mxu0 %v5013
    %5319 = vmatpush.msra.mxu0 %v5012
    %5320 = vmatpush.msra.mxu0 %v5011
    %5321 = vmatpush.msra.mxu0 %v5010
    %5322 = vmatpush.msra.mxu0 %v5009
    %5323 = vmatpush.msra.mxu0 %v5008
    %5324 = vmatpush.msra.mxu0 %v5007
    %5325 = vmatpush.msra.mxu0 %v5006
    %5326 = vmatpush.msra.mxu0 %v5005
    %5327 = vmatpush.msra.mxu0 %v5004
    %5328 = vmatpush.msra.mxu0 %v5003
    %5329 = vmatpush.msra.mxu0 %v5002
    %5330 = vmatpush.msra.mxu0 %v5001
    %5331 = vmatpush.msra.mxu0 %v5000
    %5332 = vmatmul.f32.gmra.mxu0 %v4774
    %v5333 = vpop.f32.mrf.mxu0
    %v5334 = vadd.f32 %v5314, %v5333
    %5335 = vdwg.mxu0
    %5336 = vmatpush.msra.mxu0 %v5031
    %5337 = vmatpush.msra.mxu0 %v5030
    %5338 = vmatpush.msra.mxu0 %v5029
    %5339 = vmatpush.msra.mxu0 %v5028
    %5340 = vmatpush.msra.mxu0 %v5027
    %5341 = vmatpush.msra.mxu0 %v5026
    %5342 = vmatpush.msra.mxu0 %v5025
    %5343 = vmatpush.msra.mxu0 %v5024
    %5344 = vmatpush.msra.mxu0 %v5023
    %5345 = vmatpush.msra.mxu0 %v5022
    %5346 = vmatpush.msra.mxu0 %v5021
    %5347 = vmatpush.msra.mxu0 %v5020
    %5348 = vmatpush.msra.mxu0 %v5019
    %5349 = vmatpush.msra.mxu0 %v5018
    %5350 = vmatpush.msra.mxu0 %v5017
    %5351 = vmatpush.msra.mxu0 %v5016
    %5352 = vmatmul.f32.gmra.mxu0 %v4775
    %v5353 = vpop.f32.mrf.mxu0
    %v5354 = vadd.f32 %v5334, %v5353
    %5355 = vdwg.mxu0
    %5356 = vst [vmem:[#allocation11] sm:$0x3] %v5354
    // Predicated region
    $region42: #{tpu_custom_call.1} parent=1 // pred_check
      _
    $region43: #{tpu_custom_call.1} parent=1 // pred_check_branch
      %5358 = sbr.rel (0) target = $region45
    $region44: #{tpu_custom_call.1} parent=1 // pred_region
      %5360 = vsyncadd [#allocation4], 0
      %s5362 = sshll.u32 [#allocation11], 4
      %s5363 = int_to_ptr.vmem [resolvable:$true] %s5362
      %s5364 = sshll.u32 %s5, 4
      %s5365 = int_to_ptr.hbm [resolvable:$true] %s5364
      %5367 = dma.vmem_to_hbm [thread:$0]  %s5363, 32, %s5365, [#allocation4]
    $region45: #{tpu_custom_call.1} parent=1 // pred_fallthru
      _
    // Predicated region
    $region46: #{tpu_custom_call.1} parent=1 // pred_check
      _
    $region47: #{tpu_custom_call.1} parent=1 // pred_check_branch
      %5369 = sbr.rel (0) target = $region49
    $region48: #{tpu_custom_call.1} parent=1 // pred_region
      %5371 = dma.done [#allocation4], 32
    $region49: #{tpu_custom_call.1} parent=1 // pred_fallthru
      _
    %5372 = vsyncpa [#allocation3], 1
    %5373 = vsyncpa [#allocation6], 1
    %5374 = vsyncpa [#allocation9], 1
    %5375 = vsyncpa [#allocation4], 1

</llo_original>
